<compile_context>
chip_gen: v7x
topology: tpu7x:2x2x1
jax: 0.10.0
libtpu: 0.0.40
codegen_flags: <defaults>
</compile_context>

<pallas_src>
import jax
import jax.numpy as jnp
import numpy as np
from jax import lax
from jax.experimental import pallas as pl
from jax.experimental.pallas import tpu as pltpu

LANE = 128


def _round_up(x, m):
    return (x + m - 1) // m * m


# --------------------------------------------------------------------------
# Pallas kernel: full bottleneck for one batch element (grid over N).
# --------------------------------------------------------------------------
def _bottleneck_kernel(x_ref, w1_ref, s1_ref, b1_ref,
                       w2_ref, s2_ref, b2_ref,
                       w3_ref, s3_ref, b3_ref,
                       out_ref, pad_ref, col_ref):
    H, W, _ = col_ref.shape
    HW = H * W
    Cmid = w1_ref.shape[1]
    Wp = pad_ref.shape[1]            # W + 16

    x2d = x_ref[0]                                            # (HW, Cin_p) bf16

    # ---- conv1 (1x1) + BN1 + ReLU  (bf16 MXU, f32 accumulate) --------------
    h1 = jnp.dot(x2d, w1_ref[...], preferred_element_type=jnp.float32)
    h1 = jnp.maximum(h1 * s1_ref[...] + b1_ref[...], 0.0)     # (HW, Cmid) f32

    # ---- conv2 (3x3, padding=1, stride=1) as ONE im2col matmul -------------
    # Stage h1 into a zero-halo buffer.  The interior starts at sublane
    # offset 8 so the big store is aligned; only the halo strips that the
    # taps actually read are re-zeroed each grid step (not the whole buffer).
    pad_ref[0:1, :, :] = jnp.zeros((1, Wp, Cmid), pad_ref.dtype)
    pad_ref[H + 1:H + 2, :, :] = jnp.zeros((1, Wp, Cmid), pad_ref.dtype)
    pad_ref[:, 0:8, :] = jnp.zeros((H + 2, 8, Cmid), pad_ref.dtype)
    pad_ref[:, W + 8:W + 16, :] = jnp.zeros((H + 2, 8, Cmid), pad_ref.dtype)
    pad_ref[1:H + 1, 8:W + 8, :] = h1.reshape(H, W, Cmid)

    # im2col: 9 lane-aligned writes (lane offsets are multiples of 128),
    # then a single MXU matmul with K = 9*Cmid.
    for t in range(9):
        dh, dw = t // 3, t % 3
        col_ref[:, :, t * Cmid:(t + 1) * Cmid] = (
            pad_ref[dh:dh + H, 7 + dw:7 + dw + W, :].astype(col_ref.dtype))
    patches = col_ref[...].reshape(HW, 9 * Cmid)              # (HW, 9*Cmid) bf16
    h2 = jnp.dot(patches, w2_ref[...], preferred_element_type=jnp.float32)
    h2 = jnp.maximum(h2 * s2_ref[...] + b2_ref[...], 0.0)     # (HW, Cmid) f32

    # ---- conv3 (1x1) + BN3 + residual + ReLU -------------------------------
    h3 = jnp.dot(h2.astype(w3_ref.dtype), w3_ref[...],
                 preferred_element_type=jnp.float32)
    h3 = h3 * s3_ref[...] + b3_ref[...]
    out = jnp.maximum(h3 + x2d.astype(jnp.float32), 0.0)      # (HW, Cout_p)
    out_ref[0] = out.astype(out_ref.dtype)


# --------------------------------------------------------------------------
# Wrapper (NCHW in / NCHW out, like the PyTorch module).
# --------------------------------------------------------------------------
def bottleneck_pallas(x_nchw, params):
    w1, s1, b1, w2, s2, b2, w3, s3, b3 = params
    N, Cin, H, W = x_nchw.shape
    Cmid = w1.shape[1]
    Cout = w3.shape[1]
    assert Cout == Cin, "downsample=None requires inplanes == 4*planes"

    Cin_p = _round_up(Cin, LANE)
    Cmid_p = _round_up(Cmid, LANE)
    Cout_p = Cin_p
    HW = H * W

    # NCHW -> (N, H*W, Cin_p) bf16, channels zero-padded to the lane width.
    x = jnp.transpose(x_nchw, (0, 2, 3, 1)).reshape(N, HW, Cin)
    x = jnp.pad(x, ((0, 0), (0, 0), (0, Cin_p - Cin))).astype(jnp.bfloat16)

    def pad2(a, r, c):
        return jnp.pad(a, ((0, r - a.shape[0]), (0, c - a.shape[1])))

    w1p = pad2(w1, Cin_p, Cmid_p).astype(jnp.bfloat16)
    w2p = jnp.pad(w2, ((0, 0), (0, 0), (0, Cmid_p - Cmid),
                       (0, Cmid_p - Cmid)))
    w2p = w2p.reshape(9 * Cmid_p, Cmid_p).astype(jnp.bfloat16)
    w3p = pad2(w3, Cmid_p, Cout_p).astype(jnp.bfloat16)

    s1p, b1p = pad2(s1, 1, Cmid_p), pad2(b1, 1, Cmid_p)
    s2p, b2p = pad2(s2, 1, Cmid_p), pad2(b2, 1, Cmid_p)
    s3p, b3p = pad2(s3, 1, Cout_p), pad2(b3, 1, Cout_p)

    def full(shape):
        return pl.BlockSpec(shape, lambda n: (0,) * len(shape))

    out_flat = pl.pallas_call(
        _bottleneck_kernel,
        out_shape=jax.ShapeDtypeStruct((N, HW, Cout_p), jnp.float32),
        grid_spec=pltpu.PrefetchScalarGridSpec(
            num_scalar_prefetch=0,
            grid=(N,),
            in_specs=[
                pl.BlockSpec((1, HW, Cin_p), lambda n: (n, 0, 0)),
                full((Cin_p, Cmid_p)), full((1, Cmid_p)), full((1, Cmid_p)),
                full((9 * Cmid_p, Cmid_p)), full((1, Cmid_p)), full((1, Cmid_p)),
                full((Cmid_p, Cout_p)), full((1, Cout_p)), full((1, Cout_p)),
            ],
            out_specs=pl.BlockSpec((1, HW, Cout_p), lambda n: (n, 0, 0)),
            scratch_shapes=[
                pltpu.VMEM((H + 2, W + 16, Cmid_p), jnp.float32),   # halo buf
                pltpu.VMEM((H, W, 9 * Cmid_p), jnp.bfloat16),       # im2col
            ],
        ),
        compiler_params=pltpu.CompilerParams(
            dimension_semantics=("parallel",),
            vmem_limit_bytes=32 * 1024 * 1024),
    )(x, w1p, s1p, b1p, w2p, s2p, b2p, w3p, s3p, b3p)

    out = out_flat.reshape(N, H, W, Cout_p)[:, :, :, :Cout]
    return jnp.transpose(out, (0, 3, 1, 2))                  # NHWC -> NCHW


# --------------------------------------------------------------------------
# Deterministic parameter init (mirrors nn.Conv2d / nn.BatchNorm2d shapes).
# --------------------------------------------------------------------------
def init_params(key, inplanes, planes, eps=1e-5):
    ks = jax.random.split(key, 15)

    # Conv weights in PyTorch OIHW layout, converted for NHWC matmuls.
    w1_oihw = jax.random.normal(ks[0], (planes, inplanes, 1, 1), jnp.float32) * 0.1
    w2_oihw = jax.random.normal(ks[1], (planes, planes, 3, 3), jnp.float32) * 0.1
    w3_oihw = jax.random.normal(ks[2], (planes * 4, planes, 1, 1), jnp.float32) * 0.1

    def bn(k0, k1, k2, k3, c):
        gamma = jax.random.uniform(k0, (c,), jnp.float32, 0.5, 1.5)
        beta = jax.random.normal(k1, (c,), jnp.float32) * 0.1
        rmean = jax.random.normal(k2, (c,), jnp.float32) * 0.1
        rvar = jnp.abs(jax.random.normal(k3, (c,), jnp.float32)) * 0.2 + 0.8
        scale = gamma / jnp.sqrt(rvar + eps)
        bias = beta - rmean * scale
        return scale.reshape(1, c), bias.reshape(1, c)

    s1, b1 = bn(ks[3], ks[4], ks[5], ks[6], planes)
    s2, b2 = bn(ks[7], ks[8], ks[9], ks[10], planes)
    s3, b3 = bn(ks[11], ks[12], ks[13], ks[14], planes * 4)

    w1 = jnp.transpose(w1_oihw[:, :, 0, 0], (1, 0))          # (Cin, Cmid)
    w2 = jnp.transpose(w2_oihw, (2, 3, 1, 0))                # (kh, kw, Cin, Cout)
    w3 = jnp.transpose(w3_oihw[:, :, 0, 0], (1, 0))          # (Cmid, Cout)
    return (w1, s1, b1, w2, s2, b2, w3, s3, b3)


# --------------------------------------------------------------------------
# Pure-JAX reference (same bf16-multiply / f32-accumulate numerics).
# --------------------------------------------------------------------------
def bottleneck_ref(x_nchw, params):
    w1, s1, b1, w2, s2, b2, w3, s3, b3 = params
    bf16, f32 = jnp.bfloat16, jnp.float32
    x = jnp.transpose(x_nchw, (0, 2, 3, 1)).astype(bf16)     # NHWC
    dn = ('NHWC', 'HWIO', 'NHWC')

    h = lax.conv_general_dilated(x, w1[None, None].astype(bf16), (1, 1),
                                 'VALID', dimension_numbers=dn,
                                 preferred_element_type=f32)
    h = jnp.maximum(h * s1[0] + b1[0], 0.0)
    h = lax.conv_general_dilated(h.astype(bf16), w2.astype(bf16), (1, 1),
                                 ((1, 1), (1, 1)), dimension_numbers=dn,
                                 preferred_element_type=f32)
    h = jnp.maximum(h * s2[0] + b2[0], 0.0)
    h = lax.conv_general_dilated(h.astype(bf16), w3[None, None].astype(bf16),
                                 (1, 1), 'VALID', dimension_numbers=dn,
                                 preferred_element_type=f32)
    h = h * s3[0] + b3[0]
    out = jnp.maximum(h + x.astype(f32), 0.0)
    return jnp.transpose(out, (0, 3, 1, 2))


if __name__ == "__main__":
    # Small shapes consistent with the module: downsample=None, stride=1
    # -> inplanes == planes * expansion(4).
    N, planes, H, W = 2, 4, 16, 16
    inplanes = planes * 4                                     # 16

    key = jax.random.PRNGKey(0)
    kx, kp = jax.random.split(key)
    x = jax.random.normal(kx, (N, inplanes, H, W), jnp.float32)
    params = init_params(kp, inplanes, planes)

    out = jax.block_until_ready(bottleneck_pallas(x, params))
    ref = bottleneck_ref(x, params)
    np.testing.assert_allclose(np.asarray(out), np.asarray(ref),
                               rtol=1e-2, atol=1e-2)
    print("KERNEL_OK")
</pallas_src>

<mosaic_0001>
module attributes {stable_mosaic.version = 11 : i64} {
  func.func @_bottleneck_kernel(%arg0: i32, %arg1: memref<1x256x128xbf16, #tpu.memory_space<vmem>>, %arg2: memref<128x128xbf16, #tpu.memory_space<vmem>>, %arg3: memref<1x128xf32, #tpu.memory_space<vmem>>, %arg4: memref<1x128xf32, #tpu.memory_space<vmem>>, %arg5: memref<1152x128xbf16, #tpu.memory_space<vmem>>, %arg6: memref<1x128xf32, #tpu.memory_space<vmem>>, %arg7: memref<1x128xf32, #tpu.memory_space<vmem>>, %arg8: memref<128x128xbf16, #tpu.memory_space<vmem>>, %arg9: memref<1x128xf32, #tpu.memory_space<vmem>>, %arg10: memref<1x128xf32, #tpu.memory_space<vmem>>, %arg11: memref<1x256x128xf32, #tpu.memory_space<vmem>>, %arg12: memref<18x32x128xf32, #tpu.memory_space<vmem>>, %arg13: memref<16x16x1152xbf16, #tpu.memory_space<vmem>>) attributes {dimension_semantics = [#tpu.dimension_semantics<parallel>], iteration_bounds = array<i64: 2>, scalar_prefetch = 0 : i64, scratch_operands = 2 : i64, tpu.core_type = #tpu.core_type<tc>, window_params = [{transform_indices = @transform_0, window_bounds = array<i64: 1, 256, 128>}, {pipeline_mode = #tpu.pipeline_mode<synchronous>, transform_indices = @transform_1, window_bounds = array<i64: 128, 128>}, {pipeline_mode = #tpu.pipeline_mode<synchronous>, transform_indices = @transform_2, window_bounds = array<i64: 1, 128>}, {pipeline_mode = #tpu.pipeline_mode<synchronous>, transform_indices = @transform_3, window_bounds = array<i64: 1, 128>}, {pipeline_mode = #tpu.pipeline_mode<synchronous>, transform_indices = @transform_4, window_bounds = array<i64: 1152, 128>}, {pipeline_mode = #tpu.pipeline_mode<synchronous>, transform_indices = @transform_5, window_bounds = array<i64: 1, 128>}, {pipeline_mode = #tpu.pipeline_mode<synchronous>, transform_indices = @transform_6, window_bounds = array<i64: 1, 128>}, {pipeline_mode = #tpu.pipeline_mode<synchronous>, transform_indices = @transform_7, window_bounds = array<i64: 128, 128>}, {pipeline_mode = #tpu.pipeline_mode<synchronous>, transform_indices = @transform_8, window_bounds = array<i64: 1, 128>}, {pipeline_mode = #tpu.pipeline_mode<synchronous>, transform_indices = @transform_9, window_bounds = array<i64: 1, 128>}, {transform_indices = @transform_10, window_bounds = array<i64: 1, 256, 128>}]} {
    %c0 = arith.constant 0 : index
    %c0_0 = arith.constant 0 : index
    %c0_1 = arith.constant 0 : index
    %0 = vector.load %arg1[%c0, %c0_0, %c0_1] : memref<1x256x128xbf16, #tpu.memory_space<vmem>>, vector<1x256x128xbf16>
    %1 = vector.shape_cast %0 : vector<1x256x128xbf16> to vector<256x128xbf16>
    %c0_2 = arith.constant 0 : index
    %c0_3 = arith.constant 0 : index
    %2 = vector.load %arg2[%c0_2, %c0_3] : memref<128x128xbf16, #tpu.memory_space<vmem>>, vector<128x128xbf16>
    %cst = arith.constant dense<0.000000e+00> : vector<256x128xf32>
    %3 = tpu.matmul %1, %2, %cst {dimension_numbers = #tpu.dot_dimension_numbers<[1], [0], [0], [1], [0, 0, 1, 1], [], []>} : vector<256x128xbf16>, vector<128x128xbf16>, vector<256x128xf32> -> vector<256x128xf32>
    %c0_4 = arith.constant 0 : index
    %c0_5 = arith.constant 0 : index
    %4 = vector.load %arg3[%c0_4, %c0_5] : memref<1x128xf32, #tpu.memory_space<vmem>>, vector<1x128xf32>
    %5 = vector.broadcast %4 : vector<1x128xf32> to vector<256x128xf32>
    %6 = arith.mulf %3, %5 : vector<256x128xf32>
    %c0_6 = arith.constant 0 : index
    %c0_7 = arith.constant 0 : index
    %7 = vector.load %arg4[%c0_6, %c0_7] : memref<1x128xf32, #tpu.memory_space<vmem>>, vector<1x128xf32>
    %8 = vector.broadcast %7 : vector<1x128xf32> to vector<256x128xf32>
    %9 = arith.addf %6, %8 : vector<256x128xf32>
    %cst_8 = arith.constant 0.000000e+00 : f32
    %10 = vector.broadcast %cst_8 : f32 to vector<256x128xf32>
    %11 = arith.maximumf %9, %10 : vector<256x128xf32>
    %cst_9 = arith.constant 0.000000e+00 : f32
    %12 = vector.broadcast %cst_9 : f32 to vector<1x32x128xf32>
    %c0_10 = arith.constant 0 : index
    %c0_11 = arith.constant 0 : index
    %c0_12 = arith.constant 0 : index
    %13 = vector.load %arg12[%c0_10, %c0_11, %c0_12] : memref<18x32x128xf32, #tpu.memory_space<vmem>>, vector<1x32x128xf32>
    tpu.vector_store %arg12[%c0_10, %c0_11, %c0_12], %12 {strides = array<i32>} : memref<18x32x128xf32, #tpu.memory_space<vmem>>, vector<1x32x128xf32>,
    %cst_13 = arith.constant 0.000000e+00 : f32
    %14 = vector.broadcast %cst_13 : f32 to vector<1x32x128xf32>
    %c17 = arith.constant 17 : index
    %c0_14 = arith.constant 0 : index
    %c0_15 = arith.constant 0 : index
    %15 = vector.load %arg12[%c17, %c0_14, %c0_15] : memref<18x32x128xf32, #tpu.memory_space<vmem>>, vector<1x32x128xf32>
    tpu.vector_store %arg12[%c17, %c0_14, %c0_15], %14 {strides = array<i32>} : memref<18x32x128xf32, #tpu.memory_space<vmem>>, vector<1x32x128xf32>,
    %cst_16 = arith.constant 0.000000e+00 : f32
    %16 = vector.broadcast %cst_16 : f32 to vector<18x8x128xf32>
    %c0_17 = arith.constant 0 : index
    %c0_18 = arith.constant 0 : index
    %c0_19 = arith.constant 0 : index
    %17 = vector.load %arg12[%c0_17, %c0_18, %c0_19] : memref<18x32x128xf32, #tpu.memory_space<vmem>>, vector<18x8x128xf32>
    tpu.vector_store %arg12[%c0_17, %c0_18, %c0_19], %16 {strides = array<i32>} : memref<18x32x128xf32, #tpu.memory_space<vmem>>, vector<18x8x128xf32>,
    %cst_20 = arith.constant 0.000000e+00 : f32
    %18 = vector.broadcast %cst_20 : f32 to vector<18x8x128xf32>
    %c0_21 = arith.constant 0 : index
    %c24 = arith.constant 24 : index
    %c0_22 = arith.constant 0 : index
    %19 = vector.load %arg12[%c0_21, %c24, %c0_22] : memref<18x32x128xf32, #tpu.memory_space<vmem>>, vector<18x8x128xf32>
    tpu.vector_store %arg12[%c0_21, %c24, %c0_22], %18 {strides = array<i32>} : memref<18x32x128xf32, #tpu.memory_space<vmem>>, vector<18x8x128xf32>,
    %20 = vector.shape_cast %11 : vector<256x128xf32> to vector<16x16x128xf32>
    %c1 = arith.constant 1 : index
    %c8 = arith.constant 8 : index
    %c0_23 = arith.constant 0 : index
    %21 = vector.load %arg12[%c1, %c8, %c0_23] : memref<18x32x128xf32, #tpu.memory_space<vmem>>, vector<16x16x128xf32>
    tpu.vector_store %arg12[%c1, %c8, %c0_23], %20 {strides = array<i32>} : memref<18x32x128xf32, #tpu.memory_space<vmem>>, vector<16x16x128xf32>,
    %c0_24 = arith.constant 0 : index
    %c7 = arith.constant 7 : index
    %c0_25 = arith.constant 0 : index
    %22 = vector.load %arg12[%c0_24, %c7, %c0_25] : memref<18x32x128xf32, #tpu.memory_space<vmem>>, vector<16x16x128xf32>
    %23 = arith.truncf %22 : vector<16x16x128xf32> to vector<16x16x128xbf16>
    %c0_26 = arith.constant 0 : index
    %c0_27 = arith.constant 0 : index
    %c0_28 = arith.constant 0 : index
    %24 = vector.load %arg13[%c0_26, %c0_27, %c0_28] : memref<16x16x1152xbf16, #tpu.memory_space<vmem>>, vector<16x16x128xbf16>
    tpu.vector_store %arg13[%c0_26, %c0_27, %c0_28], %23 {strides = array<i32>} : memref<16x16x1152xbf16, #tpu.memory_space<vmem>>, vector<16x16x128xbf16>,
    %c0_29 = arith.constant 0 : index
    %c8_30 = arith.constant 8 : index
    %c0_31 = arith.constant 0 : index
    %25 = vector.load %arg12[%c0_29, %c8_30, %c0_31] : memref<18x32x128xf32, #tpu.memory_space<vmem>>, vector<16x16x128xf32>
    %26 = arith.truncf %25 : vector<16x16x128xf32> to vector<16x16x128xbf16>
    %c0_32 = arith.constant 0 : index
    %c0_33 = arith.constant 0 : index
    %c128 = arith.constant 128 : index
    %27 = vector.load %arg13[%c0_32, %c0_33, %c128] : memref<16x16x1152xbf16, #tpu.memory_space<vmem>>, vector<16x16x128xbf16>
    tpu.vector_store %arg13[%c0_32, %c0_33, %c128], %26 {strides = array<i32>} : memref<16x16x1152xbf16, #tpu.memory_space<vmem>>, vector<16x16x128xbf16>,
    %c0_34 = arith.constant 0 : index
    %c9 = arith.constant 9 : index
    %c0_35 = arith.constant 0 : index
    %28 = vector.load %arg12[%c0_34, %c9, %c0_35] : memref<18x32x128xf32, #tpu.memory_space<vmem>>, vector<16x16x128xf32>
    %29 = arith.truncf %28 : vector<16x16x128xf32> to vector<16x16x128xbf16>
    %c0_36 = arith.constant 0 : index
    %c0_37 = arith.constant 0 : index
    %c256 = arith.constant 256 : index
    %30 = vector.load %arg13[%c0_36, %c0_37, %c256] : memref<16x16x1152xbf16, #tpu.memory_space<vmem>>, vector<16x16x128xbf16>
    tpu.vector_store %arg13[%c0_36, %c0_37, %c256], %29 {strides = array<i32>} : memref<16x16x1152xbf16, #tpu.memory_space<vmem>>, vector<16x16x128xbf16>,
    %c1_38 = arith.constant 1 : index
    %c7_39 = arith.constant 7 : index
    %c0_40 = arith.constant 0 : index
    %31 = vector.load %arg12[%c1_38, %c7_39, %c0_40] : memref<18x32x128xf32, #tpu.memory_space<vmem>>, vector<16x16x128xf32>
    %32 = arith.truncf %31 : vector<16x16x128xf32> to vector<16x16x128xbf16>
    %c0_41 = arith.constant 0 : index
    %c0_42 = arith.constant 0 : index
    %c384 = arith.constant 384 : index
    %33 = vector.load %arg13[%c0_41, %c0_42, %c384] : memref<16x16x1152xbf16, #tpu.memory_space<vmem>>, vector<16x16x128xbf16>
    tpu.vector_store %arg13[%c0_41, %c0_42, %c384], %32 {strides = array<i32>} : memref<16x16x1152xbf16, #tpu.memory_space<vmem>>, vector<16x16x128xbf16>,
    %c1_43 = arith.constant 1 : index
    %c8_44 = arith.constant 8 : index
    %c0_45 = arith.constant 0 : index
    %34 = vector.load %arg12[%c1_43, %c8_44, %c0_45] : memref<18x32x128xf32, #tpu.memory_space<vmem>>, vector<16x16x128xf32>
    %35 = arith.truncf %34 : vector<16x16x128xf32> to vector<16x16x128xbf16>
    %c0_46 = arith.constant 0 : index
    %c0_47 = arith.constant 0 : index
    %c512 = arith.constant 512 : index
    %36 = vector.load %arg13[%c0_46, %c0_47, %c512] : memref<16x16x1152xbf16, #tpu.memory_space<vmem>>, vector<16x16x128xbf16>
    tpu.vector_store %arg13[%c0_46, %c0_47, %c512], %35 {strides = array<i32>} : memref<16x16x1152xbf16, #tpu.memory_space<vmem>>, vector<16x16x128xbf16>,
    %c1_48 = arith.constant 1 : index
    %c9_49 = arith.constant 9 : index
    %c0_50 = arith.constant 0 : index
    %37 = vector.load %arg12[%c1_48, %c9_49, %c0_50] : memref<18x32x128xf32, #tpu.memory_space<vmem>>, vector<16x16x128xf32>
    %38 = arith.truncf %37 : vector<16x16x128xf32> to vector<16x16x128xbf16>
    %c0_51 = arith.constant 0 : index
    %c0_52 = arith.constant 0 : index
    %c640 = arith.constant 640 : index
    %39 = vector.load %arg13[%c0_51, %c0_52, %c640] : memref<16x16x1152xbf16, #tpu.memory_space<vmem>>, vector<16x16x128xbf16>
    tpu.vector_store %arg13[%c0_51, %c0_52, %c640], %38 {strides = array<i32>} : memref<16x16x1152xbf16, #tpu.memory_space<vmem>>, vector<16x16x128xbf16>,
    %c2 = arith.constant 2 : index
    %c7_53 = arith.constant 7 : index
    %c0_54 = arith.constant 0 : index
    %40 = vector.load %arg12[%c2, %c7_53, %c0_54] : memref<18x32x128xf32, #tpu.memory_space<vmem>>, vector<16x16x128xf32>
    %41 = arith.truncf %40 : vector<16x16x128xf32> to vector<16x16x128xbf16>
    %c0_55 = arith.constant 0 : index
    %c0_56 = arith.constant 0 : index
    %c768 = arith.constant 768 : index
    %42 = vector.load %arg13[%c0_55, %c0_56, %c768] : memref<16x16x1152xbf16, #tpu.memory_space<vmem>>, vector<16x16x128xbf16>
    tpu.vector_store %arg13[%c0_55, %c0_56, %c768], %41 {strides = array<i32>} : memref<16x16x1152xbf16, #tpu.memory_space<vmem>>, vector<16x16x128xbf16>,
    %c2_57 = arith.constant 2 : index
    %c8_58 = arith.constant 8 : index
    %c0_59 = arith.constant 0 : index
    %43 = vector.load %arg12[%c2_57, %c8_58, %c0_59] : memref<18x32x128xf32, #tpu.memory_space<vmem>>, vector<16x16x128xf32>
    %44 = arith.truncf %43 : vector<16x16x128xf32> to vector<16x16x128xbf16>
    %c0_60 = arith.constant 0 : index
    %c0_61 = arith.constant 0 : index
    %c896 = arith.constant 896 : index
    %45 = vector.load %arg13[%c0_60, %c0_61, %c896] : memref<16x16x1152xbf16, #tpu.memory_space<vmem>>, vector<16x16x128xbf16>
    tpu.vector_store %arg13[%c0_60, %c0_61, %c896], %44 {strides = array<i32>} : memref<16x16x1152xbf16, #tpu.memory_space<vmem>>, vector<16x16x128xbf16>,
    %c2_62 = arith.constant 2 : index
    %c9_63 = arith.constant 9 : index
    %c0_64 = arith.constant 0 : index
    %46 = vector.load %arg12[%c2_62, %c9_63, %c0_64] : memref<18x32x128xf32, #tpu.memory_space<vmem>>, vector<16x16x128xf32>
    %47 = arith.truncf %46 : vector<16x16x128xf32> to vector<16x16x128xbf16>
    %c0_65 = arith.constant 0 : index
    %c0_66 = arith.constant 0 : index
    %c1024 = arith.constant 1024 : index
    %48 = vector.load %arg13[%c0_65, %c0_66, %c1024] : memref<16x16x1152xbf16, #tpu.memory_space<vmem>>, vector<16x16x128xbf16>
    tpu.vector_store %arg13[%c0_65, %c0_66, %c1024], %47 {strides = array<i32>} : memref<16x16x1152xbf16, #tpu.memory_space<vmem>>, vector<16x16x128xbf16>,
    %c0_67 = arith.constant 0 : index
    %c0_68 = arith.constant 0 : index
    %c0_69 = arith.constant 0 : index
    %49 = vector.load %arg13[%c0_67, %c0_68, %c0_69] : memref<16x16x1152xbf16, #tpu.memory_space<vmem>>, vector<16x16x1152xbf16>
    %50 = vector.shape_cast %49 : vector<16x16x1152xbf16> to vector<256x1152xbf16>
    %c0_70 = arith.constant 0 : index
    %c0_71 = arith.constant 0 : index
    %51 = vector.load %arg5[%c0_70, %c0_71] : memref<1152x128xbf16, #tpu.memory_space<vmem>>, vector<1152x128xbf16>
    %cst_72 = arith.constant dense<0.000000e+00> : vector<256x128xf32>
    %52 = tpu.matmul %50, %51, %cst_72 {dimension_numbers = #tpu.dot_dimension_numbers<[1], [0], [0], [1], [0, 0, 1, 1], [], []>} : vector<256x1152xbf16>, vector<1152x128xbf16>, vector<256x128xf32> -> vector<256x128xf32>
    %c0_73 = arith.constant 0 : index
    %c0_74 = arith.constant 0 : index
    %53 = vector.load %arg6[%c0_73, %c0_74] : memref<1x128xf32, #tpu.memory_space<vmem>>, vector<1x128xf32>
    %54 = vector.broadcast %53 : vector<1x128xf32> to vector<256x128xf32>
    %55 = arith.mulf %52, %54 : vector<256x128xf32>
    %c0_75 = arith.constant 0 : index
    %c0_76 = arith.constant 0 : index
    %56 = vector.load %arg7[%c0_75, %c0_76] : memref<1x128xf32, #tpu.memory_space<vmem>>, vector<1x128xf32>
    %57 = vector.broadcast %56 : vector<1x128xf32> to vector<256x128xf32>
    %58 = arith.addf %55, %57 : vector<256x128xf32>
    %cst_77 = arith.constant 0.000000e+00 : f32
    %59 = vector.broadcast %cst_77 : f32 to vector<256x128xf32>
    %60 = arith.maximumf %58, %59 : vector<256x128xf32>
    %61 = arith.truncf %60 : vector<256x128xf32> to vector<256x128xbf16>
    %c0_78 = arith.constant 0 : index
    %c0_79 = arith.constant 0 : index
    %62 = vector.load %arg8[%c0_78, %c0_79] : memref<128x128xbf16, #tpu.memory_space<vmem>>, vector<128x128xbf16>
    %cst_80 = arith.constant dense<0.000000e+00> : vector<256x128xf32>
    %63 = tpu.matmul %61, %62, %cst_80 {dimension_numbers = #tpu.dot_dimension_numbers<[1], [0], [0], [1], [0, 0, 1, 1], [], []>} : vector<256x128xbf16>, vector<128x128xbf16>, vector<256x128xf32> -> vector<256x128xf32>
    %c0_81 = arith.constant 0 : index
    %c0_82 = arith.constant 0 : index
    %64 = vector.load %arg9[%c0_81, %c0_82] : memref<1x128xf32, #tpu.memory_space<vmem>>, vector<1x128xf32>
    %65 = vector.broadcast %64 : vector<1x128xf32> to vector<256x128xf32>
    %66 = arith.mulf %63, %65 : vector<256x128xf32>
    %c0_83 = arith.constant 0 : index
    %c0_84 = arith.constant 0 : index
    %67 = vector.load %arg10[%c0_83, %c0_84] : memref<1x128xf32, #tpu.memory_space<vmem>>, vector<1x128xf32>
    %68 = vector.broadcast %67 : vector<1x128xf32> to vector<256x128xf32>
    %69 = arith.addf %66, %68 : vector<256x128xf32>
    %70 = arith.extf %1 : vector<256x128xbf16> to vector<256x128xf32>
    %71 = arith.addf %69, %70 : vector<256x128xf32>
    %cst_85 = arith.constant 0.000000e+00 : f32
    %72 = vector.broadcast %cst_85 : f32 to vector<256x128xf32>
    %73 = arith.maximumf %71, %72 : vector<256x128xf32>
    %c0_86 = arith.constant 0 : index
    %c0_87 = arith.constant 0 : index
    %c0_88 = arith.constant 0 : index
    %74 = vector.load %arg11[%c0_86, %c0_87, %c0_88] : memref<1x256x128xf32, #tpu.memory_space<vmem>>, vector<1x256x128xf32>
    %75 = vector.shape_cast %74 : vector<1x256x128xf32> to vector<256x128xf32>
    %76 = vector.shape_cast %73 : vector<256x128xf32> to vector<1x256x128xf32>
    tpu.vector_store %arg11[%c0_86, %c0_87, %c0_88], %76 {strides = array<i32>} : memref<1x256x128xf32, #tpu.memory_space<vmem>>, vector<1x256x128xf32>,
    return
  }
  func.func @transform_0(%arg0: i32) -> (i32, i32, i32) {
    %c0_i32 = arith.constant 0 : i32
    %c0_i32_0 = arith.constant 0 : i32
    %c0_i32_1 = arith.constant 0 : i32
    return %arg0, %c0_i32, %c0_i32_0 : i32, i32, i32
  }
  func.func @transform_1(%arg0: i32) -> (i32, i32) {
    %c0_i32 = arith.constant 0 : i32
    %c0_i32_0 = arith.constant 0 : i32
    %c0_i32_1 = arith.constant 0 : i32
    return %c0_i32, %c0_i32_0 : i32, i32
  }
  func.func @transform_2(%arg0: i32) -> (i32, i32) {
    %c0_i32 = arith.constant 0 : i32
    %c0_i32_0 = arith.constant 0 : i32
    %c0_i32_1 = arith.constant 0 : i32
    return %c0_i32, %c0_i32_0 : i32, i32
  }
  func.func @transform_3(%arg0: i32) -> (i32, i32) {
    %c0_i32 = arith.constant 0 : i32
    %c0_i32_0 = arith.constant 0 : i32
    %c0_i32_1 = arith.constant 0 : i32
    return %c0_i32, %c0_i32_0 : i32, i32
  }
  func.func @transform_4(%arg0: i32) -> (i32, i32) {
    %c0_i32 = arith.constant 0 : i32
    %c0_i32_0 = arith.constant 0 : i32
    %c0_i32_1 = arith.constant 0 : i32
    return %c0_i32, %c0_i32_0 : i32, i32
  }
  func.func @transform_5(%arg0: i32) -> (i32, i32) {
    %c0_i32 = arith.constant 0 : i32
    %c0_i32_0 = arith.constant 0 : i32
    %c0_i32_1 = arith.constant 0 : i32
    return %c0_i32, %c0_i32_0 : i32, i32
  }
  func.func @transform_6(%arg0: i32) -> (i32, i32) {
    %c0_i32 = arith.constant 0 : i32
    %c0_i32_0 = arith.constant 0 : i32
    %c0_i32_1 = arith.constant 0 : i32
    return %c0_i32, %c0_i32_0 : i32, i32
  }
  func.func @transform_7(%arg0: i32) -> (i32, i32) {
    %c0_i32 = arith.constant 0 : i32
    %c0_i32_0 = arith.constant 0 : i32
    %c0_i32_1 = arith.constant 0 : i32
    return %c0_i32, %c0_i32_0 : i32, i32
  }
  func.func @transform_8(%arg0: i32) -> (i32, i32) {
    %c0_i32 = arith.constant 0 : i32
    %c0_i32_0 = arith.constant 0 : i32
    %c0_i32_1 = arith.constant 0 : i32
    return %c0_i32, %c0_i32_0 : i32, i32
  }
  func.func @transform_9(%arg0: i32) -> (i32, i32) {
    %c0_i32 = arith.constant 0 : i32
    %c0_i32_0 = arith.constant 0 : i32
    %c0_i32_1 = arith.constant 0 : i32
    return %c0_i32, %c0_i32_0 : i32, i32
  }
  func.func @transform_10(%arg0: i32) -> (i32, i32, i32) {
    %c0_i32 = arith.constant 0 : i32
    %c0_i32_0 = arith.constant 0 : i32
    %c0_i32_1 = arith.constant 0 : i32
    return %arg0, %c0_i32, %c0_i32_0 : i32, i32, i32
  }
}

</mosaic_0001>

<llo_original>
// kernel: tpu_custom_call.1
$region0: #{tpu_custom_call.1}
  #allocation0 [shape = 'u32[]', space=smem, size = 0x4, offset = 0x4, fixed_abs, tag = 'smem constant byte address 0x4 - core index']
  #allocation1 [shape = 'u32[144,128]{1,0:T(1,128)}', space=vmem, size = 0x12000, scoped, tag = 'internal scratch']
  #allocation2 [shape = 'f32[18,32,128]{2,1,0:T(8,128)}', space=vmem, size = 0x48000, scoped, tag = 'scratch operand']
  #allocation3 [shape = 'bf16[16,16,1152]{2,1,0:T(16,128)(2,1)}', space=vmem, size = 0x90000, scoped, tag = 'scratch operand']
  %s0 = inlined_call_operand.hbm [shape: bf16[2,256,128], index: 0, kind: input, shape index: {}]
  %s1 = inlined_call_operand.hbm [shape: bf16[128,128], index: 1, kind: input, shape index: {}]
  %s2 = inlined_call_operand.vmem [shape: f32[1,128], index: 2, kind: input, shape index: {}]
  %s3 = inlined_call_operand.vmem [shape: f32[1,128], index: 3, kind: input, shape index: {}]
  %s4 = inlined_call_operand.hbm [shape: bf16[1152,128], index: 4, kind: input, shape index: {}]
  %s5 = inlined_call_operand.vmem [shape: f32[1,128], index: 5, kind: input, shape index: {}]
  %s6 = inlined_call_operand.vmem [shape: f32[1,128], index: 6, kind: input, shape index: {}]
  %s7 = inlined_call_operand.hbm [shape: bf16[128,128], index: 7, kind: input, shape index: {}]
  %s8 = inlined_call_operand.vmem [shape: f32[1,128], index: 8, kind: input, shape index: {}]
  %s9 = inlined_call_operand.vmem [shape: f32[1,128], index: 9, kind: input, shape index: {}]
  %s10 = inlined_call_operand.hbm [shape: f32[2,256,128], index: 10, kind: output, shape index: {}]
  %s11 = sld [smem:[#allocation0]]
  $region89: #{tpu_custom_call.1} parent=0
    _
  %s13 = ssub.s32 1, %s11
  %s14 = scalar_select 0, %s13, %s11
  $region1: #{tpu_custom_call.1} parent=0
    #allocation4 [shape = 'u8[131072]{0}', space=vmem, size = 0x20000, scoped, tag = 'input window, operand 0']
    #allocation5 [shape = 's32[2]{0}', space=sflag, size = 0x8, scoped, tag = 'scoped memory for tpu_custom_call.1']
    #allocation6 [shape = 's32[2]{0}', space=sflag, size = 0x8, scoped, tag = 'scoped memory for tpu_custom_call.1']
    #allocation7 [shape = 'u8[32768]{0}', space=vmem, size = 0x8000, scoped, tag = 'input window, operand 1, single buffered']
    #allocation8 [shape = 's32[1]{0}', space=sflag, size = 0x4, scoped, tag = 'scoped memory for tpu_custom_call.1']
    #allocation9 [shape = 'u8[294912]{0}', space=vmem, size = 0x48000, scoped, tag = 'input window, operand 4, single buffered']
    #allocation10 [shape = 'u8[32768]{0}', space=vmem, size = 0x8000, scoped, tag = 'input window, operand 7, single buffered']
    #allocation11 [shape = 's32[1]{0}', space=sflag, size = 0x4, scoped, tag = 'scoped memory for tpu_custom_call.1']
    #allocation12 [shape = 'u8[262144]{0}', space=vmem, size = 0x40000, scoped, tag = 'output window, operand 0']
    %15 = vsyncpa [#allocation5], 0
    %s16 = scalar_lea.sflag [#allocation5], 1
    %17 = vsyncpa %s16, 0
    %18 = vsyncpa [#allocation8], 0
    %19 = vsyncpa [#allocation11], 0
    %20 = vsyncpa [#allocation6], 0
    %s21 = scalar_lea.sflag [#allocation6], 1
    %22 = vsyncpa %s21, 0
    loop: start=0, step=1, limit=4
    $region2: #{tpu_custom_call.1} parent=1 // loop_pre_header
      _
    $region3: #{tpu_custom_call.1} parent=1 // loop_header
      %s24 = sphi 0, %s28
      %p25 = scmp.ge.s32.totalorder %s24, 4
      %s34 = sphi 0, %s36
      %s37 = sphi 0, %s34
      %s38 = sphi 0, %s37
      %s54 = sphi 0, %s38
      %s58 = sphi 0, %s58
      %s60 = sphi 0, %s58
      %s61 = sphi 0, %s60
      %s75 = sphi 0, %s61
      %s79 = sphi 0, %s79
      %s81 = sphi 0, %s79
      %s82 = sphi 0, %s81
      %s96 = sphi 0, %s82
      %s100 = sphi 0, %s100
      %s102 = sphi 0, %s100
      %s103 = sphi 0, %s102
      %s117 = sphi 0, %s103
      %s121 = sphi 0, %s121
      %s123 = sphi 0, %s121
      %s124 = sphi 0, %s123
      %s138 = sphi 0, %s124
      %s142 = sphi 0, %s142
      %s144 = sphi 0, %s142
      %s145 = sphi 0, %s144
      %s159 = sphi 0, %s145
      %s163 = sphi 0, %s163
      %s165 = sphi 0, %s163
      %s166 = sphi 0, %s165
      %s180 = sphi 0, %s166
      %s184 = sphi 0, %s184
      %s186 = sphi 0, %s184
      %s187 = sphi 0, %s186
      %s201 = sphi 0, %s187
      %s205 = sphi 0, %s205
      %s207 = sphi 0, %s205
      %s208 = sphi 0, %s207
      %s222 = sphi 0, %s208
      %s226 = sphi 0, %s226
      %s228 = sphi 0, %s226
      %s229 = sphi 0, %s228
      %s243 = sphi 0, %s229
      %s249 = sphi 0, %s251
      %s252 = sphi 0, %s249
      %s253 = sphi 0, %s252
      %s269 = sphi 0, %s253
    $region4: #{tpu_custom_call.1} parent=1 // loop_header_branch
      %27 = sbr.rel (%p25) target = $region8
    $region5: #{tpu_custom_call.1} parent=1 // loop_body
      %s29 = ssub.s32 %s24, 1
      %s30 = ssub.s32 %s24, 2
      %s31 = sadd.s32 %s24, 1
      %s32 = ssub.s32 %s24, %s31
      %p33 = scmp.eq.s32.totalorder %s32, 0
      %s35 = sadd.s32 %s34, 1
      %s36 = scalar_select %p33, %s34, %s35
      %p39 = pneg %p33
      %p40 = scmp.eq.s32.totalorder %s24, 1
      %p41 = por %p39, %p40
      %p42 = scmp.ne.s32.totalorder %s34, %s37
      %p43 = scmp.eq.s32.totalorder %s24, 0
      %p44 = por %p42, %p43
      %p45 = scmp.ne.s32.totalorder %s34, %s37
      %p46 = scmp.eq.s32.totalorder %s29, 1
      %p47 = por %p45, %p46
      %p48 = scmp.ne.s32.totalorder %s37, %s38
      %p49 = scmp.eq.s32.totalorder %s29, 0
      %p50 = por %p48, %p49
      %p51 = scmp.ne.s32.totalorder %s37, %s38
      %p52 = scmp.eq.s32.totalorder %s30, 1
      %p53 = por %p51, %p52
      %p55 = scmp.ne.s32.totalorder %s38, %s54
      %p56 = scmp.eq.s32.totalorder %s30, 0
      %p57 = por %p55, %p56
      %s59 = sadd.s32 %s58, 1
      %p62 = scmp.eq.s32.totalorder %s24, 1
      %p63 = scmp.ne.s32.totalorder %s58, %s60
      %p64 = scmp.eq.s32.totalorder %s24, 0
      %p65 = por %p63, %p64
      %p66 = scmp.ne.s32.totalorder %s58, %s60
      %p67 = scmp.eq.s32.totalorder %s29, 1
      %p68 = por %p66, %p67
      %p69 = scmp.ne.s32.totalorder %s60, %s61
      %p70 = scmp.eq.s32.totalorder %s29, 0
      %p71 = por %p69, %p70
      %p72 = scmp.ne.s32.totalorder %s60, %s61
      %p73 = scmp.eq.s32.totalorder %s30, 1
      %p74 = por %p72, %p73
      %p76 = scmp.ne.s32.totalorder %s61, %s75
      %p77 = scmp.eq.s32.totalorder %s30, 0
      %p78 = por %p76, %p77
      %s80 = sadd.s32 %s79, 1
      %p83 = scmp.eq.s32.totalorder %s24, 1
      %p84 = scmp.ne.s32.totalorder %s79, %s81
      %p85 = scmp.eq.s32.totalorder %s24, 0
      %p86 = por %p84, %p85
      %p87 = scmp.ne.s32.totalorder %s79, %s81
      %p88 = scmp.eq.s32.totalorder %s29, 1
      %p89 = por %p87, %p88
      %p90 = scmp.ne.s32.totalorder %s81, %s82
      %p91 = scmp.eq.s32.totalorder %s29, 0
      %p92 = por %p90, %p91
      %p93 = scmp.ne.s32.totalorder %s81, %s82
      %p94 = scmp.eq.s32.totalorder %s30, 1
      %p95 = por %p93, %p94
      %p97 = scmp.ne.s32.totalorder %s82, %s96
      %p98 = scmp.eq.s32.totalorder %s30, 0
      %p99 = por %p97, %p98
      %s101 = sadd.s32 %s100, 1
      %p104 = scmp.eq.s32.totalorder %s24, 1
      %p105 = scmp.ne.s32.totalorder %s100, %s102
      %p106 = scmp.eq.s32.totalorder %s24, 0
      %p107 = por %p105, %p106
      %p108 = scmp.ne.s32.totalorder %s100, %s102
      %p109 = scmp.eq.s32.totalorder %s29, 1
      %p110 = por %p108, %p109
      %p111 = scmp.ne.s32.totalorder %s102, %s103
      %p112 = scmp.eq.s32.totalorder %s29, 0
      %p113 = por %p111, %p112
      %p114 = scmp.ne.s32.totalorder %s102, %s103
      %p115 = scmp.eq.s32.totalorder %s30, 1
      %p116 = por %p114, %p115
      %p118 = scmp.ne.s32.totalorder %s103, %s117
      %p119 = scmp.eq.s32.totalorder %s30, 0
      %p120 = por %p118, %p119
      %s122 = sadd.s32 %s121, 1
      %p125 = scmp.eq.s32.totalorder %s24, 1
      %p126 = scmp.ne.s32.totalorder %s121, %s123
      %p127 = scmp.eq.s32.totalorder %s24, 0
      %p128 = por %p126, %p127
      %p129 = scmp.ne.s32.totalorder %s121, %s123
      %p130 = scmp.eq.s32.totalorder %s29, 1
      %p131 = por %p129, %p130
      %p132 = scmp.ne.s32.totalorder %s123, %s124
      %p133 = scmp.eq.s32.totalorder %s29, 0
      %p134 = por %p132, %p133
      %p135 = scmp.ne.s32.totalorder %s123, %s124
      %p136 = scmp.eq.s32.totalorder %s30, 1
      %p137 = por %p135, %p136
      %p139 = scmp.ne.s32.totalorder %s124, %s138
      %p140 = scmp.eq.s32.totalorder %s30, 0
      %p141 = por %p139, %p140
      %s143 = sadd.s32 %s142, 1
      %p146 = scmp.eq.s32.totalorder %s24, 1
      %p147 = scmp.ne.s32.totalorder %s142, %s144
      %p148 = scmp.eq.s32.totalorder %s24, 0
      %p149 = por %p147, %p148
      %p150 = scmp.ne.s32.totalorder %s142, %s144
      %p151 = scmp.eq.s32.totalorder %s29, 1
      %p152 = por %p150, %p151
      %p153 = scmp.ne.s32.totalorder %s144, %s145
      %p154 = scmp.eq.s32.totalorder %s29, 0
      %p155 = por %p153, %p154
      %p156 = scmp.ne.s32.totalorder %s144, %s145
      %p157 = scmp.eq.s32.totalorder %s30, 1
      %p158 = por %p156, %p157
      %p160 = scmp.ne.s32.totalorder %s145, %s159
      %p161 = scmp.eq.s32.totalorder %s30, 0
      %p162 = por %p160, %p161
      %s164 = sadd.s32 %s163, 1
      %p167 = scmp.eq.s32.totalorder %s24, 1
      %p168 = scmp.ne.s32.totalorder %s163, %s165
      %p169 = scmp.eq.s32.totalorder %s24, 0
      %p170 = por %p168, %p169
      %p171 = scmp.ne.s32.totalorder %s163, %s165
      %p172 = scmp.eq.s32.totalorder %s29, 1
      %p173 = por %p171, %p172
      %p174 = scmp.ne.s32.totalorder %s165, %s166
      %p175 = scmp.eq.s32.totalorder %s29, 0
      %p176 = por %p174, %p175
      %p177 = scmp.ne.s32.totalorder %s165, %s166
      %p178 = scmp.eq.s32.totalorder %s30, 1
      %p179 = por %p177, %p178
      %p181 = scmp.ne.s32.totalorder %s166, %s180
      %p182 = scmp.eq.s32.totalorder %s30, 0
      %p183 = por %p181, %p182
      %s185 = sadd.s32 %s184, 1
      %p188 = scmp.eq.s32.totalorder %s24, 1
      %p189 = scmp.ne.s32.totalorder %s184, %s186
      %p190 = scmp.eq.s32.totalorder %s24, 0
      %p191 = por %p189, %p190
      %p192 = scmp.ne.s32.totalorder %s184, %s186
      %p193 = scmp.eq.s32.totalorder %s29, 1
      %p194 = por %p192, %p193
      %p195 = scmp.ne.s32.totalorder %s186, %s187
      %p196 = scmp.eq.s32.totalorder %s29, 0
      %p197 = por %p195, %p196
      %p198 = scmp.ne.s32.totalorder %s186, %s187
      %p199 = scmp.eq.s32.totalorder %s30, 1
      %p200 = por %p198, %p199
      %p202 = scmp.ne.s32.totalorder %s187, %s201
      %p203 = scmp.eq.s32.totalorder %s30, 0
      %p204 = por %p202, %p203
      %s206 = sadd.s32 %s205, 1
      %p209 = scmp.eq.s32.totalorder %s24, 1
      %p210 = scmp.ne.s32.totalorder %s205, %s207
      %p211 = scmp.eq.s32.totalorder %s24, 0
      %p212 = por %p210, %p211
      %p213 = scmp.ne.s32.totalorder %s205, %s207
      %p214 = scmp.eq.s32.totalorder %s29, 1
      %p215 = por %p213, %p214
      %p216 = scmp.ne.s32.totalorder %s207, %s208
      %p217 = scmp.eq.s32.totalorder %s29, 0
      %p218 = por %p216, %p217
      %p219 = scmp.ne.s32.totalorder %s207, %s208
      %p220 = scmp.eq.s32.totalorder %s30, 1
      %p221 = por %p219, %p220
      %p223 = scmp.ne.s32.totalorder %s208, %s222
      %p224 = scmp.eq.s32.totalorder %s30, 0
      %p225 = por %p223, %p224
      %s227 = sadd.s32 %s226, 1
      %p230 = scmp.eq.s32.totalorder %s24, 1
      %p231 = scmp.ne.s32.totalorder %s226, %s228
      %p232 = scmp.eq.s32.totalorder %s24, 0
      %p233 = por %p231, %p232
      %p234 = scmp.ne.s32.totalorder %s226, %s228
      %p235 = scmp.eq.s32.totalorder %s29, 1
      %p236 = por %p234, %p235
      %p237 = scmp.ne.s32.totalorder %s228, %s229
      %p238 = scmp.eq.s32.totalorder %s29, 0
      %p239 = por %p237, %p238
      %p240 = scmp.ne.s32.totalorder %s228, %s229
      %p241 = scmp.eq.s32.totalorder %s30, 1
      %p242 = por %p240, %p241
      %p244 = scmp.ne.s32.totalorder %s229, %s243
      %p245 = scmp.eq.s32.totalorder %s30, 0
      %p246 = por %p244, %p245
      %s247 = ssub.s32 %s24, %s31
      %p248 = scmp.eq.s32.totalorder %s247, 0
      %s250 = sadd.s32 %s249, 1
      %s251 = scalar_select %p248, %s249, %s250
      %p254 = pneg %p248
      %p255 = scmp.eq.s32.totalorder %s24, 1
      %p256 = por %p254, %p255
      %p257 = scmp.ne.s32.totalorder %s249, %s252
      %p258 = scmp.eq.s32.totalorder %s24, 0
      %p259 = por %p257, %p258
      %p260 = scmp.ne.s32.totalorder %s249, %s252
      %p261 = scmp.eq.s32.totalorder %s29, 1
      %p262 = por %p260, %p261
      %p263 = scmp.ne.s32.totalorder %s252, %s253
      %p264 = scmp.eq.s32.totalorder %s29, 0
      %p265 = por %p263, %p264
      %p266 = scmp.ne.s32.totalorder %s252, %s253
      %p267 = scmp.eq.s32.totalorder %s30, 1
      %p268 = por %p266, %p267
      %p270 = scmp.ne.s32.totalorder %s253, %s269
      %p271 = scmp.eq.s32.totalorder %s30, 0
      %p272 = por %p270, %p271
      %p273 = scmp.le.s32.totalorder 1, %s24
      %p274 = scmp.lt.s32.totalorder %s24, 3
      %p275 = pnand %p273, %p274
      %p276 = pneg %p275
      // Predicated region
      $region9: #{tpu_custom_call.1} parent=5 // pred_check
        _
      $region10: #{tpu_custom_call.1} parent=5 // pred_check_branch
        %278 = sbr.rel (%p275) target = $region12
      $region11: #{tpu_custom_call.1} parent=5 // pred_region
        %s279 = ssub.s32 %s24, 1
        // Predicated region
        $region13: #{tpu_custom_call.1} parent=11 // pred_check
          %p280 = pneg %p71
        $region14: #{tpu_custom_call.1} parent=11 // pred_check_branch
          %282 = sbr.rel (%p280) target = $region16
        $region15: #{tpu_custom_call.1} parent=11 // pred_region
          %s284 = ssub.s32 1024, 1024
          %285 = vsyncadd [#allocation8], %s284
          %s286 = sshll.u32 [#allocation7], 4
          %s287 = int_to_ptr.vmem [resolvable:$true] %s286
          %292 = dma.hbm_to_vmem [thread:$0]  %s1, 1024, %s287, [#allocation8], 64, 64, 4
        $region16: #{tpu_custom_call.1} parent=11 // pred_fallthru
          _
        // Predicated region
        $region17: #{tpu_custom_call.1} parent=11 // pred_check
          %p293 = pneg %p92
        $region18: #{tpu_custom_call.1} parent=11 // pred_check_branch
          %295 = sbr.rel (%p293) target = $region20
        $region19: #{tpu_custom_call.1} parent=11 // pred_region
          _
        $region20: #{tpu_custom_call.1} parent=11 // pred_fallthru
          _
        // Predicated region
        $region21: #{tpu_custom_call.1} parent=11 // pred_check
          %p296 = pneg %p113
        $region22: #{tpu_custom_call.1} parent=11 // pred_check_branch
          %298 = sbr.rel (%p296) target = $region24
        $region23: #{tpu_custom_call.1} parent=11 // pred_region
          _
        $region24: #{tpu_custom_call.1} parent=11 // pred_fallthru
          _
        // Predicated region
        $region25: #{tpu_custom_call.1} parent=11 // pred_check
          %p299 = pneg %p134
        $region26: #{tpu_custom_call.1} parent=11 // pred_check_branch
          %301 = sbr.rel (%p299) target = $region28
        $region27: #{tpu_custom_call.1} parent=11 // pred_region
          %s303 = ssub.s32 9216, 9216
          %304 = vsyncadd [#allocation8], %s303
          %s305 = sshll.u32 [#allocation9], 4
          %s306 = int_to_ptr.vmem [resolvable:$true] %s305
          %311 = dma.hbm_to_vmem [thread:$0]  %s4, 9216, %s306, [#allocation8], 64, 64, 4
        $region28: #{tpu_custom_call.1} parent=11 // pred_fallthru
          _
        // Predicated region
        $region29: #{tpu_custom_call.1} parent=11 // pred_check
          %p312 = pneg %p155
        $region30: #{tpu_custom_call.1} parent=11 // pred_check_branch
          %314 = sbr.rel (%p312) target = $region32
        $region31: #{tpu_custom_call.1} parent=11 // pred_region
          _
        $region32: #{tpu_custom_call.1} parent=11 // pred_fallthru
          _
        // Predicated region
        $region33: #{tpu_custom_call.1} parent=11 // pred_check
          %p315 = pneg %p176
        $region34: #{tpu_custom_call.1} parent=11 // pred_check_branch
          %317 = sbr.rel (%p315) target = $region36
        $region35: #{tpu_custom_call.1} parent=11 // pred_region
          _
        $region36: #{tpu_custom_call.1} parent=11 // pred_fallthru
          _
        // Predicated region
        $region37: #{tpu_custom_call.1} parent=11 // pred_check
          %p318 = pneg %p197
        $region38: #{tpu_custom_call.1} parent=11 // pred_check_branch
          %320 = sbr.rel (%p318) target = $region40
        $region39: #{tpu_custom_call.1} parent=11 // pred_region
          %s322 = ssub.s32 1024, 1024
          %323 = vsyncadd [#allocation11], %s322
          %s324 = sshll.u32 [#allocation10], 4
          %s325 = int_to_ptr.vmem [resolvable:$true] %s324
          %330 = dma.hbm_to_vmem [thread:$0]  %s7, 1024, %s325, [#allocation11], 64, 64, 4
        $region40: #{tpu_custom_call.1} parent=11 // pred_fallthru
          _
        // Predicated region
        $region41: #{tpu_custom_call.1} parent=11 // pred_check
          %p331 = pneg %p218
        $region42: #{tpu_custom_call.1} parent=11 // pred_check_branch
          %333 = sbr.rel (%p331) target = $region44
        $region43: #{tpu_custom_call.1} parent=11 // pred_region
          _
        $region44: #{tpu_custom_call.1} parent=11 // pred_fallthru
          _
        // Predicated region
        $region45: #{tpu_custom_call.1} parent=11 // pred_check
          %p334 = pneg %p239
        $region46: #{tpu_custom_call.1} parent=11 // pred_check_branch
          %336 = sbr.rel (%p334) target = $region48
        $region47: #{tpu_custom_call.1} parent=11 // pred_region
          _
        $region48: #{tpu_custom_call.1} parent=11 // pred_fallthru
          _
      $region12: #{tpu_custom_call.1} parent=5 // pred_fallthru
        _
      %p337 = scmp.lt.s32.totalorder %s24, 2
      // Predicated region
      $region49: #{tpu_custom_call.1} parent=5 // pred_check
        %p338 = pneg %p337
      $region50: #{tpu_custom_call.1} parent=5 // pred_check_branch
        %340 = sbr.rel (%p338) target = $region52
      $region51: #{tpu_custom_call.1} parent=5 // pred_region
        // Predicated region
        $region53: #{tpu_custom_call.1} parent=51 // pred_check
          %p341 = pneg %p44
        $region54: #{tpu_custom_call.1} parent=51 // pred_check_branch
          %343 = sbr.rel (%p341) target = $region56
        $region55: #{tpu_custom_call.1} parent=51 // pred_region
          %s344 = sand.u32 %s34, 1
          %s345 = scalar_lea.sflag [#allocation5], %s344
          %s346 = sand.u32 %s34, 1
          %s347 = smul.addr %s346, 128
          %s348 = scalar_lea.vmem [#allocation4], %s347
          %s350 = ssub.s32 2048, 2048
          %351 = vsyncadd %s345, %s350
          %s352 = smul.addr %s24, 32
          %s353 = smul.addr %s352, 64
          %s354 = scalar_lea.hbm %s0, %s353
          %s355 = sshll.u32 %s348, 4
          %s356 = int_to_ptr.vmem [resolvable:$true] %s355
          %361 = dma.hbm_to_vmem [thread:$0]  %s354, 2048, %s356, %s345, 64, 64, 4
        $region56: #{tpu_custom_call.1} parent=51 // pred_fallthru
          _
      $region52: #{tpu_custom_call.1} parent=5 // pred_fallthru
        _
      %p362 = scmp.le.s32.totalorder 1, %s24
      %p363 = scmp.lt.s32.totalorder %s24, 3
      %p364 = pnand %p362, %p363
      %p365 = pneg %p364
      // Predicated region
      $region57: #{tpu_custom_call.1} parent=5 // pred_check
        _
      $region58: #{tpu_custom_call.1} parent=5 // pred_check_branch
        %367 = sbr.rel (%p364) target = $region60
      $region59: #{tpu_custom_call.1} parent=5 // pred_region
        %s368 = ssub.s32 %s24, 1
        %s369 = sand.u32 %s37, 1
        %s370 = scalar_lea.sflag [#allocation5], %s369
        %s371 = sand.u32 %s37, 1
        %s372 = smul.addr %s371, 128
        %s373 = scalar_lea.vmem [#allocation4], %s372
        // Predicated region
        $region61: #{tpu_custom_call.1} parent=59 // pred_check
          %p374 = pneg %p50
        $region62: #{tpu_custom_call.1} parent=59 // pred_check_branch
          %376 = sbr.rel (%p374) target = $region64
        $region63: #{tpu_custom_call.1} parent=59 // pred_region
          %377 = dma.done %s370, 2048
        $region64: #{tpu_custom_call.1} parent=59 // pred_fallthru
          _
        // Predicated region
        $region65: #{tpu_custom_call.1} parent=59 // pred_check
          %p378 = pneg %p71
        $region66: #{tpu_custom_call.1} parent=59 // pred_check_branch
          %380 = sbr.rel (%p378) target = $region68
        $region67: #{tpu_custom_call.1} parent=59 // pred_region
          %381 = dma.done [#allocation8], 1024
        $region68: #{tpu_custom_call.1} parent=59 // pred_fallthru
          _
        // Predicated region
        $region69: #{tpu_custom_call.1} parent=59 // pred_check
          %p382 = pneg %p134
        $region70: #{tpu_custom_call.1} parent=59 // pred_check_branch
          %384 = sbr.rel (%p382) target = $region72
        $region71: #{tpu_custom_call.1} parent=59 // pred_region
          %385 = dma.done [#allocation8], 9216
        $region72: #{tpu_custom_call.1} parent=59 // pred_fallthru
          _
        // Predicated region
        $region73: #{tpu_custom_call.1} parent=59 // pred_check
          %p386 = pneg %p197
        $region74: #{tpu_custom_call.1} parent=59 // pred_check_branch
          %388 = sbr.rel (%p386) target = $region76
        $region75: #{tpu_custom_call.1} parent=59 // pred_region
          %389 = dma.done [#allocation11], 1024
        $region76: #{tpu_custom_call.1} parent=59 // pred_fallthru
          _
        %s390 = sand.u32 %s37, 1
        %s391 = scalar_lea.sflag [#allocation5], %s390
        %s392 = sand.u32 %s37, 1
        %s393 = smul.addr %s392, 128
        %s394 = scalar_lea.vmem [#allocation4], %s393
        %p395 = pneg %p50
        %p396 = pneg %p47
        %p397 = pneg %p71
        %p398 = pneg %p68
        %p399 = pneg %p92
        %p400 = pneg %p89
        %p401 = pneg %p113
        %p402 = pneg %p110
        %p403 = pneg %p134
        %p404 = pneg %p131
        %p405 = pneg %p155
        %p406 = pneg %p152
        %p407 = pneg %p176
        %p408 = pneg %p173
        %p409 = pneg %p197
        %p410 = pneg %p194
        %p411 = pneg %p218
        %p412 = pneg %p215
        %p413 = pneg %p239
        %p414 = pneg %p236
        %p415 = pneg %p265
        %p416 = pneg %p262
        %s417 = sand.u32 %s252, 1
        %s418 = scalar_lea.sflag [#allocation6], %s417
        %s419 = sand.u32 %s252, 1
        %s420 = smul.addr %s419, 256
        %s421 = scalar_lea.vmem [#allocation12], %s420
        %v423 = vld [vmem:[%s373] sm:$0xf]
        %v424 = vld [vmem:[%s373 + $0x4] sm:$0xf]
        %v425 = vld [vmem:[%s373 + $0x8] sm:$0xf]
        %v426 = vld [vmem:[%s373 + $0xc] sm:$0xf]
        %v427 = vld [vmem:[%s373 + $0x10] sm:$0xf]
        %v428 = vld [vmem:[%s373 + $0x14] sm:$0xf]
        %v429 = vld [vmem:[%s373 + $0x18] sm:$0xf]
        %v430 = vld [vmem:[%s373 + $0x1c] sm:$0xf]
        %v431 = vld [vmem:[%s373 + $0x20] sm:$0xf]
        %v432 = vld [vmem:[%s373 + $0x24] sm:$0xf]
        %v433 = vld [vmem:[%s373 + $0x28] sm:$0xf]
        %v434 = vld [vmem:[%s373 + $0x2c] sm:$0xf]
        %v435 = vld [vmem:[%s373 + $0x30] sm:$0xf]
        %v436 = vld [vmem:[%s373 + $0x34] sm:$0xf]
        %v437 = vld [vmem:[%s373 + $0x38] sm:$0xf]
        %v438 = vld [vmem:[%s373 + $0x3c] sm:$0xf]
        %v439 = vld [vmem:[%s373 + $0x40] sm:$0xf]
        %v440 = vld [vmem:[%s373 + $0x44] sm:$0xf]
        %v441 = vld [vmem:[%s373 + $0x48] sm:$0xf]
        %v442 = vld [vmem:[%s373 + $0x4c] sm:$0xf]
        %v443 = vld [vmem:[%s373 + $0x50] sm:$0xf]
        %v444 = vld [vmem:[%s373 + $0x54] sm:$0xf]
        %v445 = vld [vmem:[%s373 + $0x58] sm:$0xf]
        %v446 = vld [vmem:[%s373 + $0x5c] sm:$0xf]
        %v447 = vld [vmem:[%s373 + $0x60] sm:$0xf]
        %v448 = vld [vmem:[%s373 + $0x64] sm:$0xf]
        %v449 = vld [vmem:[%s373 + $0x68] sm:$0xf]
        %v450 = vld [vmem:[%s373 + $0x6c] sm:$0xf]
        %v451 = vld [vmem:[%s373 + $0x70] sm:$0xf]
        %v452 = vld [vmem:[%s373 + $0x74] sm:$0xf]
        %v453 = vld [vmem:[%s373 + $0x78] sm:$0xf]
        %v454 = vld [vmem:[%s373 + $0x7c] sm:$0xf]
        %v455 = vld [vmem:[#allocation7] sm:$0xf]
        %v456 = vld [vmem:[#allocation7 + $0x4] sm:$0xf]
        %v457 = vld [vmem:[#allocation7 + $0x8] sm:$0xf]
        %v458 = vld [vmem:[#allocation7 + $0xc] sm:$0xf]
        %v459 = vld [vmem:[#allocation7 + $0x10] sm:$0xf]
        %v460 = vld [vmem:[#allocation7 + $0x14] sm:$0xf]
        %v461 = vld [vmem:[#allocation7 + $0x18] sm:$0xf]
        %v462 = vld [vmem:[#allocation7 + $0x1c] sm:$0xf]
        %v463 = vld [vmem:[#allocation7 + $0x20] sm:$0xf]
        %v464 = vld [vmem:[#allocation7 + $0x24] sm:$0xf]
        %v465 = vld [vmem:[#allocation7 + $0x28] sm:$0xf]
        %v466 = vld [vmem:[#allocation7 + $0x2c] sm:$0xf]
        %v467 = vld [vmem:[#allocation7 + $0x30] sm:$0xf]
        %v468 = vld [vmem:[#allocation7 + $0x34] sm:$0xf]
        %v469 = vld [vmem:[#allocation7 + $0x38] sm:$0xf]
        %v470 = vld [vmem:[#allocation7 + $0x3c] sm:$0xf]
        %v503 = vunpack.c.l.b16 %v423
        %v504 = vunpack.c.l.b16 %v424
        %v505 = vunpack.c.l.b16 %v425
        %v506 = vunpack.c.l.b16 %v426
        %v507 = vunpack.c.l.b16 %v427
        %v508 = vunpack.c.l.b16 %v428
        %v509 = vunpack.c.l.b16 %v429
        %v510 = vunpack.c.l.b16 %v430
        %v511 = vunpack.c.l.b16 %v431
        %v512 = vunpack.c.l.b16 %v432
        %v513 = vunpack.c.l.b16 %v433
        %v514 = vunpack.c.l.b16 %v434
        %v515 = vunpack.c.l.b16 %v435
        %v516 = vunpack.c.l.b16 %v436
        %v517 = vunpack.c.l.b16 %v437
        %v518 = vunpack.c.l.b16 %v438
        %v519 = vunpack.c.l.b16 %v439
        %v520 = vunpack.c.l.b16 %v440
        %v521 = vunpack.c.l.b16 %v441
        %v522 = vunpack.c.l.b16 %v442
        %v523 = vunpack.c.l.b16 %v443
        %v524 = vunpack.c.l.b16 %v444
        %v525 = vunpack.c.l.b16 %v445
        %v526 = vunpack.c.l.b16 %v446
        %v527 = vunpack.c.l.b16 %v447
        %v528 = vunpack.c.l.b16 %v448
        %v529 = vunpack.c.l.b16 %v449
        %v530 = vunpack.c.l.b16 %v450
        %v531 = vunpack.c.l.b16 %v451
        %v532 = vunpack.c.l.b16 %v452
        %v533 = vunpack.c.l.b16 %v453
        %v534 = vunpack.c.l.b16 %v454
        %v535 = vpack.c.b16 %v504, %v503
        %v536 = vpack.c.b16 %v506, %v505
        %v537 = vpack.c.b16 %v508, %v507
        %v538 = vpack.c.b16 %v510, %v509
        %v539 = vpack.c.b16 %v512, %v511
        %v540 = vpack.c.b16 %v514, %v513
        %v541 = vpack.c.b16 %v516, %v515
        %v542 = vpack.c.b16 %v518, %v517
        %v543 = vpack.c.b16 %v520, %v519
        %v544 = vpack.c.b16 %v522, %v521
        %v545 = vpack.c.b16 %v524, %v523
        %v546 = vpack.c.b16 %v526, %v525
        %v547 = vpack.c.b16 %v528, %v527
        %v548 = vpack.c.b16 %v530, %v529
        %v549 = vpack.c.b16 %v532, %v531
        %v550 = vpack.c.b16 %v534, %v533
        %v583 = vunpack.c.l.b16 %v455
        %v584 = vunpack.c.l.b16 %v456
        %v585 = vunpack.c.l.b16 %v457
        %v586 = vunpack.c.l.b16 %v458
        %v587 = vunpack.c.l.b16 %v459
        %v588 = vunpack.c.l.b16 %v460
        %v589 = vunpack.c.l.b16 %v461
        %v590 = vunpack.c.l.b16 %v462
        %v591 = vunpack.c.l.b16 %v463
        %v592 = vunpack.c.l.b16 %v464
        %v593 = vunpack.c.l.b16 %v465
        %v594 = vunpack.c.l.b16 %v466
        %v595 = vunpack.c.l.b16 %v467
        %v596 = vunpack.c.l.b16 %v468
        %v597 = vunpack.c.l.b16 %v469
        %v598 = vunpack.c.l.b16 %v470
        %v599 = vpack.c.b16 %v584, %v583
        %v600 = vpack.c.b16 %v586, %v585
        %v601 = vpack.c.b16 %v588, %v587
        %v602 = vpack.c.b16 %v590, %v589
        %v603 = vpack.c.b16 %v592, %v591
        %v604 = vpack.c.b16 %v594, %v593
        %v605 = vpack.c.b16 %v596, %v595
        %v606 = vpack.c.b16 %v598, %v597
        %615 = vmatprep.subr.bf16.mxu0 0
        %616 = vmatpush1.bf16.msra.mxu0 %v599
        %617 = vmatprep.subr.bf16.mxu0 0
        %618 = vmatpush1.bf16.msra.mxu0 %v600
        %619 = vmatprep.subr.bf16.mxu0 0
        %620 = vmatpush1.bf16.msra.mxu0 %v601
        %621 = vmatprep.subr.bf16.mxu0 0
        %622 = vmatpush1.bf16.msra.mxu0 %v602
        %623 = vmatprep.subr.bf16.mxu0 0
        %624 = vmatpush1.bf16.msra.mxu0 %v603
        %625 = vmatprep.subr.bf16.mxu0 0
        %626 = vmatpush1.bf16.msra.mxu0 %v604
        %627 = vmatprep.subr.bf16.mxu0 0
        %628 = vmatpush1.bf16.msra.mxu0 %v605
        %629 = vmatprep.subr.bf16.mxu0 0
        %630 = vmatpush1.bf16.msra.mxu0 %v606
        %631 = vmatprep.subr.bf16.mxu0 0
        %632 = vmatpush1.bf16.msra.mxu0 0
        %633 = vmatprep.subr.bf16.mxu0 0
        %634 = vmatpush1.bf16.msra.mxu0 0
        %635 = vmatprep.subr.bf16.mxu0 0
        %636 = vmatpush1.bf16.msra.mxu0 0
        %637 = vmatprep.subr.bf16.mxu0 0
        %638 = vmatpush1.bf16.msra.mxu0 0
        %639 = vmatprep.subr.bf16.mxu0 0
        %640 = vmatpush1.bf16.msra.mxu0 0
        %641 = vmatprep.subr.bf16.mxu0 0
        %642 = vmatpush1.bf16.msra.mxu0 0
        %643 = vmatprep.subr.bf16.mxu0 0
        %644 = vmatpush1.bf16.msra.mxu0 0
        %645 = vmatprep.subr.bf16.mxu0 0
        %646 = vmatpush1.bf16.msra.mxu0 0
        %647 = vmatprep.mubr.bf16.mxu0 0
        %648 = vmatmul.mubr.bf16.gmra.mrb[0].mxu0 %v535
        %v649 = vpop.f32.mrb[0].mxu0
        %v650 = vadd.f32 0.0, %v649
        %v651 = vpop.f32.mrb[0].mxu0
        %v652 = vpop.f32.mrb[0].mxu0
        %v653 = vadd.f32 0.0, %v652
        %v654 = vpop.f32.mrb[0].mxu0
        %655 = vmatprep.mubr.bf16.mxu0 0
        %656 = vmatmul.mubr.bf16.gmra.mrb[0].mxu0 %v536
        %v657 = vpop.f32.mrb[0].mxu0
        %v658 = vadd.f32 0.0, %v657
        %v659 = vpop.f32.mrb[0].mxu0
        %v660 = vpop.f32.mrb[0].mxu0
        %v661 = vadd.f32 0.0, %v660
        %v662 = vpop.f32.mrb[0].mxu0
        %663 = vmatprep.mubr.bf16.mxu0 0
        %664 = vmatmul.mubr.bf16.gmra.mrb[0].mxu0 %v537
        %v665 = vpop.f32.mrb[0].mxu0
        %v666 = vadd.f32 0.0, %v665
        %v667 = vpop.f32.mrb[0].mxu0
        %v668 = vpop.f32.mrb[0].mxu0
        %v669 = vadd.f32 0.0, %v668
        %v670 = vpop.f32.mrb[0].mxu0
        %671 = vmatprep.mubr.bf16.mxu0 0
        %672 = vmatmul.mubr.bf16.gmra.mrb[0].mxu0 %v538
        %v673 = vpop.f32.mrb[0].mxu0
        %v674 = vadd.f32 0.0, %v673
        %v675 = vpop.f32.mrb[0].mxu0
        %v676 = vpop.f32.mrb[0].mxu0
        %v677 = vadd.f32 0.0, %v676
        %v678 = vpop.f32.mrb[0].mxu0
        %679 = vmatprep.mubr.bf16.mxu0 0
        %680 = vmatmul.mubr.bf16.gmra.mrb[0].mxu0 %v539
        %v681 = vpop.f32.mrb[0].mxu0
        %v682 = vadd.f32 0.0, %v681
        %v683 = vpop.f32.mrb[0].mxu0
        %v684 = vpop.f32.mrb[0].mxu0
        %v685 = vadd.f32 0.0, %v684
        %v686 = vpop.f32.mrb[0].mxu0
        %687 = vmatprep.mubr.bf16.mxu0 0
        %688 = vmatmul.mubr.bf16.gmra.mrb[0].mxu0 %v540
        %v689 = vpop.f32.mrb[0].mxu0
        %v690 = vadd.f32 0.0, %v689
        %v691 = vpop.f32.mrb[0].mxu0
        %v692 = vpop.f32.mrb[0].mxu0
        %v693 = vadd.f32 0.0, %v692
        %v694 = vpop.f32.mrb[0].mxu0
        %695 = vmatprep.mubr.bf16.mxu0 0
        %696 = vmatmul.mubr.bf16.gmra.mrb[0].mxu0 %v541
        %v697 = vpop.f32.mrb[0].mxu0
        %v698 = vadd.f32 0.0, %v697
        %v699 = vpop.f32.mrb[0].mxu0
        %v700 = vpop.f32.mrb[0].mxu0
        %v701 = vadd.f32 0.0, %v700
        %v702 = vpop.f32.mrb[0].mxu0
        %703 = vmatprep.mubr.bf16.mxu0 0
        %704 = vmatmul.mubr.bf16.gmra.mrb[0].mxu0 %v542
        %v705 = vpop.f32.mrb[0].mxu0
        %v706 = vadd.f32 0.0, %v705
        %v707 = vpop.f32.mrb[0].mxu0
        %v708 = vpop.f32.mrb[0].mxu0
        %v709 = vadd.f32 0.0, %v708
        %v710 = vpop.f32.mrb[0].mxu0
        %711 = vmatprep.mubr.bf16.mxu0 0
        %712 = vmatmul.mubr.bf16.gmra.mrb[0].mxu0 %v543
        %v713 = vpop.f32.mrb[0].mxu0
        %v714 = vadd.f32 0.0, %v713
        %v715 = vpop.f32.mrb[0].mxu0
        %v716 = vpop.f32.mrb[0].mxu0
        %v717 = vadd.f32 0.0, %v716
        %v718 = vpop.f32.mrb[0].mxu0
        %719 = vmatprep.mubr.bf16.mxu0 0
        %720 = vmatmul.mubr.bf16.gmra.mrb[0].mxu0 %v544
        %v721 = vpop.f32.mrb[0].mxu0
        %v722 = vadd.f32 0.0, %v721
        %v723 = vpop.f32.mrb[0].mxu0
        %v724 = vpop.f32.mrb[0].mxu0
        %v725 = vadd.f32 0.0, %v724
        %v726 = vpop.f32.mrb[0].mxu0
        %727 = vmatprep.mubr.bf16.mxu0 0
        %728 = vmatmul.mubr.bf16.gmra.mrb[0].mxu0 %v545
        %v729 = vpop.f32.mrb[0].mxu0
        %v730 = vadd.f32 0.0, %v729
        %v731 = vpop.f32.mrb[0].mxu0
        %v732 = vpop.f32.mrb[0].mxu0
        %v733 = vadd.f32 0.0, %v732
        %v734 = vpop.f32.mrb[0].mxu0
        %735 = vmatprep.mubr.bf16.mxu0 0
        %736 = vmatmul.mubr.bf16.gmra.mrb[0].mxu0 %v546
        %v737 = vpop.f32.mrb[0].mxu0
        %v738 = vadd.f32 0.0, %v737
        %v739 = vpop.f32.mrb[0].mxu0
        %v740 = vpop.f32.mrb[0].mxu0
        %v741 = vadd.f32 0.0, %v740
        %v742 = vpop.f32.mrb[0].mxu0
        %743 = vmatprep.mubr.bf16.mxu0 0
        %744 = vmatmul.mubr.bf16.gmra.mrb[0].mxu0 %v547
        %v745 = vpop.f32.mrb[0].mxu0
        %v746 = vadd.f32 0.0, %v745
        %v747 = vpop.f32.mrb[0].mxu0
        %v748 = vpop.f32.mrb[0].mxu0
        %v749 = vadd.f32 0.0, %v748
        %v750 = vpop.f32.mrb[0].mxu0
        %751 = vmatprep.mubr.bf16.mxu0 0
        %752 = vmatmul.mubr.bf16.gmra.mrb[0].mxu0 %v548
        %v753 = vpop.f32.mrb[0].mxu0
        %v754 = vadd.f32 0.0, %v753
        %v755 = vpop.f32.mrb[0].mxu0
        %v756 = vpop.f32.mrb[0].mxu0
        %v757 = vadd.f32 0.0, %v756
        %v758 = vpop.f32.mrb[0].mxu0
        %759 = vmatprep.mubr.bf16.mxu0 0
        %760 = vmatmul.mubr.bf16.gmra.mrb[0].mxu0 %v549
        %v761 = vpop.f32.mrb[0].mxu0
        %v762 = vadd.f32 0.0, %v761
        %v763 = vpop.f32.mrb[0].mxu0
        %v764 = vpop.f32.mrb[0].mxu0
        %v765 = vadd.f32 0.0, %v764
        %v766 = vpop.f32.mrb[0].mxu0
        %767 = vmatprep.mubr.bf16.mxu0 0
        %768 = vmatmul.mubr.bf16.gmra.mrb[0].mxu0 %v550
        %v769 = vpop.f32.mrb[0].mxu0
        %v770 = vadd.f32 0.0, %v769
        %v771 = vpop.f32.mrb[0].mxu0
        %v772 = vpop.f32.mrb[0].mxu0
        %v773 = vadd.f32 0.0, %v772
        %v774 = vpop.f32.mrb[0].mxu0
        %775 = vdwg.mxu0
        %v776 = vld [vmem:[%s2] sm:$0x1]
        %v778 = vlaneseq
        %v779 = vshrl.u32 %v778, 7
        %v780 = vsub.s32 0, %v779
        %v781 = vrot.slane %v776, %v780
        %v783 = vmul.f32 %v650, %v781
        %v784 = vmul.f32 %v653, %v781
        %v785 = vmul.f32 %v658, %v781
        %v786 = vmul.f32 %v661, %v781
        %v787 = vmul.f32 %v666, %v781
        %v788 = vmul.f32 %v669, %v781
        %v789 = vmul.f32 %v674, %v781
        %v790 = vmul.f32 %v677, %v781
        %v791 = vmul.f32 %v682, %v781
        %v792 = vmul.f32 %v685, %v781
        %v793 = vmul.f32 %v690, %v781
        %v794 = vmul.f32 %v693, %v781
        %v795 = vmul.f32 %v698, %v781
        %v796 = vmul.f32 %v701, %v781
        %v797 = vmul.f32 %v706, %v781
        %v798 = vmul.f32 %v709, %v781
        %v799 = vmul.f32 %v714, %v781
        %v800 = vmul.f32 %v717, %v781
        %v801 = vmul.f32 %v722, %v781
        %v802 = vmul.f32 %v725, %v781
        %v803 = vmul.f32 %v730, %v781
        %v804 = vmul.f32 %v733, %v781
        %v805 = vmul.f32 %v738, %v781
        %v806 = vmul.f32 %v741, %v781
        %v807 = vmul.f32 %v746, %v781
        %v808 = vmul.f32 %v749, %v781
        %v809 = vmul.f32 %v754, %v781
        %v810 = vmul.f32 %v757, %v781
        %v811 = vmul.f32 %v762, %v781
        %v812 = vmul.f32 %v765, %v781
        %v813 = vmul.f32 %v770, %v781
        %v814 = vmul.f32 %v773, %v781
        %v815 = vld [vmem:[%s3] sm:$0x1]
        %v817 = vlaneseq
        %v818 = vshrl.u32 %v817, 7
        %v819 = vsub.s32 0, %v818
        %v820 = vrot.slane %v815, %v819
        %v822 = vadd.f32 %v783, %v820
        %v823 = vadd.f32 %v784, %v820
        %v824 = vadd.f32 %v785, %v820
        %v825 = vadd.f32 %v786, %v820
        %v826 = vadd.f32 %v787, %v820
        %v827 = vadd.f32 %v788, %v820
        %v828 = vadd.f32 %v789, %v820
        %v829 = vadd.f32 %v790, %v820
        %v830 = vadd.f32 %v791, %v820
        %v831 = vadd.f32 %v792, %v820
        %v832 = vadd.f32 %v793, %v820
        %v833 = vadd.f32 %v794, %v820
        %v834 = vadd.f32 %v795, %v820
        %v835 = vadd.f32 %v796, %v820
        %v836 = vadd.f32 %v797, %v820
        %v837 = vadd.f32 %v798, %v820
        %v838 = vadd.f32 %v799, %v820
        %v839 = vadd.f32 %v800, %v820
        %v840 = vadd.f32 %v801, %v820
        %v841 = vadd.f32 %v802, %v820
        %v842 = vadd.f32 %v803, %v820
        %v843 = vadd.f32 %v804, %v820
        %v844 = vadd.f32 %v805, %v820
        %v845 = vadd.f32 %v806, %v820
        %v846 = vadd.f32 %v807, %v820
        %v847 = vadd.f32 %v808, %v820
        %v848 = vadd.f32 %v809, %v820
        %v849 = vadd.f32 %v810, %v820
        %v850 = vadd.f32 %v811, %v820
        %v851 = vadd.f32 %v812, %v820
        %v852 = vadd.f32 %v813, %v820
        %v853 = vadd.f32 %v814, %v820
        %v854 = vmax.f32 %v822, 0.0
        %v855 = vmax.f32 %v823, 0.0
        %v856 = vmax.f32 %v824, 0.0
        %v857 = vmax.f32 %v825, 0.0
        %v858 = vmax.f32 %v826, 0.0
        %v859 = vmax.f32 %v827, 0.0
        %v860 = vmax.f32 %v828, 0.0
        %v861 = vmax.f32 %v829, 0.0
        %v862 = vmax.f32 %v830, 0.0
        %v863 = vmax.f32 %v831, 0.0
        %v864 = vmax.f32 %v832, 0.0
        %v865 = vmax.f32 %v833, 0.0
        %v866 = vmax.f32 %v834, 0.0
        %v867 = vmax.f32 %v835, 0.0
        %v868 = vmax.f32 %v836, 0.0
        %v869 = vmax.f32 %v837, 0.0
        %v870 = vmax.f32 %v838, 0.0
        %v871 = vmax.f32 %v839, 0.0
        %v872 = vmax.f32 %v840, 0.0
        %v873 = vmax.f32 %v841, 0.0
        %v874 = vmax.f32 %v842, 0.0
        %v875 = vmax.f32 %v843, 0.0
        %v876 = vmax.f32 %v844, 0.0
        %v877 = vmax.f32 %v845, 0.0
        %v878 = vmax.f32 %v846, 0.0
        %v879 = vmax.f32 %v847, 0.0
        %v880 = vmax.f32 %v848, 0.0
        %v881 = vmax.f32 %v849, 0.0
        %v882 = vmax.f32 %v850, 0.0
        %v883 = vmax.f32 %v851, 0.0
        %v884 = vmax.f32 %v852, 0.0
        %v885 = vmax.f32 %v853, 0.0
        %886 = vst [vmem:[#allocation2] sm:$0xff] 0.0
        %887 = vst [vmem:[#allocation2 + $0x8] sm:$0xff] 0.0
        %888 = vst [vmem:[#allocation2 + $0x10] sm:$0xff] 0.0
        %889 = vst [vmem:[#allocation2 + $0x18] sm:$0xff] 0.0
        %s890 = scalar_lea.vmem [#allocation2], 544
        %891 = vst [vmem:[%s890] sm:$0xff] 0.0
        %892 = vst [vmem:[%s890 + $0x8] sm:$0xff] 0.0
        %893 = vst [vmem:[%s890 + $0x10] sm:$0xff] 0.0
        %894 = vst [vmem:[%s890 + $0x18] sm:$0xff] 0.0
        %895 = vst [vmem:[#allocation2] sm:$0xff] 0.0
        %896 = vst [vmem:[#allocation2 + $0x20] sm:$0xff] 0.0
        %897 = vst [vmem:[#allocation2 + $0x40] sm:$0xff] 0.0
        %898 = vst [vmem:[#allocation2 + $0x60] sm:$0xff] 0.0
        %899 = vst [vmem:[#allocation2 + $0x80] sm:$0xff] 0.0
        %900 = vst [vmem:[#allocation2 + $0xa0] sm:$0xff] 0.0
        %901 = vst [vmem:[#allocation2 + $0xc0] sm:$0xff] 0.0
        %902 = vst [vmem:[#allocation2 + $0xe0] sm:$0xff] 0.0
        %903 = vst [vmem:[#allocation2 + $0x100] sm:$0xff] 0.0
        %904 = vst [vmem:[#allocation2 + $0x120] sm:$0xff] 0.0
        %905 = vst [vmem:[#allocation2 + $0x140] sm:$0xff] 0.0
        %906 = vst [vmem:[#allocation2 + $0x160] sm:$0xff] 0.0
        %907 = vst [vmem:[#allocation2 + $0x180] sm:$0xff] 0.0
        %908 = vst [vmem:[#allocation2 + $0x1a0] sm:$0xff] 0.0
        %909 = vst [vmem:[#allocation2 + $0x1c0] sm:$0xff] 0.0
        %910 = vst [vmem:[#allocation2 + $0x1e0] sm:$0xff] 0.0
        %911 = vst [vmem:[#allocation2 + $0x200] sm:$0xff] 0.0
        %912 = vst [vmem:[#allocation2 + $0x220] sm:$0xff] 0.0
        %913 = vst [vmem:[#allocation2 + $0x18] sm:$0xff] 0.0
        %914 = vst [vmem:[#allocation2 + $0x38] sm:$0xff] 0.0
        %915 = vst [vmem:[#allocation2 + $0x58] sm:$0xff] 0.0
        %916 = vst [vmem:[#allocation2 + $0x78] sm:$0xff] 0.0
        %917 = vst [vmem:[#allocation2 + $0x98] sm:$0xff] 0.0
        %918 = vst [vmem:[#allocation2 + $0xb8] sm:$0xff] 0.0
        %919 = vst [vmem:[#allocation2 + $0xd8] sm:$0xff] 0.0
        %920 = vst [vmem:[#allocation2 + $0xf8] sm:$0xff] 0.0
        %921 = vst [vmem:[#allocation2 + $0x118] sm:$0xff] 0.0
        %922 = vst [vmem:[#allocation2 + $0x138] sm:$0xff] 0.0
        %923 = vst [vmem:[#allocation2 + $0x158] sm:$0xff] 0.0
        %924 = vst [vmem:[#allocation2 + $0x178] sm:$0xff] 0.0
        %925 = vst [vmem:[#allocation2 + $0x198] sm:$0xff] 0.0
        %926 = vst [vmem:[#allocation2 + $0x1b8] sm:$0xff] 0.0
        %927 = vst [vmem:[#allocation2 + $0x1d8] sm:$0xff] 0.0
        %928 = vst [vmem:[#allocation2 + $0x1f8] sm:$0xff] 0.0
        %929 = vst [vmem:[#allocation2 + $0x218] sm:$0xff] 0.0
        %930 = vst [vmem:[#allocation2 + $0x238] sm:$0xff] 0.0
        %s931 = scalar_lea.vmem [#allocation2], 32
        %932 = vst [vmem:[%s931 + $0x8] sm:$0xff] %v854
        %933 = vst [vmem:[%s931 + $0x10] sm:$0xff] %v855
        %934 = vst [vmem:[%s931 + $0x28] sm:$0xff] %v856
        %935 = vst [vmem:[%s931 + $0x30] sm:$0xff] %v857
        %936 = vst [vmem:[%s931 + $0x48] sm:$0xff] %v858
        %937 = vst [vmem:[%s931 + $0x50] sm:$0xff] %v859
        %938 = vst [vmem:[%s931 + $0x68] sm:$0xff] %v860
        %939 = vst [vmem:[%s931 + $0x70] sm:$0xff] %v861
        %940 = vst [vmem:[%s931 + $0x88] sm:$0xff] %v862
        %941 = vst [vmem:[%s931 + $0x90] sm:$0xff] %v863
        %942 = vst [vmem:[%s931 + $0xa8] sm:$0xff] %v864
        %943 = vst [vmem:[%s931 + $0xb0] sm:$0xff] %v865
        %944 = vst [vmem:[%s931 + $0xc8] sm:$0xff] %v866
        %945 = vst [vmem:[%s931 + $0xd0] sm:$0xff] %v867
        %946 = vst [vmem:[%s931 + $0xe8] sm:$0xff] %v868
        %947 = vst [vmem:[%s931 + $0xf0] sm:$0xff] %v869
        %948 = vst [vmem:[%s931 + $0x108] sm:$0xff] %v870
        %949 = vst [vmem:[%s931 + $0x110] sm:$0xff] %v871
        %950 = vst [vmem:[%s931 + $0x128] sm:$0xff] %v872
        %951 = vst [vmem:[%s931 + $0x130] sm:$0xff] %v873
        %952 = vst [vmem:[%s931 + $0x148] sm:$0xff] %v874
        %953 = vst [vmem:[%s931 + $0x150] sm:$0xff] %v875
        %954 = vst [vmem:[%s931 + $0x168] sm:$0xff] %v876
        %955 = vst [vmem:[%s931 + $0x170] sm:$0xff] %v877
        %956 = vst [vmem:[%s931 + $0x188] sm:$0xff] %v878
        %957 = vst [vmem:[%s931 + $0x190] sm:$0xff] %v879
        %958 = vst [vmem:[%s931 + $0x1a8] sm:$0xff] %v880
        %959 = vst [vmem:[%s931 + $0x1b0] sm:$0xff] %v881
        %960 = vst [vmem:[%s931 + $0x1c8] sm:$0xff] %v882
        %961 = vst [vmem:[%s931 + $0x1d0] sm:$0xff] %v883
        %962 = vst [vmem:[%s931 + $0x1e8] sm:$0xff] %v884
        %963 = vst [vmem:[%s931 + $0x1f0] sm:$0xff] %v885
        %v964 = vld [vmem:[#allocation2 + $0x7] sm:$0xff]
        %v965 = vld [vmem:[#allocation2 + $0xf] sm:$0xff]
        %v966 = vld [vmem:[#allocation2 + $0x27] sm:$0xff]
        %v967 = vld [vmem:[#allocation2 + $0x2f] sm:$0xff]
        %v968 = vld [vmem:[#allocation2 + $0x47] sm:$0xff]
        %v969 = vld [vmem:[#allocation2 + $0x4f] sm:$0xff]
        %v970 = vld [vmem:[#allocation2 + $0x67] sm:$0xff]
        %v971 = vld [vmem:[#allocation2 + $0x6f] sm:$0xff]
        %v972 = vld [vmem:[#allocation2 + $0x87] sm:$0xff]
        %v973 = vld [vmem:[#allocation2 + $0x8f] sm:$0xff]
        %v974 = vld [vmem:[#allocation2 + $0xa7] sm:$0xff]
        %v975 = vld [vmem:[#allocation2 + $0xaf] sm:$0xff]
        %v976 = vld [vmem:[#allocation2 + $0xc7] sm:$0xff]
        %v977 = vld [vmem:[#allocation2 + $0xcf] sm:$0xff]
        %v978 = vld [vmem:[#allocation2 + $0xe7] sm:$0xff]
        %v979 = vld [vmem:[#allocation2 + $0xef] sm:$0xff]
        %v980 = vld [vmem:[#allocation2 + $0x107] sm:$0xff]
        %v981 = vld [vmem:[#allocation2 + $0x10f] sm:$0xff]
        %v982 = vld [vmem:[#allocation2 + $0x127] sm:$0xff]
        %v983 = vld [vmem:[#allocation2 + $0x12f] sm:$0xff]
        %v984 = vld [vmem:[#allocation2 + $0x147] sm:$0xff]
        %v985 = vld [vmem:[#allocation2 + $0x14f] sm:$0xff]
        %v986 = vld [vmem:[#allocation2 + $0x167] sm:$0xff]
        %v987 = vld [vmem:[#allocation2 + $0x16f] sm:$0xff]
        %v988 = vld [vmem:[#allocation2 + $0x187] sm:$0xff]
        %v989 = vld [vmem:[#allocation2 + $0x18f] sm:$0xff]
        %v990 = vld [vmem:[#allocation2 + $0x1a7] sm:$0xff]
        %v991 = vld [vmem:[#allocation2 + $0x1af] sm:$0xff]
        %v992 = vld [vmem:[#allocation2 + $0x1c7] sm:$0xff]
        %v993 = vld [vmem:[#allocation2 + $0x1cf] sm:$0xff]
        %v994 = vld [vmem:[#allocation2 + $0x1e7] sm:$0xff]
        %v995 = vld [vmem:[#allocation2 + $0x1ef] sm:$0xff]
        %v996 = vpack.c.bf16 %v965, %v964
        %v997 = vpack.c.bf16 %v967, %v966
        %v998 = vpack.c.bf16 %v969, %v968
        %v999 = vpack.c.bf16 %v971, %v970
        %v1000 = vpack.c.bf16 %v973, %v972
        %v1001 = vpack.c.bf16 %v975, %v974
        %v1002 = vpack.c.bf16 %v977, %v976
        %v1003 = vpack.c.bf16 %v979, %v978
        %v1004 = vpack.c.bf16 %v981, %v980
        %v1005 = vpack.c.bf16 %v983, %v982
        %v1006 = vpack.c.bf16 %v985, %v984
        %v1007 = vpack.c.bf16 %v987, %v986
        %v1008 = vpack.c.bf16 %v989, %v988
        %v1009 = vpack.c.bf16 %v991, %v990
        %v1010 = vpack.c.bf16 %v993, %v992
        %v1011 = vpack.c.bf16 %v995, %v994
        %1012 = vst [vmem:[#allocation3] sm:$0xff] %v996
        %1013 = vst [vmem:[#allocation3 + $0x48] sm:$0xff] %v997
        %1014 = vst [vmem:[#allocation3 + $0x90] sm:$0xff] %v998
        %1015 = vst [vmem:[#allocation3 + $0xd8] sm:$0xff] %v999
        %1016 = vst [vmem:[#allocation3 + $0x120] sm:$0xff] %v1000
        %1017 = vst [vmem:[#allocation3 + $0x168] sm:$0xff] %v1001
        %1018 = vst [vmem:[#allocation3 + $0x1b0] sm:$0xff] %v1002
        %1019 = vst [vmem:[#allocation3 + $0x1f8] sm:$0xff] %v1003
        %1020 = vst [vmem:[#allocation3 + $0x240] sm:$0xff] %v1004
        %1021 = vst [vmem:[#allocation3 + $0x288] sm:$0xff] %v1005
        %1022 = vst [vmem:[#allocation3 + $0x2d0] sm:$0xff] %v1006
        %1023 = vst [vmem:[#allocation3 + $0x318] sm:$0xff] %v1007
        %1024 = vst [vmem:[#allocation3 + $0x360] sm:$0xff] %v1008
        %1025 = vst [vmem:[#allocation3 + $0x3a8] sm:$0xff] %v1009
        %1026 = vst [vmem:[#allocation3 + $0x3f0] sm:$0xff] %v1010
        %1027 = vst [vmem:[#allocation3 + $0x438] sm:$0xff] %v1011
        %v1028 = vld [vmem:[#allocation2 + $0x8] sm:$0xff]
        %v1029 = vld [vmem:[#allocation2 + $0x10] sm:$0xff]
        %v1030 = vld [vmem:[#allocation2 + $0x28] sm:$0xff]
        %v1031 = vld [vmem:[#allocation2 + $0x30] sm:$0xff]
        %v1032 = vld [vmem:[#allocation2 + $0x48] sm:$0xff]
        %v1033 = vld [vmem:[#allocation2 + $0x50] sm:$0xff]
        %v1034 = vld [vmem:[#allocation2 + $0x68] sm:$0xff]
        %v1035 = vld [vmem:[#allocation2 + $0x70] sm:$0xff]
        %v1036 = vld [vmem:[#allocation2 + $0x88] sm:$0xff]
        %v1037 = vld [vmem:[#allocation2 + $0x90] sm:$0xff]
        %v1038 = vld [vmem:[#allocation2 + $0xa8] sm:$0xff]
        %v1039 = vld [vmem:[#allocation2 + $0xb0] sm:$0xff]
        %v1040 = vld [vmem:[#allocation2 + $0xc8] sm:$0xff]
        %v1041 = vld [vmem:[#allocation2 + $0xd0] sm:$0xff]
        %v1042 = vld [vmem:[#allocation2 + $0xe8] sm:$0xff]
        %v1043 = vld [vmem:[#allocation2 + $0xf0] sm:$0xff]
        %v1044 = vld [vmem:[#allocation2 + $0x108] sm:$0xff]
        %v1045 = vld [vmem:[#allocation2 + $0x110] sm:$0xff]
        %v1046 = vld [vmem:[#allocation2 + $0x128] sm:$0xff]
        %v1047 = vld [vmem:[#allocation2 + $0x130] sm:$0xff]
        %v1048 = vld [vmem:[#allocation2 + $0x148] sm:$0xff]
        %v1049 = vld [vmem:[#allocation2 + $0x150] sm:$0xff]
        %v1050 = vld [vmem:[#allocation2 + $0x168] sm:$0xff]
        %v1051 = vld [vmem:[#allocation2 + $0x170] sm:$0xff]
        %v1052 = vld [vmem:[#allocation2 + $0x188] sm:$0xff]
        %v1053 = vld [vmem:[#allocation2 + $0x190] sm:$0xff]
        %v1054 = vld [vmem:[#allocation2 + $0x1a8] sm:$0xff]
        %v1055 = vld [vmem:[#allocation2 + $0x1b0] sm:$0xff]
        %v1056 = vld [vmem:[#allocation2 + $0x1c8] sm:$0xff]
        %v1057 = vld [vmem:[#allocation2 + $0x1d0] sm:$0xff]
        %v1058 = vld [vmem:[#allocation2 + $0x1e8] sm:$0xff]
        %v1059 = vld [vmem:[#allocation2 + $0x1f0] sm:$0xff]
        %v1060 = vpack.c.bf16 %v1029, %v1028
        %v1061 = vpack.c.bf16 %v1031, %v1030
        %v1062 = vpack.c.bf16 %v1033, %v1032
        %v1063 = vpack.c.bf16 %v1035, %v1034
        %v1064 = vpack.c.bf16 %v1037, %v1036
        %v1065 = vpack.c.bf16 %v1039, %v1038
        %v1066 = vpack.c.bf16 %v1041, %v1040
        %v1067 = vpack.c.bf16 %v1043, %v1042
        %v1068 = vpack.c.bf16 %v1045, %v1044
        %v1069 = vpack.c.bf16 %v1047, %v1046
        %v1070 = vpack.c.bf16 %v1049, %v1048
        %v1071 = vpack.c.bf16 %v1051, %v1050
        %v1072 = vpack.c.bf16 %v1053, %v1052
        %v1073 = vpack.c.bf16 %v1055, %v1054
        %v1074 = vpack.c.bf16 %v1057, %v1056
        %v1075 = vpack.c.bf16 %v1059, %v1058
        %1076 = vst [vmem:[#allocation3 + $0x8] sm:$0xff] %v1060
        %1077 = vst [vmem:[#allocation3 + $0x50] sm:$0xff] %v1061
        %1078 = vst [vmem:[#allocation3 + $0x98] sm:$0xff] %v1062
        %1079 = vst [vmem:[#allocation3 + $0xe0] sm:$0xff] %v1063
        %1080 = vst [vmem:[#allocation3 + $0x128] sm:$0xff] %v1064
        %1081 = vst [vmem:[#allocation3 + $0x170] sm:$0xff] %v1065
        %1082 = vst [vmem:[#allocation3 + $0x1b8] sm:$0xff] %v1066
        %1083 = vst [vmem:[#allocation3 + $0x200] sm:$0xff] %v1067
        %1084 = vst [vmem:[#allocation3 + $0x248] sm:$0xff] %v1068
        %1085 = vst [vmem:[#allocation3 + $0x290] sm:$0xff] %v1069
        %1086 = vst [vmem:[#allocation3 + $0x2d8] sm:$0xff] %v1070
        %1087 = vst [vmem:[#allocation3 + $0x320] sm:$0xff] %v1071
        %1088 = vst [vmem:[#allocation3 + $0x368] sm:$0xff] %v1072
        %1089 = vst [vmem:[#allocation3 + $0x3b0] sm:$0xff] %v1073
        %1090 = vst [vmem:[#allocation3 + $0x3f8] sm:$0xff] %v1074
        %1091 = vst [vmem:[#allocation3 + $0x440] sm:$0xff] %v1075
        %v1092 = vld [vmem:[#allocation2 + $0x9] sm:$0xff]
        %v1093 = vld [vmem:[#allocation2 + $0x11] sm:$0xff]
        %v1094 = vld [vmem:[#allocation2 + $0x29] sm:$0xff]
        %v1095 = vld [vmem:[#allocation2 + $0x31] sm:$0xff]
        %v1096 = vld [vmem:[#allocation2 + $0x49] sm:$0xff]
        %v1097 = vld [vmem:[#allocation2 + $0x51] sm:$0xff]
        %v1098 = vld [vmem:[#allocation2 + $0x69] sm:$0xff]
        %v1099 = vld [vmem:[#allocation2 + $0x71] sm:$0xff]
        %v1100 = vld [vmem:[#allocation2 + $0x89] sm:$0xff]
        %v1101 = vld [vmem:[#allocation2 + $0x91] sm:$0xff]
        %v1102 = vld [vmem:[#allocation2 + $0xa9] sm:$0xff]
        %v1103 = vld [vmem:[#allocation2 + $0xb1] sm:$0xff]
        %v1104 = vld [vmem:[#allocation2 + $0xc9] sm:$0xff]
        %v1105 = vld [vmem:[#allocation2 + $0xd1] sm:$0xff]
        %v1106 = vld [vmem:[#allocation2 + $0xe9] sm:$0xff]
        %v1107 = vld [vmem:[#allocation2 + $0xf1] sm:$0xff]
        %v1108 = vld [vmem:[#allocation2 + $0x109] sm:$0xff]
        %v1109 = vld [vmem:[#allocation2 + $0x111] sm:$0xff]
        %v1110 = vld [vmem:[#allocation2 + $0x129] sm:$0xff]
        %v1111 = vld [vmem:[#allocation2 + $0x131] sm:$0xff]
        %v1112 = vld [vmem:[#allocation2 + $0x149] sm:$0xff]
        %v1113 = vld [vmem:[#allocation2 + $0x151] sm:$0xff]
        %v1114 = vld [vmem:[#allocation2 + $0x169] sm:$0xff]
        %v1115 = vld [vmem:[#allocation2 + $0x171] sm:$0xff]
        %v1116 = vld [vmem:[#allocation2 + $0x189] sm:$0xff]
        %v1117 = vld [vmem:[#allocation2 + $0x191] sm:$0xff]
        %v1118 = vld [vmem:[#allocation2 + $0x1a9] sm:$0xff]
        %v1119 = vld [vmem:[#allocation2 + $0x1b1] sm:$0xff]
        %v1120 = vld [vmem:[#allocation2 + $0x1c9] sm:$0xff]
        %v1121 = vld [vmem:[#allocation2 + $0x1d1] sm:$0xff]
        %v1122 = vld [vmem:[#allocation2 + $0x1e9] sm:$0xff]
        %v1123 = vld [vmem:[#allocation2 + $0x1f1] sm:$0xff]
        %v1124 = vpack.c.bf16 %v1093, %v1092
        %v1125 = vpack.c.bf16 %v1095, %v1094
        %v1126 = vpack.c.bf16 %v1097, %v1096
        %v1127 = vpack.c.bf16 %v1099, %v1098
        %v1128 = vpack.c.bf16 %v1101, %v1100
        %v1129 = vpack.c.bf16 %v1103, %v1102
        %v1130 = vpack.c.bf16 %v1105, %v1104
        %v1131 = vpack.c.bf16 %v1107, %v1106
        %v1132 = vpack.c.bf16 %v1109, %v1108
        %v1133 = vpack.c.bf16 %v1111, %v1110
        %v1134 = vpack.c.bf16 %v1113, %v1112
        %v1135 = vpack.c.bf16 %v1115, %v1114
        %v1136 = vpack.c.bf16 %v1117, %v1116
        %v1137 = vpack.c.bf16 %v1119, %v1118
        %v1138 = vpack.c.bf16 %v1121, %v1120
        %v1139 = vpack.c.bf16 %v1123, %v1122
        %1140 = vst [vmem:[#allocation3 + $0x10] sm:$0xff] %v1124
        %1141 = vst [vmem:[#allocation3 + $0x58] sm:$0xff] %v1125
        %1142 = vst [vmem:[#allocation3 + $0xa0] sm:$0xff] %v1126
        %1143 = vst [vmem:[#allocation3 + $0xe8] sm:$0xff] %v1127
        %1144 = vst [vmem:[#allocation3 + $0x130] sm:$0xff] %v1128
        %1145 = vst [vmem:[#allocation3 + $0x178] sm:$0xff] %v1129
        %1146 = vst [vmem:[#allocation3 + $0x1c0] sm:$0xff] %v1130
        %1147 = vst [vmem:[#allocation3 + $0x208] sm:$0xff] %v1131
        %1148 = vst [vmem:[#allocation3 + $0x250] sm:$0xff] %v1132
        %1149 = vst [vmem:[#allocation3 + $0x298] sm:$0xff] %v1133
        %1150 = vst [vmem:[#allocation3 + $0x2e0] sm:$0xff] %v1134
        %1151 = vst [vmem:[#allocation3 + $0x328] sm:$0xff] %v1135
        %1152 = vst [vmem:[#allocation3 + $0x370] sm:$0xff] %v1136
        %1153 = vst [vmem:[#allocation3 + $0x3b8] sm:$0xff] %v1137
        %1154 = vst [vmem:[#allocation3 + $0x400] sm:$0xff] %v1138
        %1155 = vst [vmem:[#allocation3 + $0x448] sm:$0xff] %v1139
        %v1156 = vld [vmem:[%s931 + $0x7] sm:$0xff]
        %v1157 = vld [vmem:[%s931 + $0xf] sm:$0xff]
        %v1158 = vld [vmem:[%s931 + $0x27] sm:$0xff]
        %v1159 = vld [vmem:[%s931 + $0x2f] sm:$0xff]
        %v1160 = vld [vmem:[%s931 + $0x47] sm:$0xff]
        %v1161 = vld [vmem:[%s931 + $0x4f] sm:$0xff]
        %v1162 = vld [vmem:[%s931 + $0x67] sm:$0xff]
        %v1163 = vld [vmem:[%s931 + $0x6f] sm:$0xff]
        %v1164 = vld [vmem:[%s931 + $0x87] sm:$0xff]
        %v1165 = vld [vmem:[%s931 + $0x8f] sm:$0xff]
        %v1166 = vld [vmem:[%s931 + $0xa7] sm:$0xff]
        %v1167 = vld [vmem:[%s931 + $0xaf] sm:$0xff]
        %v1168 = vld [vmem:[%s931 + $0xc7] sm:$0xff]
        %v1169 = vld [vmem:[%s931 + $0xcf] sm:$0xff]
        %v1170 = vld [vmem:[%s931 + $0xe7] sm:$0xff]
        %v1171 = vld [vmem:[%s931 + $0xef] sm:$0xff]
        %v1172 = vld [vmem:[%s931 + $0x107] sm:$0xff]
        %v1173 = vld [vmem:[%s931 + $0x10f] sm:$0xff]
        %v1174 = vld [vmem:[%s931 + $0x127] sm:$0xff]
        %v1175 = vld [vmem:[%s931 + $0x12f] sm:$0xff]
        %v1176 = vld [vmem:[%s931 + $0x147] sm:$0xff]
        %v1177 = vld [vmem:[%s931 + $0x14f] sm:$0xff]
        %v1178 = vld [vmem:[%s931 + $0x167] sm:$0xff]
        %v1179 = vld [vmem:[%s931 + $0x16f] sm:$0xff]
        %v1180 = vld [vmem:[%s931 + $0x187] sm:$0xff]
        %v1181 = vld [vmem:[%s931 + $0x18f] sm:$0xff]
        %v1182 = vld [vmem:[%s931 + $0x1a7] sm:$0xff]
        %v1183 = vld [vmem:[%s931 + $0x1af] sm:$0xff]
        %v1184 = vld [vmem:[%s931 + $0x1c7] sm:$0xff]
        %v1185 = vld [vmem:[%s931 + $0x1cf] sm:$0xff]
        %v1186 = vld [vmem:[%s931 + $0x1e7] sm:$0xff]
        %v1187 = vld [vmem:[%s931 + $0x1ef] sm:$0xff]
        %v1188 = vpack.c.bf16 %v1157, %v1156
        %v1189 = vpack.c.bf16 %v1159, %v1158
        %v1190 = vpack.c.bf16 %v1161, %v1160
        %v1191 = vpack.c.bf16 %v1163, %v1162
        %v1192 = vpack.c.bf16 %v1165, %v1164
        %v1193 = vpack.c.bf16 %v1167, %v1166
        %v1194 = vpack.c.bf16 %v1169, %v1168
        %v1195 = vpack.c.bf16 %v1171, %v1170
        %v1196 = vpack.c.bf16 %v1173, %v1172
        %v1197 = vpack.c.bf16 %v1175, %v1174
        %v1198 = vpack.c.bf16 %v1177, %v1176
        %v1199 = vpack.c.bf16 %v1179, %v1178
        %v1200 = vpack.c.bf16 %v1181, %v1180
        %v1201 = vpack.c.bf16 %v1183, %v1182
        %v1202 = vpack.c.bf16 %v1185, %v1184
        %v1203 = vpack.c.bf16 %v1187, %v1186
        %1204 = vst [vmem:[#allocation3 + $0x18] sm:$0xff] %v1188
        %1205 = vst [vmem:[#allocation3 + $0x60] sm:$0xff] %v1189
        %1206 = vst [vmem:[#allocation3 + $0xa8] sm:$0xff] %v1190
        %1207 = vst [vmem:[#allocation3 + $0xf0] sm:$0xff] %v1191
        %1208 = vst [vmem:[#allocation3 + $0x138] sm:$0xff] %v1192
        %1209 = vst [vmem:[#allocation3 + $0x180] sm:$0xff] %v1193
        %1210 = vst [vmem:[#allocation3 + $0x1c8] sm:$0xff] %v1194
        %1211 = vst [vmem:[#allocation3 + $0x210] sm:$0xff] %v1195
        %1212 = vst [vmem:[#allocation3 + $0x258] sm:$0xff] %v1196
        %1213 = vst [vmem:[#allocation3 + $0x2a0] sm:$0xff] %v1197
        %1214 = vst [vmem:[#allocation3 + $0x2e8] sm:$0xff] %v1198
        %1215 = vst [vmem:[#allocation3 + $0x330] sm:$0xff] %v1199
        %1216 = vst [vmem:[#allocation3 + $0x378] sm:$0xff] %v1200
        %1217 = vst [vmem:[#allocation3 + $0x3c0] sm:$0xff] %v1201
        %1218 = vst [vmem:[#allocation3 + $0x408] sm:$0xff] %v1202
        %1219 = vst [vmem:[#allocation3 + $0x450] sm:$0xff] %v1203
        %v1220 = vld [vmem:[%s931 + $0x8] sm:$0xff]
        %v1221 = vld [vmem:[%s931 + $0x10] sm:$0xff]
        %v1222 = vld [vmem:[%s931 + $0x28] sm:$0xff]
        %v1223 = vld [vmem:[%s931 + $0x30] sm:$0xff]
        %v1224 = vld [vmem:[%s931 + $0x48] sm:$0xff]
        %v1225 = vld [vmem:[%s931 + $0x50] sm:$0xff]
        %v1226 = vld [vmem:[%s931 + $0x68] sm:$0xff]
        %v1227 = vld [vmem:[%s931 + $0x70] sm:$0xff]
        %v1228 = vld [vmem:[%s931 + $0x88] sm:$0xff]
        %v1229 = vld [vmem:[%s931 + $0x90] sm:$0xff]
        %v1230 = vld [vmem:[%s931 + $0xa8] sm:$0xff]
        %v1231 = vld [vmem:[%s931 + $0xb0] sm:$0xff]
        %v1232 = vld [vmem:[%s931 + $0xc8] sm:$0xff]
        %v1233 = vld [vmem:[%s931 + $0xd0] sm:$0xff]
        %v1234 = vld [vmem:[%s931 + $0xe8] sm:$0xff]
        %v1235 = vld [vmem:[%s931 + $0xf0] sm:$0xff]
        %v1236 = vld [vmem:[%s931 + $0x108] sm:$0xff]
        %v1237 = vld [vmem:[%s931 + $0x110] sm:$0xff]
        %v1238 = vld [vmem:[%s931 + $0x128] sm:$0xff]
        %v1239 = vld [vmem:[%s931 + $0x130] sm:$0xff]
        %v1240 = vld [vmem:[%s931 + $0x148] sm:$0xff]
        %v1241 = vld [vmem:[%s931 + $0x150] sm:$0xff]
        %v1242 = vld [vmem:[%s931 + $0x168] sm:$0xff]
        %v1243 = vld [vmem:[%s931 + $0x170] sm:$0xff]
        %v1244 = vld [vmem:[%s931 + $0x188] sm:$0xff]
        %v1245 = vld [vmem:[%s931 + $0x190] sm:$0xff]
        %v1246 = vld [vmem:[%s931 + $0x1a8] sm:$0xff]
        %v1247 = vld [vmem:[%s931 + $0x1b0] sm:$0xff]
        %v1248 = vld [vmem:[%s931 + $0x1c8] sm:$0xff]
        %v1249 = vld [vmem:[%s931 + $0x1d0] sm:$0xff]
        %v1250 = vld [vmem:[%s931 + $0x1e8] sm:$0xff]
        %v1251 = vld [vmem:[%s931 + $0x1f0] sm:$0xff]
        %v1252 = vpack.c.bf16 %v1221, %v1220
        %v1253 = vpack.c.bf16 %v1223, %v1222
        %v1254 = vpack.c.bf16 %v1225, %v1224
        %v1255 = vpack.c.bf16 %v1227, %v1226
        %v1256 = vpack.c.bf16 %v1229, %v1228
        %v1257 = vpack.c.bf16 %v1231, %v1230
        %v1258 = vpack.c.bf16 %v1233, %v1232
        %v1259 = vpack.c.bf16 %v1235, %v1234
        %v1260 = vpack.c.bf16 %v1237, %v1236
        %v1261 = vpack.c.bf16 %v1239, %v1238
        %v1262 = vpack.c.bf16 %v1241, %v1240
        %v1263 = vpack.c.bf16 %v1243, %v1242
        %v1264 = vpack.c.bf16 %v1245, %v1244
        %v1265 = vpack.c.bf16 %v1247, %v1246
        %v1266 = vpack.c.bf16 %v1249, %v1248
        %v1267 = vpack.c.bf16 %v1251, %v1250
        %1268 = vst [vmem:[#allocation3 + $0x20] sm:$0xff] %v1252
        %1269 = vst [vmem:[#allocation3 + $0x68] sm:$0xff] %v1253
        %1270 = vst [vmem:[#allocation3 + $0xb0] sm:$0xff] %v1254
        %1271 = vst [vmem:[#allocation3 + $0xf8] sm:$0xff] %v1255
        %1272 = vst [vmem:[#allocation3 + $0x140] sm:$0xff] %v1256
        %1273 = vst [vmem:[#allocation3 + $0x188] sm:$0xff] %v1257
        %1274 = vst [vmem:[#allocation3 + $0x1d0] sm:$0xff] %v1258
        %1275 = vst [vmem:[#allocation3 + $0x218] sm:$0xff] %v1259
        %1276 = vst [vmem:[#allocation3 + $0x260] sm:$0xff] %v1260
        %1277 = vst [vmem:[#allocation3 + $0x2a8] sm:$0xff] %v1261
        %1278 = vst [vmem:[#allocation3 + $0x2f0] sm:$0xff] %v1262
        %1279 = vst [vmem:[#allocation3 + $0x338] sm:$0xff] %v1263
        %1280 = vst [vmem:[#allocation3 + $0x380] sm:$0xff] %v1264
        %1281 = vst [vmem:[#allocation3 + $0x3c8] sm:$0xff] %v1265
        %1282 = vst [vmem:[#allocation3 + $0x410] sm:$0xff] %v1266
        %1283 = vst [vmem:[#allocation3 + $0x458] sm:$0xff] %v1267
        %v1284 = vld [vmem:[%s931 + $0x9] sm:$0xff]
        %v1285 = vld [vmem:[%s931 + $0x11] sm:$0xff]
        %v1286 = vld [vmem:[%s931 + $0x29] sm:$0xff]
        %v1287 = vld [vmem:[%s931 + $0x31] sm:$0xff]
        %v1288 = vld [vmem:[%s931 + $0x49] sm:$0xff]
        %v1289 = vld [vmem:[%s931 + $0x51] sm:$0xff]
        %v1290 = vld [vmem:[%s931 + $0x69] sm:$0xff]
        %v1291 = vld [vmem:[%s931 + $0x71] sm:$0xff]
        %v1292 = vld [vmem:[%s931 + $0x89] sm:$0xff]
        %v1293 = vld [vmem:[%s931 + $0x91] sm:$0xff]
        %v1294 = vld [vmem:[%s931 + $0xa9] sm:$0xff]
        %v1295 = vld [vmem:[%s931 + $0xb1] sm:$0xff]
        %v1296 = vld [vmem:[%s931 + $0xc9] sm:$0xff]
        %v1297 = vld [vmem:[%s931 + $0xd1] sm:$0xff]
        %v1298 = vld [vmem:[%s931 + $0xe9] sm:$0xff]
        %v1299 = vld [vmem:[%s931 + $0xf1] sm:$0xff]
        %v1300 = vld [vmem:[%s931 + $0x109] sm:$0xff]
        %v1301 = vld [vmem:[%s931 + $0x111] sm:$0xff]
        %v1302 = vld [vmem:[%s931 + $0x129] sm:$0xff]
        %v1303 = vld [vmem:[%s931 + $0x131] sm:$0xff]
        %v1304 = vld [vmem:[%s931 + $0x149] sm:$0xff]
        %v1305 = vld [vmem:[%s931 + $0x151] sm:$0xff]
        %v1306 = vld [vmem:[%s931 + $0x169] sm:$0xff]
        %v1307 = vld [vmem:[%s931 + $0x171] sm:$0xff]
        %v1308 = vld [vmem:[%s931 + $0x189] sm:$0xff]
        %v1309 = vld [vmem:[%s931 + $0x191] sm:$0xff]
        %v1310 = vld [vmem:[%s931 + $0x1a9] sm:$0xff]
        %v1311 = vld [vmem:[%s931 + $0x1b1] sm:$0xff]
        %v1312 = vld [vmem:[%s931 + $0x1c9] sm:$0xff]
        %v1313 = vld [vmem:[%s931 + $0x1d1] sm:$0xff]
        %v1314 = vld [vmem:[%s931 + $0x1e9] sm:$0xff]
        %v1315 = vld [vmem:[%s931 + $0x1f1] sm:$0xff]
        %v1316 = vpack.c.bf16 %v1285, %v1284
        %v1317 = vpack.c.bf16 %v1287, %v1286
        %v1318 = vpack.c.bf16 %v1289, %v1288
        %v1319 = vpack.c.bf16 %v1291, %v1290
        %v1320 = vpack.c.bf16 %v1293, %v1292
        %v1321 = vpack.c.bf16 %v1295, %v1294
        %v1322 = vpack.c.bf16 %v1297, %v1296
        %v1323 = vpack.c.bf16 %v1299, %v1298
        %v1324 = vpack.c.bf16 %v1301, %v1300
        %v1325 = vpack.c.bf16 %v1303, %v1302
        %v1326 = vpack.c.bf16 %v1305, %v1304
        %v1327 = vpack.c.bf16 %v1307, %v1306
        %v1328 = vpack.c.bf16 %v1309, %v1308
        %v1329 = vpack.c.bf16 %v1311, %v1310
        %v1330 = vpack.c.bf16 %v1313, %v1312
        %v1331 = vpack.c.bf16 %v1315, %v1314
        %1332 = vst [vmem:[#allocation3 + $0x28] sm:$0xff] %v1316
        %1333 = vst [vmem:[#allocation3 + $0x70] sm:$0xff] %v1317
        %1334 = vst [vmem:[#allocation3 + $0xb8] sm:$0xff] %v1318
        %1335 = vst [vmem:[#allocation3 + $0x100] sm:$0xff] %v1319
        %1336 = vst [vmem:[#allocation3 + $0x148] sm:$0xff] %v1320
        %1337 = vst [vmem:[#allocation3 + $0x190] sm:$0xff] %v1321
        %1338 = vst [vmem:[#allocation3 + $0x1d8] sm:$0xff] %v1322
        %1339 = vst [vmem:[#allocation3 + $0x220] sm:$0xff] %v1323
        %1340 = vst [vmem:[#allocation3 + $0x268] sm:$0xff] %v1324
        %1341 = vst [vmem:[#allocation3 + $0x2b0] sm:$0xff] %v1325
        %1342 = vst [vmem:[#allocation3 + $0x2f8] sm:$0xff] %v1326
        %1343 = vst [vmem:[#allocation3 + $0x340] sm:$0xff] %v1327
        %1344 = vst [vmem:[#allocation3 + $0x388] sm:$0xff] %v1328
        %1345 = vst [vmem:[#allocation3 + $0x3d0] sm:$0xff] %v1329
        %1346 = vst [vmem:[#allocation3 + $0x418] sm:$0xff] %v1330
        %1347 = vst [vmem:[#allocation3 + $0x460] sm:$0xff] %v1331
        %s1348 = scalar_lea.vmem [#allocation2], 64
        %v1349 = vld [vmem:[%s1348 + $0x7] sm:$0xff]
        %v1350 = vld [vmem:[%s1348 + $0xf] sm:$0xff]
        %v1351 = vld [vmem:[%s1348 + $0x27] sm:$0xff]
        %v1352 = vld [vmem:[%s1348 + $0x2f] sm:$0xff]
        %v1353 = vld [vmem:[%s1348 + $0x47] sm:$0xff]
        %v1354 = vld [vmem:[%s1348 + $0x4f] sm:$0xff]
        %v1355 = vld [vmem:[%s1348 + $0x67] sm:$0xff]
        %v1356 = vld [vmem:[%s1348 + $0x6f] sm:$0xff]
        %v1357 = vld [vmem:[%s1348 + $0x87] sm:$0xff]
        %v1358 = vld [vmem:[%s1348 + $0x8f] sm:$0xff]
        %v1359 = vld [vmem:[%s1348 + $0xa7] sm:$0xff]
        %v1360 = vld [vmem:[%s1348 + $0xaf] sm:$0xff]
        %v1361 = vld [vmem:[%s1348 + $0xc7] sm:$0xff]
        %v1362 = vld [vmem:[%s1348 + $0xcf] sm:$0xff]
        %v1363 = vld [vmem:[%s1348 + $0xe7] sm:$0xff]
        %v1364 = vld [vmem:[%s1348 + $0xef] sm:$0xff]
        %v1365 = vld [vmem:[%s1348 + $0x107] sm:$0xff]
        %v1366 = vld [vmem:[%s1348 + $0x10f] sm:$0xff]
        %v1367 = vld [vmem:[%s1348 + $0x127] sm:$0xff]
        %v1368 = vld [vmem:[%s1348 + $0x12f] sm:$0xff]
        %v1369 = vld [vmem:[%s1348 + $0x147] sm:$0xff]
        %v1370 = vld [vmem:[%s1348 + $0x14f] sm:$0xff]
        %v1371 = vld [vmem:[%s1348 + $0x167] sm:$0xff]
        %v1372 = vld [vmem:[%s1348 + $0x16f] sm:$0xff]
        %v1373 = vld [vmem:[%s1348 + $0x187] sm:$0xff]
        %v1374 = vld [vmem:[%s1348 + $0x18f] sm:$0xff]
        %v1375 = vld [vmem:[%s1348 + $0x1a7] sm:$0xff]
        %v1376 = vld [vmem:[%s1348 + $0x1af] sm:$0xff]
        %v1377 = vld [vmem:[%s1348 + $0x1c7] sm:$0xff]
        %v1378 = vld [vmem:[%s1348 + $0x1cf] sm:$0xff]
        %v1379 = vld [vmem:[%s1348 + $0x1e7] sm:$0xff]
        %v1380 = vld [vmem:[%s1348 + $0x1ef] sm:$0xff]
        %v1381 = vpack.c.bf16 %v1350, %v1349
        %v1382 = vpack.c.bf16 %v1352, %v1351
        %v1383 = vpack.c.bf16 %v1354, %v1353
        %v1384 = vpack.c.bf16 %v1356, %v1355
        %v1385 = vpack.c.bf16 %v1358, %v1357
        %v1386 = vpack.c.bf16 %v1360, %v1359
        %v1387 = vpack.c.bf16 %v1362, %v1361
        %v1388 = vpack.c.bf16 %v1364, %v1363
        %v1389 = vpack.c.bf16 %v1366, %v1365
        %v1390 = vpack.c.bf16 %v1368, %v1367
        %v1391 = vpack.c.bf16 %v1370, %v1369
        %v1392 = vpack.c.bf16 %v1372, %v1371
        %v1393 = vpack.c.bf16 %v1374, %v1373
        %v1394 = vpack.c.bf16 %v1376, %v1375
        %v1395 = vpack.c.bf16 %v1378, %v1377
        %v1396 = vpack.c.bf16 %v1380, %v1379
        %1397 = vst [vmem:[#allocation3 + $0x30] sm:$0xff] %v1381
        %1398 = vst [vmem:[#allocation3 + $0x78] sm:$0xff] %v1382
        %1399 = vst [vmem:[#allocation3 + $0xc0] sm:$0xff] %v1383
        %1400 = vst [vmem:[#allocation3 + $0x108] sm:$0xff] %v1384
        %1401 = vst [vmem:[#allocation3 + $0x150] sm:$0xff] %v1385
        %1402 = vst [vmem:[#allocation3 + $0x198] sm:$0xff] %v1386
        %1403 = vst [vmem:[#allocation3 + $0x1e0] sm:$0xff] %v1387
        %1404 = vst [vmem:[#allocation3 + $0x228] sm:$0xff] %v1388
        %1405 = vst [vmem:[#allocation3 + $0x270] sm:$0xff] %v1389
        %1406 = vst [vmem:[#allocation3 + $0x2b8] sm:$0xff] %v1390
        %1407 = vst [vmem:[#allocation3 + $0x300] sm:$0xff] %v1391
        %1408 = vst [vmem:[#allocation3 + $0x348] sm:$0xff] %v1392
        %1409 = vst [vmem:[#allocation3 + $0x390] sm:$0xff] %v1393
        %1410 = vst [vmem:[#allocation3 + $0x3d8] sm:$0xff] %v1394
        %1411 = vst [vmem:[#allocation3 + $0x420] sm:$0xff] %v1395
        %1412 = vst [vmem:[#allocation3 + $0x468] sm:$0xff] %v1396
        %v1413 = vld [vmem:[%s1348 + $0x8] sm:$0xff]
        %v1414 = vld [vmem:[%s1348 + $0x10] sm:$0xff]
        %v1415 = vld [vmem:[%s1348 + $0x28] sm:$0xff]
        %v1416 = vld [vmem:[%s1348 + $0x30] sm:$0xff]
        %v1417 = vld [vmem:[%s1348 + $0x48] sm:$0xff]
        %v1418 = vld [vmem:[%s1348 + $0x50] sm:$0xff]
        %v1419 = vld [vmem:[%s1348 + $0x68] sm:$0xff]
        %v1420 = vld [vmem:[%s1348 + $0x70] sm:$0xff]
        %v1421 = vld [vmem:[%s1348 + $0x88] sm:$0xff]
        %v1422 = vld [vmem:[%s1348 + $0x90] sm:$0xff]
        %v1423 = vld [vmem:[%s1348 + $0xa8] sm:$0xff]
        %v1424 = vld [vmem:[%s1348 + $0xb0] sm:$0xff]
        %v1425 = vld [vmem:[%s1348 + $0xc8] sm:$0xff]
        %v1426 = vld [vmem:[%s1348 + $0xd0] sm:$0xff]
        %v1427 = vld [vmem:[%s1348 + $0xe8] sm:$0xff]
        %v1428 = vld [vmem:[%s1348 + $0xf0] sm:$0xff]
        %v1429 = vld [vmem:[%s1348 + $0x108] sm:$0xff]
        %v1430 = vld [vmem:[%s1348 + $0x110] sm:$0xff]
        %v1431 = vld [vmem:[%s1348 + $0x128] sm:$0xff]
        %v1432 = vld [vmem:[%s1348 + $0x130] sm:$0xff]
        %v1433 = vld [vmem:[%s1348 + $0x148] sm:$0xff]
        %v1434 = vld [vmem:[%s1348 + $0x150] sm:$0xff]
        %v1435 = vld [vmem:[%s1348 + $0x168] sm:$0xff]
        %v1436 = vld [vmem:[%s1348 + $0x170] sm:$0xff]
        %v1437 = vld [vmem:[%s1348 + $0x188] sm:$0xff]
        %v1438 = vld [vmem:[%s1348 + $0x190] sm:$0xff]
        %v1439 = vld [vmem:[%s1348 + $0x1a8] sm:$0xff]
        %v1440 = vld [vmem:[%s1348 + $0x1b0] sm:$0xff]
        %v1441 = vld [vmem:[%s1348 + $0x1c8] sm:$0xff]
        %v1442 = vld [vmem:[%s1348 + $0x1d0] sm:$0xff]
        %v1443 = vld [vmem:[%s1348 + $0x1e8] sm:$0xff]
        %v1444 = vld [vmem:[%s1348 + $0x1f0] sm:$0xff]
        %v1445 = vpack.c.bf16 %v1414, %v1413
        %v1446 = vpack.c.bf16 %v1416, %v1415
        %v1447 = vpack.c.bf16 %v1418, %v1417
        %v1448 = vpack.c.bf16 %v1420, %v1419
        %v1449 = vpack.c.bf16 %v1422, %v1421
        %v1450 = vpack.c.bf16 %v1424, %v1423
        %v1451 = vpack.c.bf16 %v1426, %v1425
        %v1452 = vpack.c.bf16 %v1428, %v1427
        %v1453 = vpack.c.bf16 %v1430, %v1429
        %v1454 = vpack.c.bf16 %v1432, %v1431
        %v1455 = vpack.c.bf16 %v1434, %v1433
        %v1456 = vpack.c.bf16 %v1436, %v1435
        %v1457 = vpack.c.bf16 %v1438, %v1437
        %v1458 = vpack.c.bf16 %v1440, %v1439
        %v1459 = vpack.c.bf16 %v1442, %v1441
        %v1460 = vpack.c.bf16 %v1444, %v1443
        %1461 = vst [vmem:[#allocation3 + $0x38] sm:$0xff] %v1445
        %1462 = vst [vmem:[#allocation3 + $0x80] sm:$0xff] %v1446
        %1463 = vst [vmem:[#allocation3 + $0xc8] sm:$0xff] %v1447
        %1464 = vst [vmem:[#allocation3 + $0x110] sm:$0xff] %v1448
        %1465 = vst [vmem:[#allocation3 + $0x158] sm:$0xff] %v1449
        %1466 = vst [vmem:[#allocation3 + $0x1a0] sm:$0xff] %v1450
        %1467 = vst [vmem:[#allocation3 + $0x1e8] sm:$0xff] %v1451
        %1468 = vst [vmem:[#allocation3 + $0x230] sm:$0xff] %v1452
        %1469 = vst [vmem:[#allocation3 + $0x278] sm:$0xff] %v1453
        %1470 = vst [vmem:[#allocation3 + $0x2c0] sm:$0xff] %v1454
        %1471 = vst [vmem:[#allocation3 + $0x308] sm:$0xff] %v1455
        %1472 = vst [vmem:[#allocation3 + $0x350] sm:$0xff] %v1456
        %1473 = vst [vmem:[#allocation3 + $0x398] sm:$0xff] %v1457
        %1474 = vst [vmem:[#allocation3 + $0x3e0] sm:$0xff] %v1458
        %1475 = vst [vmem:[#allocation3 + $0x428] sm:$0xff] %v1459
        %1476 = vst [vmem:[#allocation3 + $0x470] sm:$0xff] %v1460
        %v1477 = vld [vmem:[%s1348 + $0x9] sm:$0xff]
        %v1478 = vld [vmem:[%s1348 + $0x11] sm:$0xff]
        %v1479 = vld [vmem:[%s1348 + $0x29] sm:$0xff]
        %v1480 = vld [vmem:[%s1348 + $0x31] sm:$0xff]
        %v1481 = vld [vmem:[%s1348 + $0x49] sm:$0xff]
        %v1482 = vld [vmem:[%s1348 + $0x51] sm:$0xff]
        %v1483 = vld [vmem:[%s1348 + $0x69] sm:$0xff]
        %v1484 = vld [vmem:[%s1348 + $0x71] sm:$0xff]
        %v1485 = vld [vmem:[%s1348 + $0x89] sm:$0xff]
        %v1486 = vld [vmem:[%s1348 + $0x91] sm:$0xff]
        %v1487 = vld [vmem:[%s1348 + $0xa9] sm:$0xff]
        %v1488 = vld [vmem:[%s1348 + $0xb1] sm:$0xff]
        %v1489 = vld [vmem:[%s1348 + $0xc9] sm:$0xff]
        %v1490 = vld [vmem:[%s1348 + $0xd1] sm:$0xff]
        %v1491 = vld [vmem:[%s1348 + $0xe9] sm:$0xff]
        %v1492 = vld [vmem:[%s1348 + $0xf1] sm:$0xff]
        %v1493 = vld [vmem:[%s1348 + $0x109] sm:$0xff]
        %v1494 = vld [vmem:[%s1348 + $0x111] sm:$0xff]
        %v1495 = vld [vmem:[%s1348 + $0x129] sm:$0xff]
        %v1496 = vld [vmem:[%s1348 + $0x131] sm:$0xff]
        %v1497 = vld [vmem:[%s1348 + $0x149] sm:$0xff]
        %v1498 = vld [vmem:[%s1348 + $0x151] sm:$0xff]
        %v1499 = vld [vmem:[%s1348 + $0x169] sm:$0xff]
        %v1500 = vld [vmem:[%s1348 + $0x171] sm:$0xff]
        %v1501 = vld [vmem:[%s1348 + $0x189] sm:$0xff]
        %v1502 = vld [vmem:[%s1348 + $0x191] sm:$0xff]
        %v1503 = vld [vmem:[%s1348 + $0x1a9] sm:$0xff]
        %v1504 = vld [vmem:[%s1348 + $0x1b1] sm:$0xff]
        %v1505 = vld [vmem:[%s1348 + $0x1c9] sm:$0xff]
        %v1506 = vld [vmem:[%s1348 + $0x1d1] sm:$0xff]
        %v1507 = vld [vmem:[%s1348 + $0x1e9] sm:$0xff]
        %v1508 = vld [vmem:[%s1348 + $0x1f1] sm:$0xff]
        %v1509 = vpack.c.bf16 %v1478, %v1477
        %v1510 = vpack.c.bf16 %v1480, %v1479
        %v1511 = vpack.c.bf16 %v1482, %v1481
        %v1512 = vpack.c.bf16 %v1484, %v1483
        %v1513 = vpack.c.bf16 %v1486, %v1485
        %v1514 = vpack.c.bf16 %v1488, %v1487
        %v1515 = vpack.c.bf16 %v1490, %v1489
        %v1516 = vpack.c.bf16 %v1492, %v1491
        %v1517 = vpack.c.bf16 %v1494, %v1493
        %v1518 = vpack.c.bf16 %v1496, %v1495
        %v1519 = vpack.c.bf16 %v1498, %v1497
        %v1520 = vpack.c.bf16 %v1500, %v1499
        %v1521 = vpack.c.bf16 %v1502, %v1501
        %v1522 = vpack.c.bf16 %v1504, %v1503
        %v1523 = vpack.c.bf16 %v1506, %v1505
        %v1524 = vpack.c.bf16 %v1508, %v1507
        %1525 = vst [vmem:[#allocation3 + $0x40] sm:$0xff] %v1509
        %1526 = vst [vmem:[#allocation3 + $0x88] sm:$0xff] %v1510
        %1527 = vst [vmem:[#allocation3 + $0xd0] sm:$0xff] %v1511
        %1528 = vst [vmem:[#allocation3 + $0x118] sm:$0xff] %v1512
        %1529 = vst [vmem:[#allocation3 + $0x160] sm:$0xff] %v1513
        %1530 = vst [vmem:[#allocation3 + $0x1a8] sm:$0xff] %v1514
        %1531 = vst [vmem:[#allocation3 + $0x1f0] sm:$0xff] %v1515
        %1532 = vst [vmem:[#allocation3 + $0x238] sm:$0xff] %v1516
        %1533 = vst [vmem:[#allocation3 + $0x280] sm:$0xff] %v1517
        %1534 = vst [vmem:[#allocation3 + $0x2c8] sm:$0xff] %v1518
        %1535 = vst [vmem:[#allocation3 + $0x310] sm:$0xff] %v1519
        %1536 = vst [vmem:[#allocation3 + $0x358] sm:$0xff] %v1520
        %1537 = vst [vmem:[#allocation3 + $0x3a0] sm:$0xff] %v1521
        %1538 = vst [vmem:[#allocation3 + $0x3e8] sm:$0xff] %v1522
        %1539 = vst [vmem:[#allocation3 + $0x430] sm:$0xff] %v1523
        %1540 = vst [vmem:[#allocation3 + $0x478] sm:$0xff] %v1524
        %v1541 = vld [vmem:[#allocation3] sm:$0xff]
        %v1542 = vld [vmem:[#allocation3 + $0x8] sm:$0xff]
        %v1543 = vld [vmem:[#allocation3 + $0x10] sm:$0xff]
        %v1544 = vld [vmem:[#allocation3 + $0x18] sm:$0xff]
        %v1545 = vld [vmem:[#allocation3 + $0x20] sm:$0xff]
        %v1546 = vld [vmem:[#allocation3 + $0x28] sm:$0xff]
        %v1547 = vld [vmem:[#allocation3 + $0x30] sm:$0xff]
        %v1548 = vld [vmem:[#allocation3 + $0x38] sm:$0xff]
        %v1549 = vld [vmem:[#allocation3 + $0x40] sm:$0xff]
        %v1550 = vld [vmem:[#allocation3 + $0x48] sm:$0xff]
        %v1551 = vld [vmem:[#allocation3 + $0x50] sm:$0xff]
        %v1552 = vld [vmem:[#allocation3 + $0x58] sm:$0xff]
        %v1553 = vld [vmem:[#allocation3 + $0x60] sm:$0xff]
        %v1554 = vld [vmem:[#allocation3 + $0x68] sm:$0xff]
        %v1555 = vld [vmem:[#allocation3 + $0x70] sm:$0xff]
        %v1556 = vld [vmem:[#allocation3 + $0x78] sm:$0xff]
        %v1557 = vld [vmem:[#allocation3 + $0x80] sm:$0xff]
        %v1558 = vld [vmem:[#allocation3 + $0x88] sm:$0xff]
        %v1559 = vld [vmem:[#allocation3 + $0x90] sm:$0xff]
        %v1560 = vld [vmem:[#allocation3 + $0x98] sm:$0xff]
        %v1561 = vld [vmem:[#allocation3 + $0xa0] sm:$0xff]
        %v1562 = vld [vmem:[#allocation3 + $0xa8] sm:$0xff]
        %v1563 = vld [vmem:[#allocation3 + $0xb0] sm:$0xff]
        %v1564 = vld [vmem:[#allocation3 + $0xb8] sm:$0xff]
        %v1565 = vld [vmem:[#allocation3 + $0xc0] sm:$0xff]
        %v1566 = vld [vmem:[#allocation3 + $0xc8] sm:$0xff]
        %v1567 = vld [vmem:[#allocation3 + $0xd0] sm:$0xff]
        %v1568 = vld [vmem:[#allocation3 + $0xd8] sm:$0xff]
        %v1569 = vld [vmem:[#allocation3 + $0xe0] sm:$0xff]
        %v1570 = vld [vmem:[#allocation3 + $0xe8] sm:$0xff]
        %v1571 = vld [vmem:[#allocation3 + $0xf0] sm:$0xff]
        %v1572 = vld [vmem:[#allocation3 + $0xf8] sm:$0xff]
        %v1573 = vld [vmem:[#allocation3 + $0x100] sm:$0xff]
        %v1574 = vld [vmem:[#allocation3 + $0x108] sm:$0xff]
        %v1575 = vld [vmem:[#allocation3 + $0x110] sm:$0xff]
        %v1576 = vld [vmem:[#allocation3 + $0x118] sm:$0xff]
        %v1577 = vld [vmem:[#allocation3 + $0x120] sm:$0xff]
        %v1578 = vld [vmem:[#allocation3 + $0x128] sm:$0xff]
        %v1579 = vld [vmem:[#allocation3 + $0x130] sm:$0xff]
        %v1580 = vld [vmem:[#allocation3 + $0x138] sm:$0xff]
        %v1581 = vld [vmem:[#allocation3 + $0x140] sm:$0xff]
        %v1582 = vld [vmem:[#allocation3 + $0x148] sm:$0xff]
        %v1583 = vld [vmem:[#allocation3 + $0x150] sm:$0xff]
        %v1584 = vld [vmem:[#allocation3 + $0x158] sm:$0xff]
        %v1585 = vld [vmem:[#allocation3 + $0x160] sm:$0xff]
        %v1586 = vld [vmem:[#allocation3 + $0x168] sm:$0xff]
        %v1587 = vld [vmem:[#allocation3 + $0x170] sm:$0xff]
        %v1588 = vld [vmem:[#allocation3 + $0x178] sm:$0xff]
        %v1589 = vld [vmem:[#allocation3 + $0x180] sm:$0xff]
        %v1590 = vld [vmem:[#allocation3 + $0x188] sm:$0xff]
        %v1591 = vld [vmem:[#allocation3 + $0x190] sm:$0xff]
        %v1592 = vld [vmem:[#allocation3 + $0x198] sm:$0xff]
        %v1593 = vld [vmem:[#allocation3 + $0x1a0] sm:$0xff]
        %v1594 = vld [vmem:[#allocation3 + $0x1a8] sm:$0xff]
        %v1595 = vld [vmem:[#allocation3 + $0x1b0] sm:$0xff]
        %v1596 = vld [vmem:[#allocation3 + $0x1b8] sm:$0xff]
        %v1597 = vld [vmem:[#allocation3 + $0x1c0] sm:$0xff]
        %v1598 = vld [vmem:[#allocation3 + $0x1c8] sm:$0xff]
        %v1599 = vld [vmem:[#allocation3 + $0x1d0] sm:$0xff]
        %v1600 = vld [vmem:[#allocation3 + $0x1d8] sm:$0xff]
        %v1601 = vld [vmem:[#allocation3 + $0x1e0] sm:$0xff]
        %v1602 = vld [vmem:[#allocation3 + $0x1e8] sm:$0xff]
        %v1603 = vld [vmem:[#allocation3 + $0x1f0] sm:$0xff]
        %v1604 = vld [vmem:[#allocation3 + $0x1f8] sm:$0xff]
        %v1605 = vld [vmem:[#allocation3 + $0x200] sm:$0xff]
        %v1606 = vld [vmem:[#allocation3 + $0x208] sm:$0xff]
        %v1607 = vld [vmem:[#allocation3 + $0x210] sm:$0xff]
        %v1608 = vld [vmem:[#allocation3 + $0x218] sm:$0xff]
        %v1609 = vld [vmem:[#allocation3 + $0x220] sm:$0xff]
        %v1610 = vld [vmem:[#allocation3 + $0x228] sm:$0xff]
        %v1611 = vld [vmem:[#allocation3 + $0x230] sm:$0xff]
        %v1612 = vld [vmem:[#allocation3 + $0x238] sm:$0xff]
        %v1613 = vld [vmem:[#allocation3 + $0x240] sm:$0xff]
        %v1614 = vld [vmem:[#allocation3 + $0x248] sm:$0xff]
        %v1615 = vld [vmem:[#allocation3 + $0x250] sm:$0xff]
        %v1616 = vld [vmem:[#allocation3 + $0x258] sm:$0xff]
        %v1617 = vld [vmem:[#allocation3 + $0x260] sm:$0xff]
        %v1618 = vld [vmem:[#allocation3 + $0x268] sm:$0xff]
        %v1619 = vld [vmem:[#allocation3 + $0x270] sm:$0xff]
        %v1620 = vld [vmem:[#allocation3 + $0x278] sm:$0xff]
        %v1621 = vld [vmem:[#allocation3 + $0x280] sm:$0xff]
        %v1622 = vld [vmem:[#allocation3 + $0x288] sm:$0xff]
        %v1623 = vld [vmem:[#allocation3 + $0x290] sm:$0xff]
        %v1624 = vld [vmem:[#allocation3 + $0x298] sm:$0xff]
        %v1625 = vld [vmem:[#allocation3 + $0x2a0] sm:$0xff]
        %v1626 = vld [vmem:[#allocation3 + $0x2a8] sm:$0xff]
        %v1627 = vld [vmem:[#allocation3 + $0x2b0] sm:$0xff]
        %v1628 = vld [vmem:[#allocation3 + $0x2b8] sm:$0xff]
        %v1629 = vld [vmem:[#allocation3 + $0x2c0] sm:$0xff]
        %v1630 = vld [vmem:[#allocation3 + $0x2c8] sm:$0xff]
        %v1631 = vld [vmem:[#allocation3 + $0x2d0] sm:$0xff]
        %v1632 = vld [vmem:[#allocation3 + $0x2d8] sm:$0xff]
        %v1633 = vld [vmem:[#allocation3 + $0x2e0] sm:$0xff]
        %v1634 = vld [vmem:[#allocation3 + $0x2e8] sm:$0xff]
        %v1635 = vld [vmem:[#allocation3 + $0x2f0] sm:$0xff]
        %v1636 = vld [vmem:[#allocation3 + $0x2f8] sm:$0xff]
        %v1637 = vld [vmem:[#allocation3 + $0x300] sm:$0xff]
        %v1638 = vld [vmem:[#allocation3 + $0x308] sm:$0xff]
        %v1639 = vld [vmem:[#allocation3 + $0x310] sm:$0xff]
        %v1640 = vld [vmem:[#allocation3 + $0x318] sm:$0xff]
        %v1641 = vld [vmem:[#allocation3 + $0x320] sm:$0xff]
        %v1642 = vld [vmem:[#allocation3 + $0x328] sm:$0xff]
        %v1643 = vld [vmem:[#allocation3 + $0x330] sm:$0xff]
        %v1644 = vld [vmem:[#allocation3 + $0x338] sm:$0xff]
        %v1645 = vld [vmem:[#allocation3 + $0x340] sm:$0xff]
        %v1646 = vld [vmem:[#allocation3 + $0x348] sm:$0xff]
        %v1647 = vld [vmem:[#allocation3 + $0x350] sm:$0xff]
        %v1648 = vld [vmem:[#allocation3 + $0x358] sm:$0xff]
        %v1649 = vld [vmem:[#allocation3 + $0x360] sm:$0xff]
        %v1650 = vld [vmem:[#allocation3 + $0x368] sm:$0xff]
        %v1651 = vld [vmem:[#allocation3 + $0x370] sm:$0xff]
        %v1652 = vld [vmem:[#allocation3 + $0x378] sm:$0xff]
        %v1653 = vld [vmem:[#allocation3 + $0x380] sm:$0xff]
        %v1654 = vld [vmem:[#allocation3 + $0x388] sm:$0xff]
        %v1655 = vld [vmem:[#allocation3 + $0x390] sm:$0xff]
        %v1656 = vld [vmem:[#allocation3 + $0x398] sm:$0xff]
        %v1657 = vld [vmem:[#allocation3 + $0x3a0] sm:$0xff]
        %v1658 = vld [vmem:[#allocation3 + $0x3a8] sm:$0xff]
        %v1659 = vld [vmem:[#allocation3 + $0x3b0] sm:$0xff]
        %v1660 = vld [vmem:[#allocation3 + $0x3b8] sm:$0xff]
        %v1661 = vld [vmem:[#allocation3 + $0x3c0] sm:$0xff]
        %v1662 = vld [vmem:[#allocation3 + $0x3c8] sm:$0xff]
        %v1663 = vld [vmem:[#allocation3 + $0x3d0] sm:$0xff]
        %v1664 = vld [vmem:[#allocation3 + $0x3d8] sm:$0xff]
        %v1665 = vld [vmem:[#allocation3 + $0x3e0] sm:$0xff]
        %v1666 = vld [vmem:[#allocation3 + $0x3e8] sm:$0xff]
        %v1667 = vld [vmem:[#allocation3 + $0x3f0] sm:$0xff]
        %v1668 = vld [vmem:[#allocation3 + $0x3f8] sm:$0xff]
        %v1669 = vld [vmem:[#allocation3 + $0x400] sm:$0xff]
        %v1670 = vld [vmem:[#allocation3 + $0x408] sm:$0xff]
        %v1671 = vld [vmem:[#allocation3 + $0x410] sm:$0xff]
        %v1672 = vld [vmem:[#allocation3 + $0x418] sm:$0xff]
        %v1673 = vld [vmem:[#allocation3 + $0x420] sm:$0xff]
        %v1674 = vld [vmem:[#allocation3 + $0x428] sm:$0xff]
        %v1675 = vld [vmem:[#allocation3 + $0x430] sm:$0xff]
        %v1676 = vld [vmem:[#allocation3 + $0x438] sm:$0xff]
        %v1677 = vld [vmem:[#allocation3 + $0x440] sm:$0xff]
        %v1678 = vld [vmem:[#allocation3 + $0x448] sm:$0xff]
        %v1679 = vld [vmem:[#allocation3 + $0x450] sm:$0xff]
        %v1680 = vld [vmem:[#allocation3 + $0x458] sm:$0xff]
        %v1681 = vld [vmem:[#allocation3 + $0x460] sm:$0xff]
        %v1682 = vld [vmem:[#allocation3 + $0x468] sm:$0xff]
        %v1683 = vld [vmem:[#allocation3 + $0x470] sm:$0xff]
        %v1684 = vld [vmem:[#allocation3 + $0x478] sm:$0xff]
        %v1685 = vld [vmem:[#allocation9] sm:$0xf]
        %v1686 = vld [vmem:[#allocation9 + $0x4] sm:$0xf]
        %v1687 = vld [vmem:[#allocation9 + $0x8] sm:$0xf]
        %v1688 = vld [vmem:[#allocation9 + $0xc] sm:$0xf]
        %v1689 = vld [vmem:[#allocation9 + $0x10] sm:$0xf]
        %v1690 = vld [vmem:[#allocation9 + $0x14] sm:$0xf]
        %v1691 = vld [vmem:[#allocation9 + $0x18] sm:$0xf]
        %v1692 = vld [vmem:[#allocation9 + $0x1c] sm:$0xf]
        %v1693 = vld [vmem:[#allocation9 + $0x20] sm:$0xf]
        %v1694 = vld [vmem:[#allocation9 + $0x24] sm:$0xf]
        %v1695 = vld [vmem:[#allocation9 + $0x28] sm:$0xf]
        %v1696 = vld [vmem:[#allocation9 + $0x2c] sm:$0xf]
        %v1697 = vld [vmem:[#allocation9 + $0x30] sm:$0xf]
        %v1698 = vld [vmem:[#allocation9 + $0x34] sm:$0xf]
        %v1699 = vld [vmem:[#allocation9 + $0x38] sm:$0xf]
        %v1700 = vld [vmem:[#allocation9 + $0x3c] sm:$0xf]
        %v1701 = vld [vmem:[#allocation9 + $0x40] sm:$0xf]
        %v1702 = vld [vmem:[#allocation9 + $0x44] sm:$0xf]
        %v1703 = vld [vmem:[#allocation9 + $0x48] sm:$0xf]
        %v1704 = vld [vmem:[#allocation9 + $0x4c] sm:$0xf]
        %v1705 = vld [vmem:[#allocation9 + $0x50] sm:$0xf]
        %v1706 = vld [vmem:[#allocation9 + $0x54] sm:$0xf]
        %v1707 = vld [vmem:[#allocation9 + $0x58] sm:$0xf]
        %v1708 = vld [vmem:[#allocation9 + $0x5c] sm:$0xf]
        %v1709 = vld [vmem:[#allocation9 + $0x60] sm:$0xf]
        %v1710 = vld [vmem:[#allocation9 + $0x64] sm:$0xf]
        %v1711 = vld [vmem:[#allocation9 + $0x68] sm:$0xf]
        %v1712 = vld [vmem:[#allocation9 + $0x6c] sm:$0xf]
        %v1713 = vld [vmem:[#allocation9 + $0x70] sm:$0xf]
        %v1714 = vld [vmem:[#allocation9 + $0x74] sm:$0xf]
        %v1715 = vld [vmem:[#allocation9 + $0x78] sm:$0xf]
        %v1716 = vld [vmem:[#allocation9 + $0x7c] sm:$0xf]
        %v1717 = vld [vmem:[#allocation9 + $0x80] sm:$0xf]
        %v1718 = vld [vmem:[#allocation9 + $0x84] sm:$0xf]
        %v1719 = vld [vmem:[#allocation9 + $0x88] sm:$0xf]
        %v1720 = vld [vmem:[#allocation9 + $0x8c] sm:$0xf]
        %v1721 = vld [vmem:[#allocation9 + $0x90] sm:$0xf]
        %v1722 = vld [vmem:[#allocation9 + $0x94] sm:$0xf]
        %v1723 = vld [vmem:[#allocation9 + $0x98] sm:$0xf]
        %v1724 = vld [vmem:[#allocation9 + $0x9c] sm:$0xf]
        %v1725 = vld [vmem:[#allocation9 + $0xa0] sm:$0xf]
        %v1726 = vld [vmem:[#allocation9 + $0xa4] sm:$0xf]
        %v1727 = vld [vmem:[#allocation9 + $0xa8] sm:$0xf]
        %v1728 = vld [vmem:[#allocation9 + $0xac] sm:$0xf]
        %v1729 = vld [vmem:[#allocation9 + $0xb0] sm:$0xf]
        %v1730 = vld [vmem:[#allocation9 + $0xb4] sm:$0xf]
        %v1731 = vld [vmem:[#allocation9 + $0xb8] sm:$0xf]
        %v1732 = vld [vmem:[#allocation9 + $0xbc] sm:$0xf]
        %v1733 = vld [vmem:[#allocation9 + $0xc0] sm:$0xf]
        %v1734 = vld [vmem:[#allocation9 + $0xc4] sm:$0xf]
        %v1735 = vld [vmem:[#allocation9 + $0xc8] sm:$0xf]
        %v1736 = vld [vmem:[#allocation9 + $0xcc] sm:$0xf]
        %v1737 = vld [vmem:[#allocation9 + $0xd0] sm:$0xf]
        %v1738 = vld [vmem:[#allocation9 + $0xd4] sm:$0xf]
        %v1739 = vld [vmem:[#allocation9 + $0xd8] sm:$0xf]
        %v1740 = vld [vmem:[#allocation9 + $0xdc] sm:$0xf]
        %v1741 = vld [vmem:[#allocation9 + $0xe0] sm:$0xf]
        %v1742 = vld [vmem:[#allocation9 + $0xe4] sm:$0xf]
        %v1743 = vld [vmem:[#allocation9 + $0xe8] sm:$0xf]
        %v1744 = vld [vmem:[#allocation9 + $0xec] sm:$0xf]
        %v1745 = vld [vmem:[#allocation9 + $0xf0] sm:$0xf]
        %v1746 = vld [vmem:[#allocation9 + $0xf4] sm:$0xf]
        %v1747 = vld [vmem:[#allocation9 + $0xf8] sm:$0xf]
        %v1748 = vld [vmem:[#allocation9 + $0xfc] sm:$0xf]
        %v1749 = vld [vmem:[#allocation9 + $0x100] sm:$0xf]
        %v1750 = vld [vmem:[#allocation9 + $0x104] sm:$0xf]
        %v1751 = vld [vmem:[#allocation9 + $0x108] sm:$0xf]
        %v1752 = vld [vmem:[#allocation9 + $0x10c] sm:$0xf]
        %v1753 = vld [vmem:[#allocation9 + $0x110] sm:$0xf]
        %v1754 = vld [vmem:[#allocation9 + $0x114] sm:$0xf]
        %v1755 = vld [vmem:[#allocation9 + $0x118] sm:$0xf]
        %v1756 = vld [vmem:[#allocation9 + $0x11c] sm:$0xf]
        %v1757 = vld [vmem:[#allocation9 + $0x120] sm:$0xf]
        %v1758 = vld [vmem:[#allocation9 + $0x124] sm:$0xf]
        %v1759 = vld [vmem:[#allocation9 + $0x128] sm:$0xf]
        %v1760 = vld [vmem:[#allocation9 + $0x12c] sm:$0xf]
        %v1761 = vld [vmem:[#allocation9 + $0x130] sm:$0xf]
        %v1762 = vld [vmem:[#allocation9 + $0x134] sm:$0xf]
        %v1763 = vld [vmem:[#allocation9 + $0x138] sm:$0xf]
        %v1764 = vld [vmem:[#allocation9 + $0x13c] sm:$0xf]
        %v1765 = vld [vmem:[#allocation9 + $0x140] sm:$0xf]
        %v1766 = vld [vmem:[#allocation9 + $0x144] sm:$0xf]
        %v1767 = vld [vmem:[#allocation9 + $0x148] sm:$0xf]
        %v1768 = vld [vmem:[#allocation9 + $0x14c] sm:$0xf]
        %v1769 = vld [vmem:[#allocation9 + $0x150] sm:$0xf]
        %v1770 = vld [vmem:[#allocation9 + $0x154] sm:$0xf]
        %v1771 = vld [vmem:[#allocation9 + $0x158] sm:$0xf]
        %v1772 = vld [vmem:[#allocation9 + $0x15c] sm:$0xf]
        %v1773 = vld [vmem:[#allocation9 + $0x160] sm:$0xf]
        %v1774 = vld [vmem:[#allocation9 + $0x164] sm:$0xf]
        %v1775 = vld [vmem:[#allocation9 + $0x168] sm:$0xf]
        %v1776 = vld [vmem:[#allocation9 + $0x16c] sm:$0xf]
        %v1777 = vld [vmem:[#allocation9 + $0x170] sm:$0xf]
        %v1778 = vld [vmem:[#allocation9 + $0x174] sm:$0xf]
        %v1779 = vld [vmem:[#allocation9 + $0x178] sm:$0xf]
        %v1780 = vld [vmem:[#allocation9 + $0x17c] sm:$0xf]
        %v1781 = vld [vmem:[#allocation9 + $0x180] sm:$0xf]
        %v1782 = vld [vmem:[#allocation9 + $0x184] sm:$0xf]
        %v1783 = vld [vmem:[#allocation9 + $0x188] sm:$0xf]
        %v1784 = vld [vmem:[#allocation9 + $0x18c] sm:$0xf]
        %v1785 = vld [vmem:[#allocation9 + $0x190] sm:$0xf]
        %v1786 = vld [vmem:[#allocation9 + $0x194] sm:$0xf]
        %v1787 = vld [vmem:[#allocation9 + $0x198] sm:$0xf]
        %v1788 = vld [vmem:[#allocation9 + $0x19c] sm:$0xf]
        %v1789 = vld [vmem:[#allocation9 + $0x1a0] sm:$0xf]
        %v1790 = vld [vmem:[#allocation9 + $0x1a4] sm:$0xf]
        %v1791 = vld [vmem:[#allocation9 + $0x1a8] sm:$0xf]
        %v1792 = vld [vmem:[#allocation9 + $0x1ac] sm:$0xf]
        %v1793 = vld [vmem:[#allocation9 + $0x1b0] sm:$0xf]
        %v1794 = vld [vmem:[#allocation9 + $0x1b4] sm:$0xf]
        %v1795 = vld [vmem:[#allocation9 + $0x1b8] sm:$0xf]
        %v1796 = vld [vmem:[#allocation9 + $0x1bc] sm:$0xf]
        %v1797 = vld [vmem:[#allocation9 + $0x1c0] sm:$0xf]
        %v1798 = vld [vmem:[#allocation9 + $0x1c4] sm:$0xf]
        %v1799 = vld [vmem:[#allocation9 + $0x1c8] sm:$0xf]
        %v1800 = vld [vmem:[#allocation9 + $0x1cc] sm:$0xf]
        %v1801 = vld [vmem:[#allocation9 + $0x1d0] sm:$0xf]
        %v1802 = vld [vmem:[#allocation9 + $0x1d4] sm:$0xf]
        %v1803 = vld [vmem:[#allocation9 + $0x1d8] sm:$0xf]
        %v1804 = vld [vmem:[#allocation9 + $0x1dc] sm:$0xf]
        %v1805 = vld [vmem:[#allocation9 + $0x1e0] sm:$0xf]
        %v1806 = vld [vmem:[#allocation9 + $0x1e4] sm:$0xf]
        %v1807 = vld [vmem:[#allocation9 + $0x1e8] sm:$0xf]
        %v1808 = vld [vmem:[#allocation9 + $0x1ec] sm:$0xf]
        %v1809 = vld [vmem:[#allocation9 + $0x1f0] sm:$0xf]
        %v1810 = vld [vmem:[#allocation9 + $0x1f4] sm:$0xf]
        %v1811 = vld [vmem:[#allocation9 + $0x1f8] sm:$0xf]
        %v1812 = vld [vmem:[#allocation9 + $0x1fc] sm:$0xf]
        %v1813 = vld [vmem:[#allocation9 + $0x200] sm:$0xf]
        %v1814 = vld [vmem:[#allocation9 + $0x204] sm:$0xf]
        %v1815 = vld [vmem:[#allocation9 + $0x208] sm:$0xf]
        %v1816 = vld [vmem:[#allocation9 + $0x20c] sm:$0xf]
        %v1817 = vld [vmem:[#allocation9 + $0x210] sm:$0xf]
        %v1818 = vld [vmem:[#allocation9 + $0x214] sm:$0xf]
        %v1819 = vld [vmem:[#allocation9 + $0x218] sm:$0xf]
        %v1820 = vld [vmem:[#allocation9 + $0x21c] sm:$0xf]
        %v1821 = vld [vmem:[#allocation9 + $0x220] sm:$0xf]
        %v1822 = vld [vmem:[#allocation9 + $0x224] sm:$0xf]
        %v1823 = vld [vmem:[#allocation9 + $0x228] sm:$0xf]
        %v1824 = vld [vmem:[#allocation9 + $0x22c] sm:$0xf]
        %v1825 = vld [vmem:[#allocation9 + $0x230] sm:$0xf]
        %v1826 = vld [vmem:[#allocation9 + $0x234] sm:$0xf]
        %v1827 = vld [vmem:[#allocation9 + $0x238] sm:$0xf]
        %v1828 = vld [vmem:[#allocation9 + $0x23c] sm:$0xf]
        %v1973 = vunpack.c.l.b16 %v1685
        %v1974 = vunpack.c.l.b16 %v1686
        %v1975 = vunpack.c.l.b16 %v1687
        %v1976 = vunpack.c.l.b16 %v1688
        %v1977 = vunpack.c.l.b16 %v1689
        %v1978 = vunpack.c.l.b16 %v1690
        %v1979 = vunpack.c.l.b16 %v1691
        %v1980 = vunpack.c.l.b16 %v1692
        %v1981 = vunpack.c.l.b16 %v1693
        %v1982 = vunpack.c.l.b16 %v1694
        %v1983 = vunpack.c.l.b16 %v1695
        %v1984 = vunpack.c.l.b16 %v1696
        %v1985 = vunpack.c.l.b16 %v1697
        %v1986 = vunpack.c.l.b16 %v1698
        %v1987 = vunpack.c.l.b16 %v1699
        %v1988 = vunpack.c.l.b16 %v1700
        %v1989 = vunpack.c.l.b16 %v1701
        %v1990 = vunpack.c.l.b16 %v1702
        %v1991 = vunpack.c.l.b16 %v1703
        %v1992 = vunpack.c.l.b16 %v1704
        %v1993 = vunpack.c.l.b16 %v1705
        %v1994 = vunpack.c.l.b16 %v1706
        %v1995 = vunpack.c.l.b16 %v1707
        %v1996 = vunpack.c.l.b16 %v1708
        %v1997 = vunpack.c.l.b16 %v1709
        %v1998 = vunpack.c.l.b16 %v1710
        %v1999 = vunpack.c.l.b16 %v1711
        %v2000 = vunpack.c.l.b16 %v1712
        %v2001 = vunpack.c.l.b16 %v1713
        %v2002 = vunpack.c.l.b16 %v1714
        %v2003 = vunpack.c.l.b16 %v1715
        %v2004 = vunpack.c.l.b16 %v1716
        %v2005 = vunpack.c.l.b16 %v1717
        %v2006 = vunpack.c.l.b16 %v1718
        %v2007 = vunpack.c.l.b16 %v1719
        %v2008 = vunpack.c.l.b16 %v1720
        %v2009 = vunpack.c.l.b16 %v1721
        %v2010 = vunpack.c.l.b16 %v1722
        %v2011 = vunpack.c.l.b16 %v1723
        %v2012 = vunpack.c.l.b16 %v1724
        %v2013 = vunpack.c.l.b16 %v1725
        %v2014 = vunpack.c.l.b16 %v1726
        %v2015 = vunpack.c.l.b16 %v1727
        %v2016 = vunpack.c.l.b16 %v1728
        %v2017 = vunpack.c.l.b16 %v1729
        %v2018 = vunpack.c.l.b16 %v1730
        %v2019 = vunpack.c.l.b16 %v1731
        %v2020 = vunpack.c.l.b16 %v1732
        %v2021 = vunpack.c.l.b16 %v1733
        %v2022 = vunpack.c.l.b16 %v1734
        %v2023 = vunpack.c.l.b16 %v1735
        %v2024 = vunpack.c.l.b16 %v1736
        %v2025 = vunpack.c.l.b16 %v1737
        %v2026 = vunpack.c.l.b16 %v1738
        %v2027 = vunpack.c.l.b16 %v1739
        %v2028 = vunpack.c.l.b16 %v1740
        %v2029 = vunpack.c.l.b16 %v1741
        %v2030 = vunpack.c.l.b16 %v1742
        %v2031 = vunpack.c.l.b16 %v1743
        %v2032 = vunpack.c.l.b16 %v1744
        %v2033 = vunpack.c.l.b16 %v1745
        %v2034 = vunpack.c.l.b16 %v1746
        %v2035 = vunpack.c.l.b16 %v1747
        %v2036 = vunpack.c.l.b16 %v1748
        %v2037 = vunpack.c.l.b16 %v1749
        %v2038 = vunpack.c.l.b16 %v1750
        %v2039 = vunpack.c.l.b16 %v1751
        %v2040 = vunpack.c.l.b16 %v1752
        %v2041 = vunpack.c.l.b16 %v1753
        %v2042 = vunpack.c.l.b16 %v1754
        %v2043 = vunpack.c.l.b16 %v1755
        %v2044 = vunpack.c.l.b16 %v1756
        %v2045 = vunpack.c.l.b16 %v1757
        %v2046 = vunpack.c.l.b16 %v1758
        %v2047 = vunpack.c.l.b16 %v1759
        %v2048 = vunpack.c.l.b16 %v1760
        %v2049 = vunpack.c.l.b16 %v1761
        %v2050 = vunpack.c.l.b16 %v1762
        %v2051 = vunpack.c.l.b16 %v1763
        %v2052 = vunpack.c.l.b16 %v1764
        %v2053 = vunpack.c.l.b16 %v1765
        %v2054 = vunpack.c.l.b16 %v1766
        %v2055 = vunpack.c.l.b16 %v1767
        %v2056 = vunpack.c.l.b16 %v1768
        %v2057 = vunpack.c.l.b16 %v1769
        %v2058 = vunpack.c.l.b16 %v1770
        %v2059 = vunpack.c.l.b16 %v1771
        %v2060 = vunpack.c.l.b16 %v1772
        %v2061 = vunpack.c.l.b16 %v1773
        %v2062 = vunpack.c.l.b16 %v1774
        %v2063 = vunpack.c.l.b16 %v1775
        %v2064 = vunpack.c.l.b16 %v1776
        %v2065 = vunpack.c.l.b16 %v1777
        %v2066 = vunpack.c.l.b16 %v1778
        %v2067 = vunpack.c.l.b16 %v1779
        %v2068 = vunpack.c.l.b16 %v1780
        %v2069 = vunpack.c.l.b16 %v1781
        %v2070 = vunpack.c.l.b16 %v1782
        %v2071 = vunpack.c.l.b16 %v1783
        %v2072 = vunpack.c.l.b16 %v1784
        %v2073 = vunpack.c.l.b16 %v1785
        %v2074 = vunpack.c.l.b16 %v1786
        %v2075 = vunpack.c.l.b16 %v1787
        %v2076 = vunpack.c.l.b16 %v1788
        %v2077 = vunpack.c.l.b16 %v1789
        %v2078 = vunpack.c.l.b16 %v1790
        %v2079 = vunpack.c.l.b16 %v1791
        %v2080 = vunpack.c.l.b16 %v1792
        %v2081 = vunpack.c.l.b16 %v1793
        %v2082 = vunpack.c.l.b16 %v1794
        %v2083 = vunpack.c.l.b16 %v1795
        %v2084 = vunpack.c.l.b16 %v1796
        %v2085 = vunpack.c.l.b16 %v1797
        %v2086 = vunpack.c.l.b16 %v1798
        %v2087 = vunpack.c.l.b16 %v1799
        %v2088 = vunpack.c.l.b16 %v1800
        %v2089 = vunpack.c.l.b16 %v1801
        %v2090 = vunpack.c.l.b16 %v1802
        %v2091 = vunpack.c.l.b16 %v1803
        %v2092 = vunpack.c.l.b16 %v1804
        %v2093 = vunpack.c.l.b16 %v1805
        %v2094 = vunpack.c.l.b16 %v1806
        %v2095 = vunpack.c.l.b16 %v1807
        %v2096 = vunpack.c.l.b16 %v1808
        %v2097 = vunpack.c.l.b16 %v1809
        %v2098 = vunpack.c.l.b16 %v1810
        %v2099 = vunpack.c.l.b16 %v1811
        %v2100 = vunpack.c.l.b16 %v1812
        %v2101 = vunpack.c.l.b16 %v1813
        %v2102 = vunpack.c.l.b16 %v1814
        %v2103 = vunpack.c.l.b16 %v1815
        %v2104 = vunpack.c.l.b16 %v1816
        %v2105 = vunpack.c.l.b16 %v1817
        %v2106 = vunpack.c.l.b16 %v1818
        %v2107 = vunpack.c.l.b16 %v1819
        %v2108 = vunpack.c.l.b16 %v1820
        %v2109 = vunpack.c.l.b16 %v1821
        %v2110 = vunpack.c.l.b16 %v1822
        %v2111 = vunpack.c.l.b16 %v1823
        %v2112 = vunpack.c.l.b16 %v1824
        %v2113 = vunpack.c.l.b16 %v1825
        %v2114 = vunpack.c.l.b16 %v1826
        %v2115 = vunpack.c.l.b16 %v1827
        %v2116 = vunpack.c.l.b16 %v1828
        %v2117 = vpack.c.b16 %v1974, %v1973
        %v2118 = vpack.c.b16 %v1976, %v1975
        %v2119 = vpack.c.b16 %v1978, %v1977
        %v2120 = vpack.c.b16 %v1980, %v1979
        %v2121 = vpack.c.b16 %v1982, %v1981
        %v2122 = vpack.c.b16 %v1984, %v1983
        %v2123 = vpack.c.b16 %v1986, %v1985
        %v2124 = vpack.c.b16 %v1988, %v1987
        %v2125 = vpack.c.b16 %v1990, %v1989
        %v2126 = vpack.c.b16 %v1992, %v1991
        %v2127 = vpack.c.b16 %v1994, %v1993
        %v2128 = vpack.c.b16 %v1996, %v1995
        %v2129 = vpack.c.b16 %v1998, %v1997
        %v2130 = vpack.c.b16 %v2000, %v1999
        %v2131 = vpack.c.b16 %v2002, %v2001
        %v2132 = vpack.c.b16 %v2004, %v2003
        %v2133 = vpack.c.b16 %v2006, %v2005
        %v2134 = vpack.c.b16 %v2008, %v2007
        %v2135 = vpack.c.b16 %v2010, %v2009
        %v2136 = vpack.c.b16 %v2012, %v2011
        %v2137 = vpack.c.b16 %v2014, %v2013
        %v2138 = vpack.c.b16 %v2016, %v2015
        %v2139 = vpack.c.b16 %v2018, %v2017
        %v2140 = vpack.c.b16 %v2020, %v2019
        %v2141 = vpack.c.b16 %v2022, %v2021
        %v2142 = vpack.c.b16 %v2024, %v2023
        %v2143 = vpack.c.b16 %v2026, %v2025
        %v2144 = vpack.c.b16 %v2028, %v2027
        %v2145 = vpack.c.b16 %v2030, %v2029
        %v2146 = vpack.c.b16 %v2032, %v2031
        %v2147 = vpack.c.b16 %v2034, %v2033
        %v2148 = vpack.c.b16 %v2036, %v2035
        %v2149 = vpack.c.b16 %v2038, %v2037
        %v2150 = vpack.c.b16 %v2040, %v2039
        %v2151 = vpack.c.b16 %v2042, %v2041
        %v2152 = vpack.c.b16 %v2044, %v2043
        %v2153 = vpack.c.b16 %v2046, %v2045
        %v2154 = vpack.c.b16 %v2048, %v2047
        %v2155 = vpack.c.b16 %v2050, %v2049
        %v2156 = vpack.c.b16 %v2052, %v2051
        %v2157 = vpack.c.b16 %v2054, %v2053
        %v2158 = vpack.c.b16 %v2056, %v2055
        %v2159 = vpack.c.b16 %v2058, %v2057
        %v2160 = vpack.c.b16 %v2060, %v2059
        %v2161 = vpack.c.b16 %v2062, %v2061
        %v2162 = vpack.c.b16 %v2064, %v2063
        %v2163 = vpack.c.b16 %v2066, %v2065
        %v2164 = vpack.c.b16 %v2068, %v2067
        %v2165 = vpack.c.b16 %v2070, %v2069
        %v2166 = vpack.c.b16 %v2072, %v2071
        %v2167 = vpack.c.b16 %v2074, %v2073
        %v2168 = vpack.c.b16 %v2076, %v2075
        %v2169 = vpack.c.b16 %v2078, %v2077
        %v2170 = vpack.c.b16 %v2080, %v2079
        %v2171 = vpack.c.b16 %v2082, %v2081
        %v2172 = vpack.c.b16 %v2084, %v2083
        %v2173 = vpack.c.b16 %v2086, %v2085
        %v2174 = vpack.c.b16 %v2088, %v2087
        %v2175 = vpack.c.b16 %v2090, %v2089
        %v2176 = vpack.c.b16 %v2092, %v2091
        %v2177 = vpack.c.b16 %v2094, %v2093
        %v2178 = vpack.c.b16 %v2096, %v2095
        %v2179 = vpack.c.b16 %v2098, %v2097
        %v2180 = vpack.c.b16 %v2100, %v2099
        %v2181 = vpack.c.b16 %v2102, %v2101
        %v2182 = vpack.c.b16 %v2104, %v2103
        %v2183 = vpack.c.b16 %v2106, %v2105
        %v2184 = vpack.c.b16 %v2108, %v2107
        %v2185 = vpack.c.b16 %v2110, %v2109
        %v2186 = vpack.c.b16 %v2112, %v2111
        %v2187 = vpack.c.b16 %v2114, %v2113
        %v2188 = vpack.c.b16 %v2116, %v2115
        %2261 = vmatprep.subr.bf16.mxu0 0
        %2262 = vmatpush1.bf16.msra.mxu0 %v2117
        %2263 = vmatprep.subr.bf16.mxu0 0
        %2264 = vmatpush1.bf16.msra.mxu0 %v2118
        %2265 = vmatprep.subr.bf16.mxu0 0
        %2266 = vmatpush1.bf16.msra.mxu0 %v2119
        %2267 = vmatprep.subr.bf16.mxu0 0
        %2268 = vmatpush1.bf16.msra.mxu0 %v2120
        %2269 = vmatprep.subr.bf16.mxu0 0
        %2270 = vmatpush1.bf16.msra.mxu0 %v2121
        %2271 = vmatprep.subr.bf16.mxu0 0
        %2272 = vmatpush1.bf16.msra.mxu0 %v2122
        %2273 = vmatprep.subr.bf16.mxu0 0
        %2274 = vmatpush1.bf16.msra.mxu0 %v2123
        %2275 = vmatprep.subr.bf16.mxu0 0
        %2276 = vmatpush1.bf16.msra.mxu0 %v2124
        %2277 = vmatprep.subr.bf16.mxu0 0
        %2278 = vmatpush1.bf16.msra.mxu0 %v2125
        %2279 = vmatprep.subr.bf16.mxu0 0
        %2280 = vmatpush1.bf16.msra.mxu0 %v2126
        %2281 = vmatprep.subr.bf16.mxu0 0
        %2282 = vmatpush1.bf16.msra.mxu0 %v2127
        %2283 = vmatprep.subr.bf16.mxu0 0
        %2284 = vmatpush1.bf16.msra.mxu0 %v2128
        %2285 = vmatprep.subr.bf16.mxu0 0
        %2286 = vmatpush1.bf16.msra.mxu0 %v2129
        %2287 = vmatprep.subr.bf16.mxu0 0
        %2288 = vmatpush1.bf16.msra.mxu0 %v2130
        %2289 = vmatprep.subr.bf16.mxu0 0
        %2290 = vmatpush1.bf16.msra.mxu0 %v2131
        %2291 = vmatprep.subr.bf16.mxu0 0
        %2292 = vmatpush1.bf16.msra.mxu0 %v2132
        %2293 = vmatprep.mubr.bf16.mxu0 %v1542
        %2294 = vmatmul.mubr.bf16.gmra.mrb[0].mxu0 %v1541
        %v2295 = vpop.f32.mrb[0].mxu0
        %v2296 = vadd.f32 0.0, %v2295
        %v2297 = vpop.f32.mrb[0].mxu0
        %v2298 = vpop.f32.mrb[0].mxu0
        %v2299 = vadd.f32 0.0, %v2298
        %v2300 = vpop.f32.mrb[0].mxu0
        %2301 = vmatprep.mubr.bf16.mxu0 %v1551
        %2302 = vmatmul.mubr.bf16.gmra.mrb[0].mxu0 %v1550
        %v2303 = vpop.f32.mrb[0].mxu0
        %v2304 = vadd.f32 0.0, %v2303
        %v2305 = vpop.f32.mrb[0].mxu0
        %v2306 = vpop.f32.mrb[0].mxu0
        %v2307 = vadd.f32 0.0, %v2306
        %v2308 = vpop.f32.mrb[0].mxu0
        %2309 = vmatprep.mubr.bf16.mxu0 %v1560
        %2310 = vmatmul.mubr.bf16.gmra.mrb[0].mxu0 %v1559
        %v2311 = vpop.f32.mrb[0].mxu0
        %v2312 = vadd.f32 0.0, %v2311
        %v2313 = vpop.f32.mrb[0].mxu0
        %v2314 = vpop.f32.mrb[0].mxu0
        %v2315 = vadd.f32 0.0, %v2314
        %v2316 = vpop.f32.mrb[0].mxu0
        %2317 = vmatprep.mubr.bf16.mxu0 %v1569
        %2318 = vmatmul.mubr.bf16.gmra.mrb[0].mxu0 %v1568
        %v2319 = vpop.f32.mrb[0].mxu0
        %v2320 = vadd.f32 0.0, %v2319
        %v2321 = vpop.f32.mrb[0].mxu0
        %v2322 = vpop.f32.mrb[0].mxu0
        %v2323 = vadd.f32 0.0, %v2322
        %v2324 = vpop.f32.mrb[0].mxu0
        %2325 = vmatprep.mubr.bf16.mxu0 %v1578
        %2326 = vmatmul.mubr.bf16.gmra.mrb[0].mxu0 %v1577
        %v2327 = vpop.f32.mrb[0].mxu0
        %v2328 = vadd.f32 0.0, %v2327
        %v2329 = vpop.f32.mrb[0].mxu0
        %v2330 = vpop.f32.mrb[0].mxu0
        %v2331 = vadd.f32 0.0, %v2330
        %v2332 = vpop.f32.mrb[0].mxu0
        %2333 = vmatprep.mubr.bf16.mxu0 %v1587
        %2334 = vmatmul.mubr.bf16.gmra.mrb[0].mxu0 %v1586
        %v2335 = vpop.f32.mrb[0].mxu0
        %v2336 = vadd.f32 0.0, %v2335
        %v2337 = vpop.f32.mrb[0].mxu0
        %v2338 = vpop.f32.mrb[0].mxu0
        %v2339 = vadd.f32 0.0, %v2338
        %v2340 = vpop.f32.mrb[0].mxu0
        %2341 = vmatprep.mubr.bf16.mxu0 %v1596
        %2342 = vmatmul.mubr.bf16.gmra.mrb[0].mxu0 %v1595
        %v2343 = vpop.f32.mrb[0].mxu0
        %v2344 = vadd.f32 0.0, %v2343
        %v2345 = vpop.f32.mrb[0].mxu0
        %v2346 = vpop.f32.mrb[0].mxu0
        %v2347 = vadd.f32 0.0, %v2346
        %v2348 = vpop.f32.mrb[0].mxu0
        %2349 = vmatprep.mubr.bf16.mxu0 %v1605
        %2350 = vmatmul.mubr.bf16.gmra.mrb[0].mxu0 %v1604
        %v2351 = vpop.f32.mrb[0].mxu0
        %v2352 = vadd.f32 0.0, %v2351
        %v2353 = vpop.f32.mrb[0].mxu0
        %v2354 = vpop.f32.mrb[0].mxu0
        %v2355 = vadd.f32 0.0, %v2354
        %v2356 = vpop.f32.mrb[0].mxu0
        %2357 = vmatprep.mubr.bf16.mxu0 %v1614
        %2358 = vmatmul.mubr.bf16.gmra.mrb[0].mxu0 %v1613
        %v2359 = vpop.f32.mrb[0].mxu0
        %v2360 = vadd.f32 0.0, %v2359
        %v2361 = vpop.f32.mrb[0].mxu0
        %v2362 = vpop.f32.mrb[0].mxu0
        %v2363 = vadd.f32 0.0, %v2362
        %v2364 = vpop.f32.mrb[0].mxu0
        %2365 = vmatprep.mubr.bf16.mxu0 %v1623
        %2366 = vmatmul.mubr.bf16.gmra.mrb[0].mxu0 %v1622
        %v2367 = vpop.f32.mrb[0].mxu0
        %v2368 = vadd.f32 0.0, %v2367
        %v2369 = vpop.f32.mrb[0].mxu0
        %v2370 = vpop.f32.mrb[0].mxu0
        %v2371 = vadd.f32 0.0, %v2370
        %v2372 = vpop.f32.mrb[0].mxu0
        %2373 = vmatprep.mubr.bf16.mxu0 %v1632
        %2374 = vmatmul.mubr.bf16.gmra.mrb[0].mxu0 %v1631
        %v2375 = vpop.f32.mrb[0].mxu0
        %v2376 = vadd.f32 0.0, %v2375
        %v2377 = vpop.f32.mrb[0].mxu0
        %v2378 = vpop.f32.mrb[0].mxu0
        %v2379 = vadd.f32 0.0, %v2378
        %v2380 = vpop.f32.mrb[0].mxu0
        %2381 = vmatprep.mubr.bf16.mxu0 %v1641
        %2382 = vmatmul.mubr.bf16.gmra.mrb[0].mxu0 %v1640
        %v2383 = vpop.f32.mrb[0].mxu0
        %v2384 = vadd.f32 0.0, %v2383
        %v2385 = vpop.f32.mrb[0].mxu0
        %v2386 = vpop.f32.mrb[0].mxu0
        %v2387 = vadd.f32 0.0, %v2386
        %v2388 = vpop.f32.mrb[0].mxu0
        %2389 = vmatprep.mubr.bf16.mxu0 %v1650
        %2390 = vmatmul.mubr.bf16.gmra.mrb[0].mxu0 %v1649
        %v2391 = vpop.f32.mrb[0].mxu0
        %v2392 = vadd.f32 0.0, %v2391
        %v2393 = vpop.f32.mrb[0].mxu0
        %v2394 = vpop.f32.mrb[0].mxu0
        %v2395 = vadd.f32 0.0, %v2394
        %v2396 = vpop.f32.mrb[0].mxu0
        %2397 = vmatprep.mubr.bf16.mxu0 %v1659
        %2398 = vmatmul.mubr.bf16.gmra.mrb[0].mxu0 %v1658
        %v2399 = vpop.f32.mrb[0].mxu0
        %v2400 = vadd.f32 0.0, %v2399
        %v2401 = vpop.f32.mrb[0].mxu0
        %v2402 = vpop.f32.mrb[0].mxu0
        %v2403 = vadd.f32 0.0, %v2402
        %v2404 = vpop.f32.mrb[0].mxu0
        %2405 = vmatprep.mubr.bf16.mxu0 %v1668
        %2406 = vmatmul.mubr.bf16.gmra.mrb[0].mxu0 %v1667
        %v2407 = vpop.f32.mrb[0].mxu0
        %v2408 = vadd.f32 0.0, %v2407
        %v2409 = vpop.f32.mrb[0].mxu0
        %v2410 = vpop.f32.mrb[0].mxu0
        %v2411 = vadd.f32 0.0, %v2410
        %v2412 = vpop.f32.mrb[0].mxu0
        %2413 = vmatprep.mubr.bf16.mxu0 %v1677
        %2414 = vmatmul.mubr.bf16.gmra.mrb[0].mxu0 %v1676
        %v2415 = vpop.f32.mrb[0].mxu0
        %v2416 = vadd.f32 0.0, %v2415
        %v2417 = vpop.f32.mrb[0].mxu0
        %v2418 = vpop.f32.mrb[0].mxu0
        %v2419 = vadd.f32 0.0, %v2418
        %v2420 = vpop.f32.mrb[0].mxu0
        %2421 = vdwg.mxu0
        %2422 = vmatprep.subr.bf16.mxu0 0
        %2423 = vmatpush1.bf16.msra.mxu0 %v2133
        %2424 = vmatprep.subr.bf16.mxu0 0
        %2425 = vmatpush1.bf16.msra.mxu0 %v2134
        %2426 = vmatprep.subr.bf16.mxu0 0
        %2427 = vmatpush1.bf16.msra.mxu0 %v2135
        %2428 = vmatprep.subr.bf16.mxu0 0
        %2429 = vmatpush1.bf16.msra.mxu0 %v2136
        %2430 = vmatprep.subr.bf16.mxu0 0
        %2431 = vmatpush1.bf16.msra.mxu0 %v2137
        %2432 = vmatprep.subr.bf16.mxu0 0
        %2433 = vmatpush1.bf16.msra.mxu0 %v2138
        %2434 = vmatprep.subr.bf16.mxu0 0
        %2435 = vmatpush1.bf16.msra.mxu0 %v2139
        %2436 = vmatprep.subr.bf16.mxu0 0
        %2437 = vmatpush1.bf16.msra.mxu0 %v2140
        %2438 = vmatprep.subr.bf16.mxu0 0
        %2439 = vmatpush1.bf16.msra.mxu0 %v2141
        %2440 = vmatprep.subr.bf16.mxu0 0
        %2441 = vmatpush1.bf16.msra.mxu0 %v2142
        %2442 = vmatprep.subr.bf16.mxu0 0
        %2443 = vmatpush1.bf16.msra.mxu0 %v2143
        %2444 = vmatprep.subr.bf16.mxu0 0
        %2445 = vmatpush1.bf16.msra.mxu0 %v2144
        %2446 = vmatprep.subr.bf16.mxu0 0
        %2447 = vmatpush1.bf16.msra.mxu0 %v2145
        %2448 = vmatprep.subr.bf16.mxu0 0
        %2449 = vmatpush1.bf16.msra.mxu0 %v2146
        %2450 = vmatprep.subr.bf16.mxu0 0
        %2451 = vmatpush1.bf16.msra.mxu0 %v2147
        %2452 = vmatprep.subr.bf16.mxu0 0
        %2453 = vmatpush1.bf16.msra.mxu0 %v2148
        %2454 = vmatprep.mubr.bf16.mxu0 %v1544
        %2455 = vmatmul.mubr.bf16.gmra.mrb[0].mxu0 %v1543
        %v2456 = vpop.f32.mrb[0].mxu0
        %v2457 = vadd.f32 %v2296, %v2456
        %v2458 = vpop.f32.mrb[0].mxu0
        %v2459 = vpop.f32.mrb[0].mxu0
        %v2460 = vadd.f32 %v2299, %v2459
        %v2461 = vpop.f32.mrb[0].mxu0
        %2462 = vmatprep.mubr.bf16.mxu0 %v1553
        %2463 = vmatmul.mubr.bf16.gmra.mrb[0].mxu0 %v1552
        %v2464 = vpop.f32.mrb[0].mxu0
        %v2465 = vadd.f32 %v2304, %v2464
        %v2466 = vpop.f32.mrb[0].mxu0
        %v2467 = vpop.f32.mrb[0].mxu0
        %v2468 = vadd.f32 %v2307, %v2467
        %v2469 = vpop.f32.mrb[0].mxu0
        %2470 = vmatprep.mubr.bf16.mxu0 %v1562
        %2471 = vmatmul.mubr.bf16.gmra.mrb[0].mxu0 %v1561
        %v2472 = vpop.f32.mrb[0].mxu0
        %v2473 = vadd.f32 %v2312, %v2472
        %v2474 = vpop.f32.mrb[0].mxu0
        %v2475 = vpop.f32.mrb[0].mxu0
        %v2476 = vadd.f32 %v2315, %v2475
        %v2477 = vpop.f32.mrb[0].mxu0
        %2478 = vmatprep.mubr.bf16.mxu0 %v1571
        %2479 = vmatmul.mubr.bf16.gmra.mrb[0].mxu0 %v1570
        %v2480 = vpop.f32.mrb[0].mxu0
        %v2481 = vadd.f32 %v2320, %v2480
        %v2482 = vpop.f32.mrb[0].mxu0
        %v2483 = vpop.f32.mrb[0].mxu0
        %v2484 = vadd.f32 %v2323, %v2483
        %v2485 = vpop.f32.mrb[0].mxu0
        %2486 = vmatprep.mubr.bf16.mxu0 %v1580
        %2487 = vmatmul.mubr.bf16.gmra.mrb[0].mxu0 %v1579
        %v2488 = vpop.f32.mrb[0].mxu0
        %v2489 = vadd.f32 %v2328, %v2488
        %v2490 = vpop.f32.mrb[0].mxu0
        %v2491 = vpop.f32.mrb[0].mxu0
        %v2492 = vadd.f32 %v2331, %v2491
        %v2493 = vpop.f32.mrb[0].mxu0
        %2494 = vmatprep.mubr.bf16.mxu0 %v1589
        %2495 = vmatmul.mubr.bf16.gmra.mrb[0].mxu0 %v1588
        %v2496 = vpop.f32.mrb[0].mxu0
        %v2497 = vadd.f32 %v2336, %v2496
        %v2498 = vpop.f32.mrb[0].mxu0
        %v2499 = vpop.f32.mrb[0].mxu0
        %v2500 = vadd.f32 %v2339, %v2499
        %v2501 = vpop.f32.mrb[0].mxu0
        %2502 = vmatprep.mubr.bf16.mxu0 %v1598
        %2503 = vmatmul.mubr.bf16.gmra.mrb[0].mxu0 %v1597
        %v2504 = vpop.f32.mrb[0].mxu0
        %v2505 = vadd.f32 %v2344, %v2504
        %v2506 = vpop.f32.mrb[0].mxu0
        %v2507 = vpop.f32.mrb[0].mxu0
        %v2508 = vadd.f32 %v2347, %v2507
        %v2509 = vpop.f32.mrb[0].mxu0
        %2510 = vmatprep.mubr.bf16.mxu0 %v1607
        %2511 = vmatmul.mubr.bf16.gmra.mrb[0].mxu0 %v1606
        %v2512 = vpop.f32.mrb[0].mxu0
        %v2513 = vadd.f32 %v2352, %v2512
        %v2514 = vpop.f32.mrb[0].mxu0
        %v2515 = vpop.f32.mrb[0].mxu0
        %v2516 = vadd.f32 %v2355, %v2515
        %v2517 = vpop.f32.mrb[0].mxu0
        %2518 = vmatprep.mubr.bf16.mxu0 %v1616
        %2519 = vmatmul.mubr.bf16.gmra.mrb[0].mxu0 %v1615
        %v2520 = vpop.f32.mrb[0].mxu0
        %v2521 = vadd.f32 %v2360, %v2520
        %v2522 = vpop.f32.mrb[0].mxu0
        %v2523 = vpop.f32.mrb[0].mxu0
        %v2524 = vadd.f32 %v2363, %v2523
        %v2525 = vpop.f32.mrb[0].mxu0
        %2526 = vmatprep.mubr.bf16.mxu0 %v1625
        %2527 = vmatmul.mubr.bf16.gmra.mrb[0].mxu0 %v1624
        %v2528 = vpop.f32.mrb[0].mxu0
        %v2529 = vadd.f32 %v2368, %v2528
        %v2530 = vpop.f32.mrb[0].mxu0
        %v2531 = vpop.f32.mrb[0].mxu0
        %v2532 = vadd.f32 %v2371, %v2531
        %v2533 = vpop.f32.mrb[0].mxu0
        %2534 = vmatprep.mubr.bf16.mxu0 %v1634
        %2535 = vmatmul.mubr.bf16.gmra.mrb[0].mxu0 %v1633
        %v2536 = vpop.f32.mrb[0].mxu0
        %v2537 = vadd.f32 %v2376, %v2536
        %v2538 = vpop.f32.mrb[0].mxu0
        %v2539 = vpop.f32.mrb[0].mxu0
        %v2540 = vadd.f32 %v2379, %v2539
        %v2541 = vpop.f32.mrb[0].mxu0
        %2542 = vmatprep.mubr.bf16.mxu0 %v1643
        %2543 = vmatmul.mubr.bf16.gmra.mrb[0].mxu0 %v1642
        %v2544 = vpop.f32.mrb[0].mxu0
        %v2545 = vadd.f32 %v2384, %v2544
        %v2546 = vpop.f32.mrb[0].mxu0
        %v2547 = vpop.f32.mrb[0].mxu0
        %v2548 = vadd.f32 %v2387, %v2547
        %v2549 = vpop.f32.mrb[0].mxu0
        %2550 = vmatprep.mubr.bf16.mxu0 %v1652
        %2551 = vmatmul.mubr.bf16.gmra.mrb[0].mxu0 %v1651
        %v2552 = vpop.f32.mrb[0].mxu0
        %v2553 = vadd.f32 %v2392, %v2552
        %v2554 = vpop.f32.mrb[0].mxu0
        %v2555 = vpop.f32.mrb[0].mxu0
        %v2556 = vadd.f32 %v2395, %v2555
        %v2557 = vpop.f32.mrb[0].mxu0
        %2558 = vmatprep.mubr.bf16.mxu0 %v1661
        %2559 = vmatmul.mubr.bf16.gmra.mrb[0].mxu0 %v1660
        %v2560 = vpop.f32.mrb[0].mxu0
        %v2561 = vadd.f32 %v2400, %v2560
        %v2562 = vpop.f32.mrb[0].mxu0
        %v2563 = vpop.f32.mrb[0].mxu0
        %v2564 = vadd.f32 %v2403, %v2563
        %v2565 = vpop.f32.mrb[0].mxu0
        %2566 = vmatprep.mubr.bf16.mxu0 %v1670
        %2567 = vmatmul.mubr.bf16.gmra.mrb[0].mxu0 %v1669
        %v2568 = vpop.f32.mrb[0].mxu0
        %v2569 = vadd.f32 %v2408, %v2568
        %v2570 = vpop.f32.mrb[0].mxu0
        %v2571 = vpop.f32.mrb[0].mxu0
        %v2572 = vadd.f32 %v2411, %v2571
        %v2573 = vpop.f32.mrb[0].mxu0
        %2574 = vmatprep.mubr.bf16.mxu0 %v1679
        %2575 = vmatmul.mubr.bf16.gmra.mrb[0].mxu0 %v1678
        %v2576 = vpop.f32.mrb[0].mxu0
        %v2577 = vadd.f32 %v2416, %v2576
        %v2578 = vpop.f32.mrb[0].mxu0
        %v2579 = vpop.f32.mrb[0].mxu0
        %v2580 = vadd.f32 %v2419, %v2579
        %v2581 = vpop.f32.mrb[0].mxu0
        %2582 = vdwg.mxu0
        %2583 = vmatprep.subr.bf16.mxu0 0
        %2584 = vmatpush1.bf16.msra.mxu0 %v2149
        %2585 = vmatprep.subr.bf16.mxu0 0
        %2586 = vmatpush1.bf16.msra.mxu0 %v2150
        %2587 = vmatprep.subr.bf16.mxu0 0
        %2588 = vmatpush1.bf16.msra.mxu0 %v2151
        %2589 = vmatprep.subr.bf16.mxu0 0
        %2590 = vmatpush1.bf16.msra.mxu0 %v2152
        %2591 = vmatprep.subr.bf16.mxu0 0
        %2592 = vmatpush1.bf16.msra.mxu0 %v2153
        %2593 = vmatprep.subr.bf16.mxu0 0
        %2594 = vmatpush1.bf16.msra.mxu0 %v2154
        %2595 = vmatprep.subr.bf16.mxu0 0
        %2596 = vmatpush1.bf16.msra.mxu0 %v2155
        %2597 = vmatprep.subr.bf16.mxu0 0
        %2598 = vmatpush1.bf16.msra.mxu0 %v2156
        %2599 = vmatprep.subr.bf16.mxu0 0
        %2600 = vmatpush1.bf16.msra.mxu0 %v2157
        %2601 = vmatprep.subr.bf16.mxu0 0
        %2602 = vmatpush1.bf16.msra.mxu0 %v2158
        %2603 = vmatprep.subr.bf16.mxu0 0
        %2604 = vmatpush1.bf16.msra.mxu0 %v2159
        %2605 = vmatprep.subr.bf16.mxu0 0
        %2606 = vmatpush1.bf16.msra.mxu0 %v2160
        %2607 = vmatprep.subr.bf16.mxu0 0
        %2608 = vmatpush1.bf16.msra.mxu0 %v2161
        %2609 = vmatprep.subr.bf16.mxu0 0
        %2610 = vmatpush1.bf16.msra.mxu0 %v2162
        %2611 = vmatprep.subr.bf16.mxu0 0
        %2612 = vmatpush1.bf16.msra.mxu0 %v2163
        %2613 = vmatprep.subr.bf16.mxu0 0
        %2614 = vmatpush1.bf16.msra.mxu0 %v2164
        %2615 = vmatprep.mubr.bf16.mxu0 %v1546
        %2616 = vmatmul.mubr.bf16.gmra.mrb[0].mxu0 %v1545
        %v2617 = vpop.f32.mrb[0].mxu0
        %v2618 = vadd.f32 %v2457, %v2617
        %v2619 = vpop.f32.mrb[0].mxu0
        %v2620 = vpop.f32.mrb[0].mxu0
        %v2621 = vadd.f32 %v2460, %v2620
        %v2622 = vpop.f32.mrb[0].mxu0
        %2623 = vmatprep.mubr.bf16.mxu0 %v1555
        %2624 = vmatmul.mubr.bf16.gmra.mrb[0].mxu0 %v1554
        %v2625 = vpop.f32.mrb[0].mxu0
        %v2626 = vadd.f32 %v2465, %v2625
        %v2627 = vpop.f32.mrb[0].mxu0
        %v2628 = vpop.f32.mrb[0].mxu0
        %v2629 = vadd.f32 %v2468, %v2628
        %v2630 = vpop.f32.mrb[0].mxu0
        %2631 = vmatprep.mubr.bf16.mxu0 %v1564
        %2632 = vmatmul.mubr.bf16.gmra.mrb[0].mxu0 %v1563
        %v2633 = vpop.f32.mrb[0].mxu0
        %v2634 = vadd.f32 %v2473, %v2633
        %v2635 = vpop.f32.mrb[0].mxu0
        %v2636 = vpop.f32.mrb[0].mxu0
        %v2637 = vadd.f32 %v2476, %v2636
        %v2638 = vpop.f32.mrb[0].mxu0
        %2639 = vmatprep.mubr.bf16.mxu0 %v1573
        %2640 = vmatmul.mubr.bf16.gmra.mrb[0].mxu0 %v1572
        %v2641 = vpop.f32.mrb[0].mxu0
        %v2642 = vadd.f32 %v2481, %v2641
        %v2643 = vpop.f32.mrb[0].mxu0
        %v2644 = vpop.f32.mrb[0].mxu0
        %v2645 = vadd.f32 %v2484, %v2644
        %v2646 = vpop.f32.mrb[0].mxu0
        %2647 = vmatprep.mubr.bf16.mxu0 %v1582
        %2648 = vmatmul.mubr.bf16.gmra.mrb[0].mxu0 %v1581
        %v2649 = vpop.f32.mrb[0].mxu0
        %v2650 = vadd.f32 %v2489, %v2649
        %v2651 = vpop.f32.mrb[0].mxu0
        %v2652 = vpop.f32.mrb[0].mxu0
        %v2653 = vadd.f32 %v2492, %v2652
        %v2654 = vpop.f32.mrb[0].mxu0
        %2655 = vmatprep.mubr.bf16.mxu0 %v1591
        %2656 = vmatmul.mubr.bf16.gmra.mrb[0].mxu0 %v1590
        %v2657 = vpop.f32.mrb[0].mxu0
        %v2658 = vadd.f32 %v2497, %v2657
        %v2659 = vpop.f32.mrb[0].mxu0
        %v2660 = vpop.f32.mrb[0].mxu0
        %v2661 = vadd.f32 %v2500, %v2660
        %v2662 = vpop.f32.mrb[0].mxu0
        %2663 = vmatprep.mubr.bf16.mxu0 %v1600
        %2664 = vmatmul.mubr.bf16.gmra.mrb[0].mxu0 %v1599
        %v2665 = vpop.f32.mrb[0].mxu0
        %v2666 = vadd.f32 %v2505, %v2665
        %v2667 = vpop.f32.mrb[0].mxu0
        %v2668 = vpop.f32.mrb[0].mxu0
        %v2669 = vadd.f32 %v2508, %v2668
        %v2670 = vpop.f32.mrb[0].mxu0
        %2671 = vmatprep.mubr.bf16.mxu0 %v1609
        %2672 = vmatmul.mubr.bf16.gmra.mrb[0].mxu0 %v1608
        %v2673 = vpop.f32.mrb[0].mxu0
        %v2674 = vadd.f32 %v2513, %v2673
        %v2675 = vpop.f32.mrb[0].mxu0
        %v2676 = vpop.f32.mrb[0].mxu0
        %v2677 = vadd.f32 %v2516, %v2676
        %v2678 = vpop.f32.mrb[0].mxu0
        %2679 = vmatprep.mubr.bf16.mxu0 %v1618
        %2680 = vmatmul.mubr.bf16.gmra.mrb[0].mxu0 %v1617
        %v2681 = vpop.f32.mrb[0].mxu0
        %v2682 = vadd.f32 %v2521, %v2681
        %v2683 = vpop.f32.mrb[0].mxu0
        %v2684 = vpop.f32.mrb[0].mxu0
        %v2685 = vadd.f32 %v2524, %v2684
        %v2686 = vpop.f32.mrb[0].mxu0
        %2687 = vmatprep.mubr.bf16.mxu0 %v1627
        %2688 = vmatmul.mubr.bf16.gmra.mrb[0].mxu0 %v1626
        %v2689 = vpop.f32.mrb[0].mxu0
        %v2690 = vadd.f32 %v2529, %v2689
        %v2691 = vpop.f32.mrb[0].mxu0
        %v2692 = vpop.f32.mrb[0].mxu0
        %v2693 = vadd.f32 %v2532, %v2692
        %v2694 = vpop.f32.mrb[0].mxu0
        %2695 = vmatprep.mubr.bf16.mxu0 %v1636
        %2696 = vmatmul.mubr.bf16.gmra.mrb[0].mxu0 %v1635
        %v2697 = vpop.f32.mrb[0].mxu0
        %v2698 = vadd.f32 %v2537, %v2697
        %v2699 = vpop.f32.mrb[0].mxu0
        %v2700 = vpop.f32.mrb[0].mxu0
        %v2701 = vadd.f32 %v2540, %v2700
        %v2702 = vpop.f32.mrb[0].mxu0
        %2703 = vmatprep.mubr.bf16.mxu0 %v1645
        %2704 = vmatmul.mubr.bf16.gmra.mrb[0].mxu0 %v1644
        %v2705 = vpop.f32.mrb[0].mxu0
        %v2706 = vadd.f32 %v2545, %v2705
        %v2707 = vpop.f32.mrb[0].mxu0
        %v2708 = vpop.f32.mrb[0].mxu0
        %v2709 = vadd.f32 %v2548, %v2708
        %v2710 = vpop.f32.mrb[0].mxu0
        %2711 = vmatprep.mubr.bf16.mxu0 %v1654
        %2712 = vmatmul.mubr.bf16.gmra.mrb[0].mxu0 %v1653
        %v2713 = vpop.f32.mrb[0].mxu0
        %v2714 = vadd.f32 %v2553, %v2713
        %v2715 = vpop.f32.mrb[0].mxu0
        %v2716 = vpop.f32.mrb[0].mxu0
        %v2717 = vadd.f32 %v2556, %v2716
        %v2718 = vpop.f32.mrb[0].mxu0
        %2719 = vmatprep.mubr.bf16.mxu0 %v1663
        %2720 = vmatmul.mubr.bf16.gmra.mrb[0].mxu0 %v1662
        %v2721 = vpop.f32.mrb[0].mxu0
        %v2722 = vadd.f32 %v2561, %v2721
        %v2723 = vpop.f32.mrb[0].mxu0
        %v2724 = vpop.f32.mrb[0].mxu0
        %v2725 = vadd.f32 %v2564, %v2724
        %v2726 = vpop.f32.mrb[0].mxu0
        %2727 = vmatprep.mubr.bf16.mxu0 %v1672
        %2728 = vmatmul.mubr.bf16.gmra.mrb[0].mxu0 %v1671
        %v2729 = vpop.f32.mrb[0].mxu0
        %v2730 = vadd.f32 %v2569, %v2729
        %v2731 = vpop.f32.mrb[0].mxu0
        %v2732 = vpop.f32.mrb[0].mxu0
        %v2733 = vadd.f32 %v2572, %v2732
        %v2734 = vpop.f32.mrb[0].mxu0
        %2735 = vmatprep.mubr.bf16.mxu0 %v1681
        %2736 = vmatmul.mubr.bf16.gmra.mrb[0].mxu0 %v1680
        %v2737 = vpop.f32.mrb[0].mxu0
        %v2738 = vadd.f32 %v2577, %v2737
        %v2739 = vpop.f32.mrb[0].mxu0
        %v2740 = vpop.f32.mrb[0].mxu0
        %v2741 = vadd.f32 %v2580, %v2740
        %v2742 = vpop.f32.mrb[0].mxu0
        %2743 = vdwg.mxu0
        %2744 = vmatprep.subr.bf16.mxu0 0
        %2745 = vmatpush1.bf16.msra.mxu0 %v2165
        %2746 = vmatprep.subr.bf16.mxu0 0
        %2747 = vmatpush1.bf16.msra.mxu0 %v2166
        %2748 = vmatprep.subr.bf16.mxu0 0
        %2749 = vmatpush1.bf16.msra.mxu0 %v2167
        %2750 = vmatprep.subr.bf16.mxu0 0
        %2751 = vmatpush1.bf16.msra.mxu0 %v2168
        %2752 = vmatprep.subr.bf16.mxu0 0
        %2753 = vmatpush1.bf16.msra.mxu0 %v2169
        %2754 = vmatprep.subr.bf16.mxu0 0
        %2755 = vmatpush1.bf16.msra.mxu0 %v2170
        %2756 = vmatprep.subr.bf16.mxu0 0
        %2757 = vmatpush1.bf16.msra.mxu0 %v2171
        %2758 = vmatprep.subr.bf16.mxu0 0
        %2759 = vmatpush1.bf16.msra.mxu0 %v2172
        %2760 = vmatprep.subr.bf16.mxu0 0
        %2761 = vmatpush1.bf16.msra.mxu0 %v2173
        %2762 = vmatprep.subr.bf16.mxu0 0
        %2763 = vmatpush1.bf16.msra.mxu0 %v2174
        %2764 = vmatprep.subr.bf16.mxu0 0
        %2765 = vmatpush1.bf16.msra.mxu0 %v2175
        %2766 = vmatprep.subr.bf16.mxu0 0
        %2767 = vmatpush1.bf16.msra.mxu0 %v2176
        %2768 = vmatprep.subr.bf16.mxu0 0
        %2769 = vmatpush1.bf16.msra.mxu0 %v2177
        %2770 = vmatprep.subr.bf16.mxu0 0
        %2771 = vmatpush1.bf16.msra.mxu0 %v2178
        %2772 = vmatprep.subr.bf16.mxu0 0
        %2773 = vmatpush1.bf16.msra.mxu0 %v2179
        %2774 = vmatprep.subr.bf16.mxu0 0
        %2775 = vmatpush1.bf16.msra.mxu0 %v2180
        %2776 = vmatprep.mubr.bf16.mxu0 %v1548
        %2777 = vmatmul.mubr.bf16.gmra.mrb[0].mxu0 %v1547
        %v2778 = vpop.f32.mrb[0].mxu0
        %v2779 = vadd.f32 %v2618, %v2778
        %v2780 = vpop.f32.mrb[0].mxu0
        %v2781 = vpop.f32.mrb[0].mxu0
        %v2782 = vadd.f32 %v2621, %v2781
        %v2783 = vpop.f32.mrb[0].mxu0
        %2784 = vmatprep.mubr.bf16.mxu0 %v1557
        %2785 = vmatmul.mubr.bf16.gmra.mrb[0].mxu0 %v1556
        %v2786 = vpop.f32.mrb[0].mxu0
        %v2787 = vadd.f32 %v2626, %v2786
        %v2788 = vpop.f32.mrb[0].mxu0
        %v2789 = vpop.f32.mrb[0].mxu0
        %v2790 = vadd.f32 %v2629, %v2789
        %v2791 = vpop.f32.mrb[0].mxu0
        %2792 = vmatprep.mubr.bf16.mxu0 %v1566
        %2793 = vmatmul.mubr.bf16.gmra.mrb[0].mxu0 %v1565
        %v2794 = vpop.f32.mrb[0].mxu0
        %v2795 = vadd.f32 %v2634, %v2794
        %v2796 = vpop.f32.mrb[0].mxu0
        %v2797 = vpop.f32.mrb[0].mxu0
        %v2798 = vadd.f32 %v2637, %v2797
        %v2799 = vpop.f32.mrb[0].mxu0
        %2800 = vmatprep.mubr.bf16.mxu0 %v1575
        %2801 = vmatmul.mubr.bf16.gmra.mrb[0].mxu0 %v1574
        %v2802 = vpop.f32.mrb[0].mxu0
        %v2803 = vadd.f32 %v2642, %v2802
        %v2804 = vpop.f32.mrb[0].mxu0
        %v2805 = vpop.f32.mrb[0].mxu0
        %v2806 = vadd.f32 %v2645, %v2805
        %v2807 = vpop.f32.mrb[0].mxu0
        %2808 = vmatprep.mubr.bf16.mxu0 %v1584
        %2809 = vmatmul.mubr.bf16.gmra.mrb[0].mxu0 %v1583
        %v2810 = vpop.f32.mrb[0].mxu0
        %v2811 = vadd.f32 %v2650, %v2810
        %v2812 = vpop.f32.mrb[0].mxu0
        %v2813 = vpop.f32.mrb[0].mxu0
        %v2814 = vadd.f32 %v2653, %v2813
        %v2815 = vpop.f32.mrb[0].mxu0
        %2816 = vmatprep.mubr.bf16.mxu0 %v1593
        %2817 = vmatmul.mubr.bf16.gmra.mrb[0].mxu0 %v1592
        %v2818 = vpop.f32.mrb[0].mxu0
        %v2819 = vadd.f32 %v2658, %v2818
        %v2820 = vpop.f32.mrb[0].mxu0
        %v2821 = vpop.f32.mrb[0].mxu0
        %v2822 = vadd.f32 %v2661, %v2821
        %v2823 = vpop.f32.mrb[0].mxu0
        %2824 = vmatprep.mubr.bf16.mxu0 %v1602
        %2825 = vmatmul.mubr.bf16.gmra.mrb[0].mxu0 %v1601
        %v2826 = vpop.f32.mrb[0].mxu0
        %v2827 = vadd.f32 %v2666, %v2826
        %v2828 = vpop.f32.mrb[0].mxu0
        %v2829 = vpop.f32.mrb[0].mxu0
        %v2830 = vadd.f32 %v2669, %v2829
        %v2831 = vpop.f32.mrb[0].mxu0
        %2832 = vmatprep.mubr.bf16.mxu0 %v1611
        %2833 = vmatmul.mubr.bf16.gmra.mrb[0].mxu0 %v1610
        %v2834 = vpop.f32.mrb[0].mxu0
        %v2835 = vadd.f32 %v2674, %v2834
        %v2836 = vpop.f32.mrb[0].mxu0
        %v2837 = vpop.f32.mrb[0].mxu0
        %v2838 = vadd.f32 %v2677, %v2837
        %v2839 = vpop.f32.mrb[0].mxu0
        %2840 = vmatprep.mubr.bf16.mxu0 %v1620
        %2841 = vmatmul.mubr.bf16.gmra.mrb[0].mxu0 %v1619
        %v2842 = vpop.f32.mrb[0].mxu0
        %v2843 = vadd.f32 %v2682, %v2842
        %v2844 = vpop.f32.mrb[0].mxu0
        %v2845 = vpop.f32.mrb[0].mxu0
        %v2846 = vadd.f32 %v2685, %v2845
        %v2847 = vpop.f32.mrb[0].mxu0
        %2848 = vmatprep.mubr.bf16.mxu0 %v1629
        %2849 = vmatmul.mubr.bf16.gmra.mrb[0].mxu0 %v1628
        %v2850 = vpop.f32.mrb[0].mxu0
        %v2851 = vadd.f32 %v2690, %v2850
        %v2852 = vpop.f32.mrb[0].mxu0
        %v2853 = vpop.f32.mrb[0].mxu0
        %v2854 = vadd.f32 %v2693, %v2853
        %v2855 = vpop.f32.mrb[0].mxu0
        %2856 = vmatprep.mubr.bf16.mxu0 %v1638
        %2857 = vmatmul.mubr.bf16.gmra.mrb[0].mxu0 %v1637
        %v2858 = vpop.f32.mrb[0].mxu0
        %v2859 = vadd.f32 %v2698, %v2858
        %v2860 = vpop.f32.mrb[0].mxu0
        %v2861 = vpop.f32.mrb[0].mxu0
        %v2862 = vadd.f32 %v2701, %v2861
        %v2863 = vpop.f32.mrb[0].mxu0
        %2864 = vmatprep.mubr.bf16.mxu0 %v1647
        %2865 = vmatmul.mubr.bf16.gmra.mrb[0].mxu0 %v1646
        %v2866 = vpop.f32.mrb[0].mxu0
        %v2867 = vadd.f32 %v2706, %v2866
        %v2868 = vpop.f32.mrb[0].mxu0
        %v2869 = vpop.f32.mrb[0].mxu0
        %v2870 = vadd.f32 %v2709, %v2869
        %v2871 = vpop.f32.mrb[0].mxu0
        %2872 = vmatprep.mubr.bf16.mxu0 %v1656
        %2873 = vmatmul.mubr.bf16.gmra.mrb[0].mxu0 %v1655
        %v2874 = vpop.f32.mrb[0].mxu0
        %v2875 = vadd.f32 %v2714, %v2874
        %v2876 = vpop.f32.mrb[0].mxu0
        %v2877 = vpop.f32.mrb[0].mxu0
        %v2878 = vadd.f32 %v2717, %v2877
        %v2879 = vpop.f32.mrb[0].mxu0
        %2880 = vmatprep.mubr.bf16.mxu0 %v1665
        %2881 = vmatmul.mubr.bf16.gmra.mrb[0].mxu0 %v1664
        %v2882 = vpop.f32.mrb[0].mxu0
        %v2883 = vadd.f32 %v2722, %v2882
        %v2884 = vpop.f32.mrb[0].mxu0
        %v2885 = vpop.f32.mrb[0].mxu0
        %v2886 = vadd.f32 %v2725, %v2885
        %v2887 = vpop.f32.mrb[0].mxu0
        %2888 = vmatprep.mubr.bf16.mxu0 %v1674
        %2889 = vmatmul.mubr.bf16.gmra.mrb[0].mxu0 %v1673
        %v2890 = vpop.f32.mrb[0].mxu0
        %v2891 = vadd.f32 %v2730, %v2890
        %v2892 = vpop.f32.mrb[0].mxu0
        %v2893 = vpop.f32.mrb[0].mxu0
        %v2894 = vadd.f32 %v2733, %v2893
        %v2895 = vpop.f32.mrb[0].mxu0
        %2896 = vmatprep.mubr.bf16.mxu0 %v1683
        %2897 = vmatmul.mubr.bf16.gmra.mrb[0].mxu0 %v1682
        %v2898 = vpop.f32.mrb[0].mxu0
        %v2899 = vadd.f32 %v2738, %v2898
        %v2900 = vpop.f32.mrb[0].mxu0
        %v2901 = vpop.f32.mrb[0].mxu0
        %v2902 = vadd.f32 %v2741, %v2901
        %v2903 = vpop.f32.mrb[0].mxu0
        %2904 = vdwg.mxu0
        %2905 = vmatprep.subr.bf16.mxu0 0
        %2906 = vmatpush1.bf16.msra.mxu0 %v2181
        %2907 = vmatprep.subr.bf16.mxu0 0
        %2908 = vmatpush1.bf16.msra.mxu0 %v2182
        %2909 = vmatprep.subr.bf16.mxu0 0
        %2910 = vmatpush1.bf16.msra.mxu0 %v2183
        %2911 = vmatprep.subr.bf16.mxu0 0
        %2912 = vmatpush1.bf16.msra.mxu0 %v2184
        %2913 = vmatprep.subr.bf16.mxu0 0
        %2914 = vmatpush1.bf16.msra.mxu0 %v2185
        %2915 = vmatprep.subr.bf16.mxu0 0
        %2916 = vmatpush1.bf16.msra.mxu0 %v2186
        %2917 = vmatprep.subr.bf16.mxu0 0
        %2918 = vmatpush1.bf16.msra.mxu0 %v2187
        %2919 = vmatprep.subr.bf16.mxu0 0
        %2920 = vmatpush1.bf16.msra.mxu0 %v2188
        %2921 = vmatprep.subr.bf16.mxu0 0
        %2922 = vmatpush1.bf16.msra.mxu0 0
        %2923 = vmatprep.subr.bf16.mxu0 0
        %2924 = vmatpush1.bf16.msra.mxu0 0
        %2925 = vmatprep.subr.bf16.mxu0 0
        %2926 = vmatpush1.bf16.msra.mxu0 0
        %2927 = vmatprep.subr.bf16.mxu0 0
        %2928 = vmatpush1.bf16.msra.mxu0 0
        %2929 = vmatprep.subr.bf16.mxu0 0
        %2930 = vmatpush1.bf16.msra.mxu0 0
        %2931 = vmatprep.subr.bf16.mxu0 0
        %2932 = vmatpush1.bf16.msra.mxu0 0
        %2933 = vmatprep.subr.bf16.mxu0 0
        %2934 = vmatpush1.bf16.msra.mxu0 0
        %2935 = vmatprep.subr.bf16.mxu0 0
        %2936 = vmatpush1.bf16.msra.mxu0 0
        %2937 = vmatprep.mubr.bf16.mxu0 0
        %2938 = vmatmul.mubr.bf16.gmra.mrb[0].mxu0 %v1549
        %v2939 = vpop.f32.mrb[0].mxu0
        %v2940 = vadd.f32 %v2779, %v2939
        %v2941 = vpop.f32.mrb[0].mxu0
        %v2942 = vpop.f32.mrb[0].mxu0
        %v2943 = vadd.f32 %v2782, %v2942
        %v2944 = vpop.f32.mrb[0].mxu0
        %2945 = vmatprep.mubr.bf16.mxu0 0
        %2946 = vmatmul.mubr.bf16.gmra.mrb[0].mxu0 %v1558
        %v2947 = vpop.f32.mrb[0].mxu0
        %v2948 = vadd.f32 %v2787, %v2947
        %v2949 = vpop.f32.mrb[0].mxu0
        %v2950 = vpop.f32.mrb[0].mxu0
        %v2951 = vadd.f32 %v2790, %v2950
        %v2952 = vpop.f32.mrb[0].mxu0
        %2953 = vmatprep.mubr.bf16.mxu0 0
        %2954 = vmatmul.mubr.bf16.gmra.mrb[0].mxu0 %v1567
        %v2955 = vpop.f32.mrb[0].mxu0
        %v2956 = vadd.f32 %v2795, %v2955
        %v2957 = vpop.f32.mrb[0].mxu0
        %v2958 = vpop.f32.mrb[0].mxu0
        %v2959 = vadd.f32 %v2798, %v2958
        %v2960 = vpop.f32.mrb[0].mxu0
        %2961 = vmatprep.mubr.bf16.mxu0 0
        %2962 = vmatmul.mubr.bf16.gmra.mrb[0].mxu0 %v1576
        %v2963 = vpop.f32.mrb[0].mxu0
        %v2964 = vadd.f32 %v2803, %v2963
        %v2965 = vpop.f32.mrb[0].mxu0
        %v2966 = vpop.f32.mrb[0].mxu0
        %v2967 = vadd.f32 %v2806, %v2966
        %v2968 = vpop.f32.mrb[0].mxu0
        %2969 = vmatprep.mubr.bf16.mxu0 0
        %2970 = vmatmul.mubr.bf16.gmra.mrb[0].mxu0 %v1585
        %v2971 = vpop.f32.mrb[0].mxu0
        %v2972 = vadd.f32 %v2811, %v2971
        %v2973 = vpop.f32.mrb[0].mxu0
        %v2974 = vpop.f32.mrb[0].mxu0
        %v2975 = vadd.f32 %v2814, %v2974
        %v2976 = vpop.f32.mrb[0].mxu0
        %2977 = vmatprep.mubr.bf16.mxu0 0
        %2978 = vmatmul.mubr.bf16.gmra.mrb[0].mxu0 %v1594
        %v2979 = vpop.f32.mrb[0].mxu0
        %v2980 = vadd.f32 %v2819, %v2979
        %v2981 = vpop.f32.mrb[0].mxu0
        %v2982 = vpop.f32.mrb[0].mxu0
        %v2983 = vadd.f32 %v2822, %v2982
        %v2984 = vpop.f32.mrb[0].mxu0
        %2985 = vmatprep.mubr.bf16.mxu0 0
        %2986 = vmatmul.mubr.bf16.gmra.mrb[0].mxu0 %v1603
        %v2987 = vpop.f32.mrb[0].mxu0
        %v2988 = vadd.f32 %v2827, %v2987
        %v2989 = vpop.f32.mrb[0].mxu0
        %v2990 = vpop.f32.mrb[0].mxu0
        %v2991 = vadd.f32 %v2830, %v2990
        %v2992 = vpop.f32.mrb[0].mxu0
        %2993 = vmatprep.mubr.bf16.mxu0 0
        %2994 = vmatmul.mubr.bf16.gmra.mrb[0].mxu0 %v1612
        %v2995 = vpop.f32.mrb[0].mxu0
        %v2996 = vadd.f32 %v2835, %v2995
        %v2997 = vpop.f32.mrb[0].mxu0
        %v2998 = vpop.f32.mrb[0].mxu0
        %v2999 = vadd.f32 %v2838, %v2998
        %v3000 = vpop.f32.mrb[0].mxu0
        %3001 = vmatprep.mubr.bf16.mxu0 0
        %3002 = vmatmul.mubr.bf16.gmra.mrb[0].mxu0 %v1621
        %v3003 = vpop.f32.mrb[0].mxu0
        %v3004 = vadd.f32 %v2843, %v3003
        %v3005 = vpop.f32.mrb[0].mxu0
        %v3006 = vpop.f32.mrb[0].mxu0
        %v3007 = vadd.f32 %v2846, %v3006
        %v3008 = vpop.f32.mrb[0].mxu0
        %3009 = vmatprep.mubr.bf16.mxu0 0
        %3010 = vmatmul.mubr.bf16.gmra.mrb[0].mxu0 %v1630
        %v3011 = vpop.f32.mrb[0].mxu0
        %v3012 = vadd.f32 %v2851, %v3011
        %v3013 = vpop.f32.mrb[0].mxu0
        %v3014 = vpop.f32.mrb[0].mxu0
        %v3015 = vadd.f32 %v2854, %v3014
        %v3016 = vpop.f32.mrb[0].mxu0
        %3017 = vmatprep.mubr.bf16.mxu0 0
        %3018 = vmatmul.mubr.bf16.gmra.mrb[0].mxu0 %v1639
        %v3019 = vpop.f32.mrb[0].mxu0
        %v3020 = vadd.f32 %v2859, %v3019
        %v3021 = vpop.f32.mrb[0].mxu0
        %v3022 = vpop.f32.mrb[0].mxu0
        %v3023 = vadd.f32 %v2862, %v3022
        %v3024 = vpop.f32.mrb[0].mxu0
        %3025 = vmatprep.mubr.bf16.mxu0 0
        %3026 = vmatmul.mubr.bf16.gmra.mrb[0].mxu0 %v1648
        %v3027 = vpop.f32.mrb[0].mxu0
        %v3028 = vadd.f32 %v2867, %v3027
        %v3029 = vpop.f32.mrb[0].mxu0
        %v3030 = vpop.f32.mrb[0].mxu0
        %v3031 = vadd.f32 %v2870, %v3030
        %v3032 = vpop.f32.mrb[0].mxu0
        %3033 = vmatprep.mubr.bf16.mxu0 0
        %3034 = vmatmul.mubr.bf16.gmra.mrb[0].mxu0 %v1657
        %v3035 = vpop.f32.mrb[0].mxu0
        %v3036 = vadd.f32 %v2875, %v3035
        %v3037 = vpop.f32.mrb[0].mxu0
        %v3038 = vpop.f32.mrb[0].mxu0
        %v3039 = vadd.f32 %v2878, %v3038
        %v3040 = vpop.f32.mrb[0].mxu0
        %3041 = vmatprep.mubr.bf16.mxu0 0
        %3042 = vmatmul.mubr.bf16.gmra.mrb[0].mxu0 %v1666
        %v3043 = vpop.f32.mrb[0].mxu0
        %v3044 = vadd.f32 %v2883, %v3043
        %v3045 = vpop.f32.mrb[0].mxu0
        %v3046 = vpop.f32.mrb[0].mxu0
        %v3047 = vadd.f32 %v2886, %v3046
        %v3048 = vpop.f32.mrb[0].mxu0
        %3049 = vmatprep.mubr.bf16.mxu0 0
        %3050 = vmatmul.mubr.bf16.gmra.mrb[0].mxu0 %v1675
        %v3051 = vpop.f32.mrb[0].mxu0
        %v3052 = vadd.f32 %v2891, %v3051
        %v3053 = vpop.f32.mrb[0].mxu0
        %v3054 = vpop.f32.mrb[0].mxu0
        %v3055 = vadd.f32 %v2894, %v3054
        %v3056 = vpop.f32.mrb[0].mxu0
        %3057 = vmatprep.mubr.bf16.mxu0 0
        %3058 = vmatmul.mubr.bf16.gmra.mrb[0].mxu0 %v1684
        %v3059 = vpop.f32.mrb[0].mxu0
        %v3060 = vadd.f32 %v2899, %v3059
        %v3061 = vpop.f32.mrb[0].mxu0
        %v3062 = vpop.f32.mrb[0].mxu0
        %v3063 = vadd.f32 %v2902, %v3062
        %v3064 = vpop.f32.mrb[0].mxu0
        %3065 = vdwg.mxu0
        %v3066 = vld [vmem:[%s5] sm:$0x1]
        %v3068 = vlaneseq
        %v3069 = vshrl.u32 %v3068, 7
        %v3070 = vsub.s32 0, %v3069
        %v3071 = vrot.slane %v3066, %v3070
        %v3073 = vmul.f32 %v2940, %v3071
        %v3074 = vmul.f32 %v2943, %v3071
        %v3075 = vmul.f32 %v2948, %v3071
        %v3076 = vmul.f32 %v2951, %v3071
        %v3077 = vmul.f32 %v2956, %v3071
        %v3078 = vmul.f32 %v2959, %v3071
        %v3079 = vmul.f32 %v2964, %v3071
        %v3080 = vmul.f32 %v2967, %v3071
        %v3081 = vmul.f32 %v2972, %v3071
        %v3082 = vmul.f32 %v2975, %v3071
        %v3083 = vmul.f32 %v2980, %v3071
        %v3084 = vmul.f32 %v2983, %v3071
        %v3085 = vmul.f32 %v2988, %v3071
        %v3086 = vmul.f32 %v2991, %v3071
        %v3087 = vmul.f32 %v2996, %v3071
        %v3088 = vmul.f32 %v2999, %v3071
        %v3089 = vmul.f32 %v3004, %v3071
        %v3090 = vmul.f32 %v3007, %v3071
        %v3091 = vmul.f32 %v3012, %v3071
        %v3092 = vmul.f32 %v3015, %v3071
        %v3093 = vmul.f32 %v3020, %v3071
        %v3094 = vmul.f32 %v3023, %v3071
        %v3095 = vmul.f32 %v3028, %v3071
        %v3096 = vmul.f32 %v3031, %v3071
        %v3097 = vmul.f32 %v3036, %v3071
        %v3098 = vmul.f32 %v3039, %v3071
        %v3099 = vmul.f32 %v3044, %v3071
        %v3100 = vmul.f32 %v3047, %v3071
        %v3101 = vmul.f32 %v3052, %v3071
        %v3102 = vmul.f32 %v3055, %v3071
        %v3103 = vmul.f32 %v3060, %v3071
        %v3104 = vmul.f32 %v3063, %v3071
        %v3105 = vld [vmem:[%s6] sm:$0x1]
        %v3107 = vlaneseq
        %v3108 = vshrl.u32 %v3107, 7
        %v3109 = vsub.s32 0, %v3108
        %v3110 = vrot.slane %v3105, %v3109
        %v3112 = vadd.f32 %v3073, %v3110
        %v3113 = vadd.f32 %v3074, %v3110
        %v3114 = vadd.f32 %v3075, %v3110
        %v3115 = vadd.f32 %v3076, %v3110
        %v3116 = vadd.f32 %v3077, %v3110
        %v3117 = vadd.f32 %v3078, %v3110
        %v3118 = vadd.f32 %v3079, %v3110
        %v3119 = vadd.f32 %v3080, %v3110
        %v3120 = vadd.f32 %v3081, %v3110
        %v3121 = vadd.f32 %v3082, %v3110
        %v3122 = vadd.f32 %v3083, %v3110
        %v3123 = vadd.f32 %v3084, %v3110
        %v3124 = vadd.f32 %v3085, %v3110
        %v3125 = vadd.f32 %v3086, %v3110
        %v3126 = vadd.f32 %v3087, %v3110
        %v3127 = vadd.f32 %v3088, %v3110
        %v3128 = vadd.f32 %v3089, %v3110
        %v3129 = vadd.f32 %v3090, %v3110
        %v3130 = vadd.f32 %v3091, %v3110
        %v3131 = vadd.f32 %v3092, %v3110
        %v3132 = vadd.f32 %v3093, %v3110
        %v3133 = vadd.f32 %v3094, %v3110
        %v3134 = vadd.f32 %v3095, %v3110
        %v3135 = vadd.f32 %v3096, %v3110
        %v3136 = vadd.f32 %v3097, %v3110
        %v3137 = vadd.f32 %v3098, %v3110
        %v3138 = vadd.f32 %v3099, %v3110
        %v3139 = vadd.f32 %v3100, %v3110
        %v3140 = vadd.f32 %v3101, %v3110
        %v3141 = vadd.f32 %v3102, %v3110
        %v3142 = vadd.f32 %v3103, %v3110
        %v3143 = vadd.f32 %v3104, %v3110
        %v3144 = vmax.f32 %v3112, 0.0
        %v3145 = vmax.f32 %v3113, 0.0
        %v3146 = vmax.f32 %v3114, 0.0
        %v3147 = vmax.f32 %v3115, 0.0
        %v3148 = vmax.f32 %v3116, 0.0
        %v3149 = vmax.f32 %v3117, 0.0
        %v3150 = vmax.f32 %v3118, 0.0
        %v3151 = vmax.f32 %v3119, 0.0
        %v3152 = vmax.f32 %v3120, 0.0
        %v3153 = vmax.f32 %v3121, 0.0
        %v3154 = vmax.f32 %v3122, 0.0
        %v3155 = vmax.f32 %v3123, 0.0
        %v3156 = vmax.f32 %v3124, 0.0
        %v3157 = vmax.f32 %v3125, 0.0
        %v3158 = vmax.f32 %v3126, 0.0
        %v3159 = vmax.f32 %v3127, 0.0
        %v3160 = vmax.f32 %v3128, 0.0
        %v3161 = vmax.f32 %v3129, 0.0
        %v3162 = vmax.f32 %v3130, 0.0
        %v3163 = vmax.f32 %v3131, 0.0
        %v3164 = vmax.f32 %v3132, 0.0
        %v3165 = vmax.f32 %v3133, 0.0
        %v3166 = vmax.f32 %v3134, 0.0
        %v3167 = vmax.f32 %v3135, 0.0
        %v3168 = vmax.f32 %v3136, 0.0
        %v3169 = vmax.f32 %v3137, 0.0
        %v3170 = vmax.f32 %v3138, 0.0
        %v3171 = vmax.f32 %v3139, 0.0
        %v3172 = vmax.f32 %v3140, 0.0
        %v3173 = vmax.f32 %v3141, 0.0
        %v3174 = vmax.f32 %v3142, 0.0
        %v3175 = vmax.f32 %v3143, 0.0
        %v3176 = vpack.c.bf16 %v3145, %v3144
        %v3177 = vpack.c.bf16 %v3147, %v3146
        %v3178 = vpack.c.bf16 %v3149, %v3148
        %v3179 = vpack.c.bf16 %v3151, %v3150
        %v3180 = vpack.c.bf16 %v3153, %v3152
        %v3181 = vpack.c.bf16 %v3155, %v3154
        %v3182 = vpack.c.bf16 %v3157, %v3156
        %v3183 = vpack.c.bf16 %v3159, %v3158
        %v3184 = vpack.c.bf16 %v3161, %v3160
        %v3185 = vpack.c.bf16 %v3163, %v3162
        %v3186 = vpack.c.bf16 %v3165, %v3164
        %v3187 = vpack.c.bf16 %v3167, %v3166
        %v3188 = vpack.c.bf16 %v3169, %v3168
        %v3189 = vpack.c.bf16 %v3171, %v3170
        %v3190 = vpack.c.bf16 %v3173, %v3172
        %v3191 = vpack.c.bf16 %v3175, %v3174
        %v3192 = vld [vmem:[#allocation10] sm:$0xf]
        %v3193 = vld [vmem:[#allocation10 + $0x4] sm:$0xf]
        %v3194 = vld [vmem:[#allocation10 + $0x8] sm:$0xf]
        %v3195 = vld [vmem:[#allocation10 + $0xc] sm:$0xf]
        %v3196 = vld [vmem:[#allocation10 + $0x10] sm:$0xf]
        %v3197 = vld [vmem:[#allocation10 + $0x14] sm:$0xf]
        %v3198 = vld [vmem:[#allocation10 + $0x18] sm:$0xf]
        %v3199 = vld [vmem:[#allocation10 + $0x1c] sm:$0xf]
        %v3200 = vld [vmem:[#allocation10 + $0x20] sm:$0xf]
        %v3201 = vld [vmem:[#allocation10 + $0x24] sm:$0xf]
        %v3202 = vld [vmem:[#allocation10 + $0x28] sm:$0xf]
        %v3203 = vld [vmem:[#allocation10 + $0x2c] sm:$0xf]
        %v3204 = vld [vmem:[#allocation10 + $0x30] sm:$0xf]
        %v3205 = vld [vmem:[#allocation10 + $0x34] sm:$0xf]
        %v3206 = vld [vmem:[#allocation10 + $0x38] sm:$0xf]
        %v3207 = vld [vmem:[#allocation10 + $0x3c] sm:$0xf]
        %v3224 = vunpack.c.l.b16 %v3192
        %v3225 = vunpack.c.l.b16 %v3193
        %v3226 = vunpack.c.l.b16 %v3194
        %v3227 = vunpack.c.l.b16 %v3195
        %v3228 = vunpack.c.l.b16 %v3196
        %v3229 = vunpack.c.l.b16 %v3197
        %v3230 = vunpack.c.l.b16 %v3198
        %v3231 = vunpack.c.l.b16 %v3199
        %v3232 = vunpack.c.l.b16 %v3200
        %v3233 = vunpack.c.l.b16 %v3201
        %v3234 = vunpack.c.l.b16 %v3202
        %v3235 = vunpack.c.l.b16 %v3203
        %v3236 = vunpack.c.l.b16 %v3204
        %v3237 = vunpack.c.l.b16 %v3205
        %v3238 = vunpack.c.l.b16 %v3206
        %v3239 = vunpack.c.l.b16 %v3207
        %v3240 = vpack.c.b16 %v3225, %v3224
        %v3241 = vpack.c.b16 %v3227, %v3226
        %v3242 = vpack.c.b16 %v3229, %v3228
        %v3243 = vpack.c.b16 %v3231, %v3230
        %v3244 = vpack.c.b16 %v3233, %v3232
        %v3245 = vpack.c.b16 %v3235, %v3234
        %v3246 = vpack.c.b16 %v3237, %v3236
        %v3247 = vpack.c.b16 %v3239, %v3238
        %3256 = vmatprep.subr.bf16.mxu0 0
        %3257 = vmatpush1.bf16.msra.mxu0 %v3240
        %3258 = vmatprep.subr.bf16.mxu0 0
        %3259 = vmatpush1.bf16.msra.mxu0 %v3241
        %3260 = vmatprep.subr.bf16.mxu0 0
        %3261 = vmatpush1.bf16.msra.mxu0 %v3242
        %3262 = vmatprep.subr.bf16.mxu0 0
        %3263 = vmatpush1.bf16.msra.mxu0 %v3243
        %3264 = vmatprep.subr.bf16.mxu0 0
        %3265 = vmatpush1.bf16.msra.mxu0 %v3244
        %3266 = vmatprep.subr.bf16.mxu0 0
        %3267 = vmatpush1.bf16.msra.mxu0 %v3245
        %3268 = vmatprep.subr.bf16.mxu0 0
        %3269 = vmatpush1.bf16.msra.mxu0 %v3246
        %3270 = vmatprep.subr.bf16.mxu0 0
        %3271 = vmatpush1.bf16.msra.mxu0 %v3247
        %3272 = vmatprep.subr.bf16.mxu0 0
        %3273 = vmatpush1.bf16.msra.mxu0 0
        %3274 = vmatprep.subr.bf16.mxu0 0
        %3275 = vmatpush1.bf16.msra.mxu0 0
        %3276 = vmatprep.subr.bf16.mxu0 0
        %3277 = vmatpush1.bf16.msra.mxu0 0
        %3278 = vmatprep.subr.bf16.mxu0 0
        %3279 = vmatpush1.bf16.msra.mxu0 0
        %3280 = vmatprep.subr.bf16.mxu0 0
        %3281 = vmatpush1.bf16.msra.mxu0 0
        %3282 = vmatprep.subr.bf16.mxu0 0
        %3283 = vmatpush1.bf16.msra.mxu0 0
        %3284 = vmatprep.subr.bf16.mxu0 0
        %3285 = vmatpush1.bf16.msra.mxu0 0
        %3286 = vmatprep.subr.bf16.mxu0 0
        %3287 = vmatpush1.bf16.msra.mxu0 0
        %3288 = vmatprep.mubr.bf16.mxu0 0
        %3289 = vmatmul.mubr.bf16.gmra.mrb[0].mxu0 %v3176
        %v3290 = vpop.f32.mrb[0].mxu0
        %v3291 = vadd.f32 0.0, %v3290
        %v3292 = vpop.f32.mrb[0].mxu0
        %v3293 = vpop.f32.mrb[0].mxu0
        %v3294 = vadd.f32 0.0, %v3293
        %v3295 = vpop.f32.mrb[0].mxu0
        %3296 = vmatprep.mubr.bf16.mxu0 0
        %3297 = vmatmul.mubr.bf16.gmra.mrb[0].mxu0 %v3177
        %v3298 = vpop.f32.mrb[0].mxu0
        %v3299 = vadd.f32 0.0, %v3298
        %v3300 = vpop.f32.mrb[0].mxu0
        %v3301 = vpop.f32.mrb[0].mxu0
        %v3302 = vadd.f32 0.0, %v3301
        %v3303 = vpop.f32.mrb[0].mxu0
        %3304 = vmatprep.mubr.bf16.mxu0 0
        %3305 = vmatmul.mubr.bf16.gmra.mrb[0].mxu0 %v3178
        %v3306 = vpop.f32.mrb[0].mxu0
        %v3307 = vadd.f32 0.0, %v3306
        %v3308 = vpop.f32.mrb[0].mxu0
        %v3309 = vpop.f32.mrb[0].mxu0
        %v3310 = vadd.f32 0.0, %v3309
        %v3311 = vpop.f32.mrb[0].mxu0
        %3312 = vmatprep.mubr.bf16.mxu0 0
        %3313 = vmatmul.mubr.bf16.gmra.mrb[0].mxu0 %v3179
        %v3314 = vpop.f32.mrb[0].mxu0
        %v3315 = vadd.f32 0.0, %v3314
        %v3316 = vpop.f32.mrb[0].mxu0
        %v3317 = vpop.f32.mrb[0].mxu0
        %v3318 = vadd.f32 0.0, %v3317
        %v3319 = vpop.f32.mrb[0].mxu0
        %3320 = vmatprep.mubr.bf16.mxu0 0
        %3321 = vmatmul.mubr.bf16.gmra.mrb[0].mxu0 %v3180
        %v3322 = vpop.f32.mrb[0].mxu0
        %v3323 = vadd.f32 0.0, %v3322
        %v3324 = vpop.f32.mrb[0].mxu0
        %v3325 = vpop.f32.mrb[0].mxu0
        %v3326 = vadd.f32 0.0, %v3325
        %v3327 = vpop.f32.mrb[0].mxu0
        %3328 = vmatprep.mubr.bf16.mxu0 0
        %3329 = vmatmul.mubr.bf16.gmra.mrb[0].mxu0 %v3181
        %v3330 = vpop.f32.mrb[0].mxu0
        %v3331 = vadd.f32 0.0, %v3330
        %v3332 = vpop.f32.mrb[0].mxu0
        %v3333 = vpop.f32.mrb[0].mxu0
        %v3334 = vadd.f32 0.0, %v3333
        %v3335 = vpop.f32.mrb[0].mxu0
        %3336 = vmatprep.mubr.bf16.mxu0 0
        %3337 = vmatmul.mubr.bf16.gmra.mrb[0].mxu0 %v3182
        %v3338 = vpop.f32.mrb[0].mxu0
        %v3339 = vadd.f32 0.0, %v3338
        %v3340 = vpop.f32.mrb[0].mxu0
        %v3341 = vpop.f32.mrb[0].mxu0
        %v3342 = vadd.f32 0.0, %v3341
        %v3343 = vpop.f32.mrb[0].mxu0
        %3344 = vmatprep.mubr.bf16.mxu0 0
        %3345 = vmatmul.mubr.bf16.gmra.mrb[0].mxu0 %v3183
        %v3346 = vpop.f32.mrb[0].mxu0
        %v3347 = vadd.f32 0.0, %v3346
        %v3348 = vpop.f32.mrb[0].mxu0
        %v3349 = vpop.f32.mrb[0].mxu0
        %v3350 = vadd.f32 0.0, %v3349
        %v3351 = vpop.f32.mrb[0].mxu0
        %3352 = vmatprep.mubr.bf16.mxu0 0
        %3353 = vmatmul.mubr.bf16.gmra.mrb[0].mxu0 %v3184
        %v3354 = vpop.f32.mrb[0].mxu0
        %v3355 = vadd.f32 0.0, %v3354
        %v3356 = vpop.f32.mrb[0].mxu0
        %v3357 = vpop.f32.mrb[0].mxu0
        %v3358 = vadd.f32 0.0, %v3357
        %v3359 = vpop.f32.mrb[0].mxu0
        %3360 = vmatprep.mubr.bf16.mxu0 0
        %3361 = vmatmul.mubr.bf16.gmra.mrb[0].mxu0 %v3185
        %v3362 = vpop.f32.mrb[0].mxu0
        %v3363 = vadd.f32 0.0, %v3362
        %v3364 = vpop.f32.mrb[0].mxu0
        %v3365 = vpop.f32.mrb[0].mxu0
        %v3366 = vadd.f32 0.0, %v3365
        %v3367 = vpop.f32.mrb[0].mxu0
        %3368 = vmatprep.mubr.bf16.mxu0 0
        %3369 = vmatmul.mubr.bf16.gmra.mrb[0].mxu0 %v3186
        %v3370 = vpop.f32.mrb[0].mxu0
        %v3371 = vadd.f32 0.0, %v3370
        %v3372 = vpop.f32.mrb[0].mxu0
        %v3373 = vpop.f32.mrb[0].mxu0
        %v3374 = vadd.f32 0.0, %v3373
        %v3375 = vpop.f32.mrb[0].mxu0
        %3376 = vmatprep.mubr.bf16.mxu0 0
        %3377 = vmatmul.mubr.bf16.gmra.mrb[0].mxu0 %v3187
        %v3378 = vpop.f32.mrb[0].mxu0
        %v3379 = vadd.f32 0.0, %v3378
        %v3380 = vpop.f32.mrb[0].mxu0
        %v3381 = vpop.f32.mrb[0].mxu0
        %v3382 = vadd.f32 0.0, %v3381
        %v3383 = vpop.f32.mrb[0].mxu0
        %3384 = vmatprep.mubr.bf16.mxu0 0
        %3385 = vmatmul.mubr.bf16.gmra.mrb[0].mxu0 %v3188
        %v3386 = vpop.f32.mrb[0].mxu0
        %v3387 = vadd.f32 0.0, %v3386
        %v3388 = vpop.f32.mrb[0].mxu0
        %v3389 = vpop.f32.mrb[0].mxu0
        %v3390 = vadd.f32 0.0, %v3389
        %v3391 = vpop.f32.mrb[0].mxu0
        %3392 = vmatprep.mubr.bf16.mxu0 0
        %3393 = vmatmul.mubr.bf16.gmra.mrb[0].mxu0 %v3189
        %v3394 = vpop.f32.mrb[0].mxu0
        %v3395 = vadd.f32 0.0, %v3394
        %v3396 = vpop.f32.mrb[0].mxu0
        %v3397 = vpop.f32.mrb[0].mxu0
        %v3398 = vadd.f32 0.0, %v3397
        %v3399 = vpop.f32.mrb[0].mxu0
        %3400 = vmatprep.mubr.bf16.mxu0 0
        %3401 = vmatmul.mubr.bf16.gmra.mrb[0].mxu0 %v3190
        %v3402 = vpop.f32.mrb[0].mxu0
        %v3403 = vadd.f32 0.0, %v3402
        %v3404 = vpop.f32.mrb[0].mxu0
        %v3405 = vpop.f32.mrb[0].mxu0
        %v3406 = vadd.f32 0.0, %v3405
        %v3407 = vpop.f32.mrb[0].mxu0
        %3408 = vmatprep.mubr.bf16.mxu0 0
        %3409 = vmatmul.mubr.bf16.gmra.mrb[0].mxu0 %v3191
        %v3410 = vpop.f32.mrb[0].mxu0
        %v3411 = vadd.f32 0.0, %v3410
        %v3412 = vpop.f32.mrb[0].mxu0
        %v3413 = vpop.f32.mrb[0].mxu0
        %v3414 = vadd.f32 0.0, %v3413
        %v3415 = vpop.f32.mrb[0].mxu0
        %3416 = vdwg.mxu0
        %v3417 = vld [vmem:[%s8] sm:$0x1]
        %v3419 = vlaneseq
        %v3420 = vshrl.u32 %v3419, 7
        %v3421 = vsub.s32 0, %v3420
        %v3422 = vrot.slane %v3417, %v3421
        %v3424 = vmul.f32 %v3291, %v3422
        %v3425 = vmul.f32 %v3294, %v3422
        %v3426 = vmul.f32 %v3299, %v3422
        %v3427 = vmul.f32 %v3302, %v3422
        %v3428 = vmul.f32 %v3307, %v3422
        %v3429 = vmul.f32 %v3310, %v3422
        %v3430 = vmul.f32 %v3315, %v3422
        %v3431 = vmul.f32 %v3318, %v3422
        %v3432 = vmul.f32 %v3323, %v3422
        %v3433 = vmul.f32 %v3326, %v3422
        %v3434 = vmul.f32 %v3331, %v3422
        %v3435 = vmul.f32 %v3334, %v3422
        %v3436 = vmul.f32 %v3339, %v3422
        %v3437 = vmul.f32 %v3342, %v3422
        %v3438 = vmul.f32 %v3347, %v3422
        %v3439 = vmul.f32 %v3350, %v3422
        %v3440 = vmul.f32 %v3355, %v3422
        %v3441 = vmul.f32 %v3358, %v3422
        %v3442 = vmul.f32 %v3363, %v3422
        %v3443 = vmul.f32 %v3366, %v3422
        %v3444 = vmul.f32 %v3371, %v3422
        %v3445 = vmul.f32 %v3374, %v3422
        %v3446 = vmul.f32 %v3379, %v3422
        %v3447 = vmul.f32 %v3382, %v3422
        %v3448 = vmul.f32 %v3387, %v3422
        %v3449 = vmul.f32 %v3390, %v3422
        %v3450 = vmul.f32 %v3395, %v3422
        %v3451 = vmul.f32 %v3398, %v3422
        %v3452 = vmul.f32 %v3403, %v3422
        %v3453 = vmul.f32 %v3406, %v3422
        %v3454 = vmul.f32 %v3411, %v3422
        %v3455 = vmul.f32 %v3414, %v3422
        %v3456 = vld [vmem:[%s9] sm:$0x1]
        %v3458 = vlaneseq
        %v3459 = vshrl.u32 %v3458, 7
        %v3460 = vsub.s32 0, %v3459
        %v3461 = vrot.slane %v3456, %v3460
        %v3463 = vadd.f32 %v3424, %v3461
        %v3464 = vadd.f32 %v3425, %v3461
        %v3465 = vadd.f32 %v3426, %v3461
        %v3466 = vadd.f32 %v3427, %v3461
        %v3467 = vadd.f32 %v3428, %v3461
        %v3468 = vadd.f32 %v3429, %v3461
        %v3469 = vadd.f32 %v3430, %v3461
        %v3470 = vadd.f32 %v3431, %v3461
        %v3471 = vadd.f32 %v3432, %v3461
        %v3472 = vadd.f32 %v3433, %v3461
        %v3473 = vadd.f32 %v3434, %v3461
        %v3474 = vadd.f32 %v3435, %v3461
        %v3475 = vadd.f32 %v3436, %v3461
        %v3476 = vadd.f32 %v3437, %v3461
        %v3477 = vadd.f32 %v3438, %v3461
        %v3478 = vadd.f32 %v3439, %v3461
        %v3479 = vadd.f32 %v3440, %v3461
        %v3480 = vadd.f32 %v3441, %v3461
        %v3481 = vadd.f32 %v3442, %v3461
        %v3482 = vadd.f32 %v3443, %v3461
        %v3483 = vadd.f32 %v3444, %v3461
        %v3484 = vadd.f32 %v3445, %v3461
        %v3485 = vadd.f32 %v3446, %v3461
        %v3486 = vadd.f32 %v3447, %v3461
        %v3487 = vadd.f32 %v3448, %v3461
        %v3488 = vadd.f32 %v3449, %v3461
        %v3489 = vadd.f32 %v3450, %v3461
        %v3490 = vadd.f32 %v3451, %v3461
        %v3491 = vadd.f32 %v3452, %v3461
        %v3492 = vadd.f32 %v3453, %v3461
        %v3493 = vadd.f32 %v3454, %v3461
        %v3494 = vadd.f32 %v3455, %v3461
        %v3495 = vunpack.c.l.bf16 %v423
        %v3496 = vunpack.c.l.bf16 %v424
        %v3497 = vunpack.c.l.bf16 %v425
        %v3498 = vunpack.c.l.bf16 %v426
        %v3499 = vunpack.c.l.bf16 %v427
        %v3500 = vunpack.c.l.bf16 %v428
        %v3501 = vunpack.c.l.bf16 %v429
        %v3502 = vunpack.c.l.bf16 %v430
        %v3503 = vunpack.c.l.bf16 %v431
        %v3504 = vunpack.c.l.bf16 %v432
        %v3505 = vunpack.c.l.bf16 %v433
        %v3506 = vunpack.c.l.bf16 %v434
        %v3507 = vunpack.c.l.bf16 %v435
        %v3508 = vunpack.c.l.bf16 %v436
        %v3509 = vunpack.c.l.bf16 %v437
        %v3510 = vunpack.c.l.bf16 %v438
        %v3511 = vunpack.c.l.bf16 %v439
        %v3512 = vunpack.c.l.bf16 %v440
        %v3513 = vunpack.c.l.bf16 %v441
        %v3514 = vunpack.c.l.bf16 %v442
        %v3515 = vunpack.c.l.bf16 %v443
        %v3516 = vunpack.c.l.bf16 %v444
        %v3517 = vunpack.c.l.bf16 %v445
        %v3518 = vunpack.c.l.bf16 %v446
        %v3519 = vunpack.c.l.bf16 %v447
        %v3520 = vunpack.c.l.bf16 %v448
        %v3521 = vunpack.c.l.bf16 %v449
        %v3522 = vunpack.c.l.bf16 %v450
        %v3523 = vunpack.c.l.bf16 %v451
        %v3524 = vunpack.c.l.bf16 %v452
        %v3525 = vunpack.c.l.bf16 %v453
        %v3526 = vunpack.c.l.bf16 %v454
        %v3527 = vadd.f32 %v3463, %v3495
        %v3528 = vadd.f32 %v3464, %v3496
        %v3529 = vadd.f32 %v3465, %v3497
        %v3530 = vadd.f32 %v3466, %v3498
        %v3531 = vadd.f32 %v3467, %v3499
        %v3532 = vadd.f32 %v3468, %v3500
        %v3533 = vadd.f32 %v3469, %v3501
        %v3534 = vadd.f32 %v3470, %v3502
        %v3535 = vadd.f32 %v3471, %v3503
        %v3536 = vadd.f32 %v3472, %v3504
        %v3537 = vadd.f32 %v3473, %v3505
        %v3538 = vadd.f32 %v3474, %v3506
        %v3539 = vadd.f32 %v3475, %v3507
        %v3540 = vadd.f32 %v3476, %v3508
        %v3541 = vadd.f32 %v3477, %v3509
        %v3542 = vadd.f32 %v3478, %v3510
        %v3543 = vadd.f32 %v3479, %v3511
        %v3544 = vadd.f32 %v3480, %v3512
        %v3545 = vadd.f32 %v3481, %v3513
        %v3546 = vadd.f32 %v3482, %v3514
        %v3547 = vadd.f32 %v3483, %v3515
        %v3548 = vadd.f32 %v3484, %v3516
        %v3549 = vadd.f32 %v3485, %v3517
        %v3550 = vadd.f32 %v3486, %v3518
        %v3551 = vadd.f32 %v3487, %v3519
        %v3552 = vadd.f32 %v3488, %v3520
        %v3553 = vadd.f32 %v3489, %v3521
        %v3554 = vadd.f32 %v3490, %v3522
        %v3555 = vadd.f32 %v3491, %v3523
        %v3556 = vadd.f32 %v3492, %v3524
        %v3557 = vadd.f32 %v3493, %v3525
        %v3558 = vadd.f32 %v3494, %v3526
        %v3559 = vmax.f32 %v3527, 0.0
        %v3560 = vmax.f32 %v3528, 0.0
        %v3561 = vmax.f32 %v3529, 0.0
        %v3562 = vmax.f32 %v3530, 0.0
        %v3563 = vmax.f32 %v3531, 0.0
        %v3564 = vmax.f32 %v3532, 0.0
        %v3565 = vmax.f32 %v3533, 0.0
        %v3566 = vmax.f32 %v3534, 0.0
        %v3567 = vmax.f32 %v3535, 0.0
        %v3568 = vmax.f32 %v3536, 0.0
        %v3569 = vmax.f32 %v3537, 0.0
        %v3570 = vmax.f32 %v3538, 0.0
        %v3571 = vmax.f32 %v3539, 0.0
        %v3572 = vmax.f32 %v3540, 0.0
        %v3573 = vmax.f32 %v3541, 0.0
        %v3574 = vmax.f32 %v3542, 0.0
        %v3575 = vmax.f32 %v3543, 0.0
        %v3576 = vmax.f32 %v3544, 0.0
        %v3577 = vmax.f32 %v3545, 0.0
        %v3578 = vmax.f32 %v3546, 0.0
        %v3579 = vmax.f32 %v3547, 0.0
        %v3580 = vmax.f32 %v3548, 0.0
        %v3581 = vmax.f32 %v3549, 0.0
        %v3582 = vmax.f32 %v3550, 0.0
        %v3583 = vmax.f32 %v3551, 0.0
        %v3584 = vmax.f32 %v3552, 0.0
        %v3585 = vmax.f32 %v3553, 0.0
        %v3586 = vmax.f32 %v3554, 0.0
        %v3587 = vmax.f32 %v3555, 0.0
        %v3588 = vmax.f32 %v3556, 0.0
        %v3589 = vmax.f32 %v3557, 0.0
        %v3590 = vmax.f32 %v3558, 0.0
        %3591 = vst [vmem:[%s421] sm:$0xff] %v3559
        %3592 = vst [vmem:[%s421 + $0x8] sm:$0xff] %v3560
        %3593 = vst [vmem:[%s421 + $0x10] sm:$0xff] %v3561
        %3594 = vst [vmem:[%s421 + $0x18] sm:$0xff] %v3562
        %3595 = vst [vmem:[%s421 + $0x20] sm:$0xff] %v3563
        %3596 = vst [vmem:[%s421 + $0x28] sm:$0xff] %v3564
        %3597 = vst [vmem:[%s421 + $0x30] sm:$0xff] %v3565
        %3598 = vst [vmem:[%s421 + $0x38] sm:$0xff] %v3566
        %3599 = vst [vmem:[%s421 + $0x40] sm:$0xff] %v3567
        %3600 = vst [vmem:[%s421 + $0x48] sm:$0xff] %v3568
        %3601 = vst [vmem:[%s421 + $0x50] sm:$0xff] %v3569
        %3602 = vst [vmem:[%s421 + $0x58] sm:$0xff] %v3570
        %3603 = vst [vmem:[%s421 + $0x60] sm:$0xff] %v3571
        %3604 = vst [vmem:[%s421 + $0x68] sm:$0xff] %v3572
        %3605 = vst [vmem:[%s421 + $0x70] sm:$0xff] %v3573
        %3606 = vst [vmem:[%s421 + $0x78] sm:$0xff] %v3574
        %3607 = vst [vmem:[%s421 + $0x80] sm:$0xff] %v3575
        %3608 = vst [vmem:[%s421 + $0x88] sm:$0xff] %v3576
        %3609 = vst [vmem:[%s421 + $0x90] sm:$0xff] %v3577
        %3610 = vst [vmem:[%s421 + $0x98] sm:$0xff] %v3578
        %3611 = vst [vmem:[%s421 + $0xa0] sm:$0xff] %v3579
        %3612 = vst [vmem:[%s421 + $0xa8] sm:$0xff] %v3580
        %3613 = vst [vmem:[%s421 + $0xb0] sm:$0xff] %v3581
        %3614 = vst [vmem:[%s421 + $0xb8] sm:$0xff] %v3582
        %3615 = vst [vmem:[%s421 + $0xc0] sm:$0xff] %v3583
        %3616 = vst [vmem:[%s421 + $0xc8] sm:$0xff] %v3584
        %3617 = vst [vmem:[%s421 + $0xd0] sm:$0xff] %v3585
        %3618 = vst [vmem:[%s421 + $0xd8] sm:$0xff] %v3586
        %3619 = vst [vmem:[%s421 + $0xe0] sm:$0xff] %v3587
        %3620 = vst [vmem:[%s421 + $0xe8] sm:$0xff] %v3588
        %3621 = vst [vmem:[%s421 + $0xf0] sm:$0xff] %v3589
        %3622 = vst [vmem:[%s421 + $0xf8] sm:$0xff] %v3590
        %s3623 = sand.u32 %s252, 1
        %s3624 = scalar_lea.sflag [#allocation6], %s3623
        %s3625 = sand.u32 %s252, 1
        %s3626 = smul.addr %s3625, 256
        %s3627 = scalar_lea.vmem [#allocation12], %s3626
        // Predicated region
        $region77: #{tpu_custom_call.1} parent=59 // pred_check
          %p3628 = pneg %p262
        $region78: #{tpu_custom_call.1} parent=59 // pred_check_branch
          %3630 = sbr.rel (%p3628) target = $region80
        $region79: #{tpu_custom_call.1} parent=59 // pred_region
          %s3632 = ssub.s32 4096, 4096
          %3633 = vsyncadd %s3624, %s3632
          %s3634 = smul.addr %s29, 32
          %s3635 = smul.addr %s3634, 128
          %s3636 = scalar_lea.hbm %s10, %s3635
          %s3637 = sshll.u32 %s3627, 4
          %s3638 = int_to_ptr.vmem [resolvable:$true] %s3637
          %3643 = dma.vmem_to_hbm [thread:$0]  %s3638, 4096, %s3636, %s3624, 128, 128, 8
        $region80: #{tpu_custom_call.1} parent=59 // pred_fallthru
          _
      $region60: #{tpu_custom_call.1} parent=5 // pred_fallthru
        _
      %p3644 = scmp.le.s32.totalorder 2, %s24
      // Predicated region
      $region81: #{tpu_custom_call.1} parent=5 // pred_check
        %p3645 = pneg %p3644
      $region82: #{tpu_custom_call.1} parent=5 // pred_check_branch
        %3647 = sbr.rel (%p3645) target = $region84
      $region83: #{tpu_custom_call.1} parent=5 // pred_region
        %s3648 = ssub.s32 %s24, 2
        // Predicated region
        $region85: #{tpu_custom_call.1} parent=83 // pred_check
          %p3649 = pneg %p268
        $region86: #{tpu_custom_call.1} parent=83 // pred_check_branch
          %3651 = sbr.rel (%p3649) target = $region88
        $region87: #{tpu_custom_call.1} parent=83 // pred_region
          %s3652 = sand.u32 %s253, 1
          %s3653 = scalar_lea.sflag [#allocation6], %s3652
          %s3654 = sand.u32 %s253, 1
          %s3655 = smul.addr %s3654, 256
          %s3656 = scalar_lea.vmem [#allocation12], %s3655
          %3657 = dma.done %s3653, 4096
        $region88: #{tpu_custom_call.1} parent=83 // pred_fallthru
          _
      $region84: #{tpu_custom_call.1} parent=5 // pred_fallthru
        _
    $region6: #{tpu_custom_call.1} parent=1 // loop_footer
      %s28 = sadd.s32 1, %s24
    $region7: #{tpu_custom_call.1} parent=1 // loop_footer_branch
      %23 = sbr.rel target = $region3
    $region8: #{tpu_custom_call.1} parent=1 // loop_exit
      _
    %3658 = vsyncpa [#allocation5], 1
    %s3659 = scalar_lea.sflag [#allocation5], 1
    %3660 = vsyncpa %s3659, 1
    %3661 = vsyncpa [#allocation8], 1
    %3662 = vsyncpa [#allocation11], 1
    %3663 = vsyncpa [#allocation6], 1
    %s3664 = scalar_lea.sflag [#allocation6], 1
    %3665 = vsyncpa %s3664, 1

</llo_original>
